<compile_context>
chip_gen: v6e
topology: v6e:2x2x1
jax: 0.10.0
libtpu: 0.0.40
codegen_flags: <defaults>
</compile_context>

<pallas_src>
import functools

import jax
import jax.numpy as jnp
from jax.experimental import pallas as pl
from jax.experimental.pallas import tpu as pltpu


# ---------------------------------------------------------------------------
# Fused 3x3x3 conv (padding=1) kernel.
#   - optional ChannelLayerNorm32 + SiLU prologue (computed once per plane)
#   - optional residual-add epilogue
#   - optional lane-dense transposed (Cout, H*W) output store
# ---------------------------------------------------------------------------
def _conv3d_kernel(*refs, fuse_ln, has_res, out_transposed, H, W, D, TD, Cin, Cout):
    it = iter(refs)
    xn_ref = next(it)   # (1,1,H,W,Cin)  plane min(d+1, D-1)         (every step)
    x0_ref = next(it)   # (1,1,H,W,Cin)  plane  t*TD                 (const per tile)
    xm_ref = next(it)   # (1,1,H,W,Cin)  plane  max(t*TD-1, 0)       (const per tile)
    w_ref = next(it)    # (27*Cin, Cout) bf16, constant index -> fetched once
    b_ref = next(it)    # (1, Cout) f32
    g_ref = next(it) if fuse_ln else None    # (1, Cin) f32
    be_ref = next(it) if fuse_ln else None   # (1, Cin) f32
    r_ref = next(it) if has_res else None    # (1,1,H,W,Cout) bf16
    o_ref = next(it)
    ln_buf = next(it)   # (3, H+2, W+2, Cin) bf16 rolling padded window of LN'd planes
    col_buf = next(it)  # (H*W, 27*Cin) bf16 im2col slab

    t = pl.program_id(1)
    j = pl.program_id(2)      # NOTE: must stay the innermost, sequentially
    d = t * TD + j            # iterated ("arbitrary") axis: the rolling window
                              # protocol (warm-up at j==0, reuse at j>0) depends
                              # on in-order iteration and on ln_buf persisting
                              # across grid steps.

    def prologue(x):
        # ChannelLayerNorm32 (+ SiLU) in f32; identity cast when not fused.
        if fuse_ln:
            xf = x.astype(jnp.float32)
            mean = jnp.mean(xf, axis=-1, keepdims=True)
            xc = xf - mean
            var = jnp.mean(xc * xc, axis=-1, keepdims=True)
            y = xc * jax.lax.rsqrt(var + 1e-5)
            y = y * g_ref[...] + be_ref[...]
            y = y * jax.nn.sigmoid(y)                       # SiLU
            return y.astype(jnp.bfloat16)
        return x.astype(jnp.bfloat16)

    def stash(slot, x):
        # write the normalized plane into the interior; the zero halo written at
        # warm-up stays intact (PyTorch zero-pads the *activated* tensor).
        ln_buf[slot, pl.ds(1, H), pl.ds(1, W), :] = prologue(x)

    # ---- warm-up at the first plane of this depth tile -----------------------
    @pl.when(j == 0)
    def _():
        ln_buf[...] = jnp.zeros(ln_buf.shape, ln_buf.dtype)   # zero halos / slots
        stash(d % 3, x0_ref[0, 0])                            # plane d

        @pl.when(d > 0)
        def _():
            stash((d + 2) % 3, xm_ref[0, 0])                  # plane d-1
        # if d == 0 the "plane -1" slot stays all-zero (depth padding)

    # ---- plane d+1 enters the rolling window (zeros past the end) ------------
    nslot = (d + 1) % 3

    @pl.when(d + 1 < D)
    def _():
        stash(nslot, xn_ref[0, 0])

    @pl.when(d + 1 >= D)
    def _():
        ln_buf[nslot, pl.ds(1, H), pl.ds(1, W), :] = jnp.zeros((H, W, Cin), jnp.bfloat16)

    # ---- im2col: 27 shifted windows of the 3 padded planes -> one slab -------
    for kd in range(3):
        slot = (d + kd + 2) % 3            # planes d-1, d, d+1
        for kh in range(3):
            for kw in range(3):
                c0 = ((kd * 3 + kh) * 3 + kw) * Cin
                patch = ln_buf[slot, pl.ds(kh, H), pl.ds(kw, W), :]   # (H, W, Cin)
                col_buf[:, c0:c0 + Cin] = patch.reshape(H * W, Cin)

    # ---- single K = 27*Cin MXU matmul, f32 accumulation -----------------------
    acc = jnp.dot(col_buf[...], w_ref[...], preferred_element_type=jnp.float32)
    acc = acc + b_ref[...].astype(jnp.float32)
    if has_res:
        acc = acc + r_ref[0, 0].astype(jnp.float32).reshape(H * W, Cout)

    if out_transposed:
        # lane-dense store for tiny Cout (final layer): last dim is H*W.
        o_ref[0, 0] = acc.astype(o_ref.dtype).T               # (Cout, H*W)
    else:
        o_ref[0, 0] = acc.reshape(H, W, Cout).astype(o_ref.dtype)


def conv3d(x, wk, bias, *, gamma=None, beta=None, residual=None,
           out_dtype=jnp.bfloat16, out_transposed=False, depth_tiles=None):
    """3x3x3 conv, padding=1, on an unpadded channels-last activation.

    x:        [B, D, H, W, Cin] bf16.
    wk:       [27*Cin, Cout] bf16, row order (kd, kh, kw, cin).
    bias:     [1, Cout] f32.
    gamma/beta: optional (Cin,) f32 -> fused ChannelLayerNorm32 + SiLU prologue.
    residual: optional [B, D, H, W, Cout] bf16 added to the conv output.
    out_transposed: store each plane as (Cout, H*W) -> output [B, D, Cout, H*W].
    """
    B, D, H, W, Cin = x.shape
    Cout = wk.shape[-1]
    assert wk.shape[0] == 27 * Cin
    fuse_ln = gamma is not None
    has_res = residual is not None

    if depth_tiles is None:
        depth_tiles = 2 if (D % 2 == 0 and D >= 2) else 1   # keep a 2nd parallel axis (v7x)
    DT = depth_tiles
    assert D % DT == 0
    TD = D // DT

    in_specs = [
        pl.BlockSpec((1, 1, H, W, Cin),
                     lambda b, t, j: (b, jnp.minimum(t * TD + j + 1, D - 1), 0, 0, 0)),
        pl.BlockSpec((1, 1, H, W, Cin),
                     lambda b, t, j: (b, t * TD, 0, 0, 0)),
        pl.BlockSpec((1, 1, H, W, Cin),
                     lambda b, t, j: (b, jnp.maximum(t * TD - 1, 0), 0, 0, 0)),
        pl.BlockSpec((27 * Cin, Cout), lambda b, t, j: (0, 0)),   # constant -> resident
        pl.BlockSpec((1, Cout), lambda b, t, j: (0, 0)),
    ]
    args = [x, x, x, wk, bias]
    if fuse_ln:
        in_specs += [pl.BlockSpec((1, Cin), lambda b, t, j: (0, 0)),
                     pl.BlockSpec((1, Cin), lambda b, t, j: (0, 0))]
        args += [jnp.asarray(gamma, jnp.float32).reshape(1, Cin),
                 jnp.asarray(beta, jnp.float32).reshape(1, Cin)]
    if has_res:
        in_specs.append(pl.BlockSpec((1, 1, H, W, Cout),
                                     lambda b, t, j: (b, t * TD + j, 0, 0, 0)))
        args.append(residual)

    if out_transposed:
        out_shape = jax.ShapeDtypeStruct((B, D, Cout, H * W), out_dtype)
        out_spec = pl.BlockSpec((1, 1, Cout, H * W),
                                lambda b, t, j: (b, t * TD + j, 0, 0))
    else:
        out_shape = jax.ShapeDtypeStruct((B, D, H, W, Cout), out_dtype)
        out_spec = pl.BlockSpec((1, 1, H, W, Cout),
                                lambda b, t, j: (b, t * TD + j, 0, 0, 0))

    kernel = functools.partial(_conv3d_kernel, fuse_ln=fuse_ln, has_res=has_res,
                               out_transposed=out_transposed,
                               H=H, W=W, D=D, TD=TD, Cin=Cin, Cout=Cout)
    return pl.pallas_call(
        kernel,
        out_shape=out_shape,
        grid=(B, DT, TD),
        in_specs=in_specs,
        out_specs=out_spec,
        scratch_shapes=[pltpu.VMEM((3, H + 2, W + 2, Cin), jnp.bfloat16),
                        pltpu.VMEM((H * W, 27 * Cin), jnp.bfloat16)],
        compiler_params=pltpu.CompilerParams(
            dimension_semantics=("parallel", "parallel", "arbitrary"),
            vmem_limit_bytes=48 * 1024 * 1024),
    )(*args)


# ---------------------------------------------------------------------------
# Plain-JAX glue (layout only, no hot-path compute)
# ---------------------------------------------------------------------------
def res_block(x, p):
    # h = conv1(SiLU(LN1(x)));  out = conv2(SiLU(LN2(h))) + x   (skip = Identity)
    h = conv3d(x, p["conv1_wk"], p["conv1_b"], gamma=p["norm1_g"], beta=p["norm1_b"])
    h = conv3d(h, p["conv2_wk"], p["conv2_b"], gamma=p["norm2_g"], beta=p["norm2_b"],
               residual=x)
    return h


def upsample_block(x, wk, bias):
    # conv weight columns are pre-permuted to (sd, sh, sw, c) order, so the
    # pixel shuffle keeps the channel (lane) axis last.
    h = conv3d(x, wk, bias)                           # [B, D, H, W, 8*C_]
    B, D, H, W, C8 = h.shape
    C_ = C8 // 8
    h = h.reshape(B, D, H, W, 2, 2, 2, C_)
    h = jnp.transpose(h, (0, 1, 4, 2, 5, 3, 6, 7))    # B, D,sd, H,sh, W,sw, C_
    return h.reshape(B, 2 * D, 2 * H, 2 * W, C_)


def sparse_structure_decoder_forward(x_ncdhw, params):
    # NCDHW -> NDHWC, bf16 torso, unpadded channels-last carry.
    x = jnp.transpose(x_ncdhw, (0, 2, 3, 4, 1)).astype(jnp.bfloat16)
    h = conv3d(x, *params["input_layer"])

    for p in params["middle"]:
        h = res_block(h, p)

    for kind, p in params["blocks"]:
        h = res_block(h, p) if kind == "res" else upsample_block(h, *p)

    # out_layer: LayerNorm + SiLU fused into the final conv; lane-dense
    # transposed (Cout, H*W) store, f32 output.
    B, D, H, W, _ = h.shape
    g, bb = params["out_norm"]
    y = conv3d(h, *params["out_conv"], gamma=g, beta=bb,
               out_dtype=jnp.float32, out_transposed=True)     # [B, D, Cout, H*W]
    y = y.reshape(B, D, -1, H, W)
    return jnp.transpose(y, (0, 2, 1, 3, 4))                   # NCDHW


# ---------------------------------------------------------------------------
# Parameter prep / init (deterministic, synthetic)
# ---------------------------------------------------------------------------
def _prep_conv3d_weights(w, b, shuffle=False):
    """PyTorch [Cout, Cin, 3,3,3] -> kernel layout [27*Cin, Cout] bf16 (kd,kh,kw,cin rows)."""
    cout, cin = w.shape[0], w.shape[1]
    wk = jnp.transpose(w, (2, 3, 4, 1, 0)).reshape(27 * cin, cout)
    bb = b
    if shuffle:  # fold pixel_shuffle channel split (c, sd, sh, sw) -> (sd, sh, sw, c)
        c_ = cout // 8
        wk = wk.reshape(27 * cin, c_, 2, 2, 2)
        wk = jnp.transpose(wk, (0, 2, 3, 4, 1)).reshape(27 * cin, cout)
        bb = jnp.transpose(b.reshape(c_, 2, 2, 2), (1, 2, 3, 0)).reshape(cout)
    return wk.astype(jnp.bfloat16), bb.reshape(1, cout).astype(jnp.float32)


def _conv_params(key, cin, cout, shuffle=False):
    k1, k2 = jax.random.split(key)
    w = jax.random.normal(k1, (cout, cin, 3, 3, 3), jnp.float32) * 0.05
    b = jax.random.normal(k2, (cout,), jnp.float32) * 0.05
    return _prep_conv3d_weights(w, b, shuffle=shuffle)


def _res_params(key, ch):
    k1, k2 = jax.random.split(key)
    c1w, c1b = _conv_params(k1, ch, ch)
    # NOTE: PyTorch zero-inits conv2 (zero_module); random here (synthetic) so
    # the residual/epilogue path is actually exercised numerically.
    c2w, c2b = _conv_params(k2, ch, ch)
    return {
        "norm1_g": jnp.ones((ch,), jnp.float32), "norm1_b": jnp.zeros((ch,), jnp.float32),
        "conv1_wk": c1w, "conv1_b": c1b,
        "norm2_g": jnp.ones((ch,), jnp.float32), "norm2_b": jnp.zeros((ch,), jnp.float32),
        "conv2_wk": c2w, "conv2_b": c2b,
    }


def init_params(key, out_channels, latent_channels, num_res_blocks, channels,
                num_res_blocks_middle):
    params = {}
    key, k = jax.random.split(key)
    params["input_layer"] = _conv_params(k, latent_channels, channels[0])

    middle = []
    for _ in range(num_res_blocks_middle):
        key, k = jax.random.split(key)
        middle.append(_res_params(k, channels[0]))
    params["middle"] = middle

    blocks = []
    for i, ch in enumerate(channels):
        for _ in range(num_res_blocks):
            key, k = jax.random.split(key)
            blocks.append(("res", _res_params(k, ch)))
        if i < len(channels) - 1:
            key, k = jax.random.split(key)
            blocks.append(("up", _conv_params(k, ch, channels[i + 1] * 8, shuffle=True)))
    params["blocks"] = blocks

    params["out_norm"] = (jnp.ones((channels[-1],), jnp.float32),
                          jnp.zeros((channels[-1],), jnp.float32))
    key, k = jax.random.split(key)
    params["out_conv"] = _conv_params(k, channels[-1], out_channels)
    return params


# ---------------------------------------------------------------------------
# XLA reference (used for in-script validation of the conv kernel)
# ---------------------------------------------------------------------------
def _conv3d_reference(x, w, b, gamma=None, beta=None, residual=None):
    a = x.astype(jnp.float32)
    if gamma is not None:
        mean = a.mean(-1, keepdims=True)
        var = ((a - mean) ** 2).mean(-1, keepdims=True)
        a = (a - mean) * jax.lax.rsqrt(var + 1e-5) * gamma + beta
        a = a * jax.nn.sigmoid(a)
        a = a.astype(jnp.bfloat16).astype(jnp.float32)
    wd = jnp.transpose(w, (2, 3, 4, 1, 0)).astype(jnp.bfloat16).astype(jnp.float32)
    out = jax.lax.conv_general_dilated(
        a, wd, window_strides=(1, 1, 1), padding=((1, 1), (1, 1), (1, 1)),
        dimension_numbers=("NDHWC", "DHWIO", "NDHWC"))
    out = out + b.astype(jnp.float32)
    if residual is not None:
        out = out + residual.astype(jnp.float32)
    return out


if __name__ == "__main__":
    key = jax.random.PRNGKey(0)
    k1, k2, k3, k4, k5, k6, k7, key = jax.random.split(key, 8)

    # ---- unit check (a): plain conv, odd depth (single tile), H != W ----------
    B, D, H, W, Cin, Cout = 2, 5, 8, 4, 4, 8
    xt = jax.random.normal(k1, (B, D, H, W, Cin), jnp.float32).astype(jnp.bfloat16)
    wt = jax.random.normal(k2, (Cout, Cin, 3, 3, 3), jnp.float32) * 0.1
    bt = jax.random.normal(k3, (Cout,), jnp.float32) * 0.1
    wk_t, bk_t = _prep_conv3d_weights(wt, bt)
    got = conv3d(xt, wk_t, bk_t, out_dtype=jnp.float32)
    want = _conv3d_reference(xt, wt, bt)
    assert jnp.allclose(got, want, atol=2e-2, rtol=2e-2), float(jnp.max(jnp.abs(got - want)))

    got_t = conv3d(xt, wk_t, bk_t, out_dtype=jnp.float32, out_transposed=True)
    got_t = jnp.transpose(got_t.reshape(B, D, Cout, H, W), (0, 1, 3, 4, 2))
    assert jnp.allclose(got_t, want, atol=2e-2, rtol=2e-2)

    # ---- unit check (b): fused LN+SiLU prologue + residual, two depth tiles ---
    B, D, H, W, C = 2, 4, 4, 8, 8
    xt = jax.random.normal(k4, (B, D, H, W, C), jnp.float32).astype(jnp.bfloat16)
    rt = jax.random.normal(k5, (B, D, H, W, C), jnp.float32).astype(jnp.bfloat16)
    wt = jax.random.normal(k6, (C, C, 3, 3, 3), jnp.float32) * 0.1
    bt = jax.random.normal(k7, (C,), jnp.float32) * 0.1
    gt = 1.0 + 0.3 * jax.random.normal(k3, (C,), jnp.float32)
    bet = 0.1 * jax.random.normal(k2, (C,), jnp.float32)
    wk_t, bk_t = _prep_conv3d_weights(wt, bt)
    got = conv3d(xt, wk_t, bk_t, gamma=gt, beta=bet, residual=rt, out_dtype=jnp.float32)
    want = _conv3d_reference(xt, wt, bt, gamma=gt, beta=bet, residual=rt)
    assert jnp.allclose(got, want, atol=5e-2, rtol=5e-2), float(jnp.max(jnp.abs(got - want)))

    # ---- full decoder ----------------------------------------------------------
    # Small config: out_channels=4, latent_channels=4, num_res_blocks=1,
    # channels=[8, 8], num_res_blocks_middle=1, norm_type='layer'.
    out_channels, latent_channels = 4, 4
    channels = [8, 8]
    num_res_blocks, num_res_blocks_middle = 1, 1

    B, Dz = 2, 4
    kx, kp = jax.random.split(key)
    x = jax.random.normal(kx, (B, latent_channels, Dz, Dz, Dz), jnp.float32)  # [B,C,D,H,W]

    params = init_params(kp, out_channels, latent_channels, num_res_blocks,
                         channels, num_res_blocks_middle)

    fwd = jax.jit(lambda xx: sparse_structure_decoder_forward(xx, params))
    y = fwd(x)
    jax.block_until_ready(y)

    # one upsample stage: spatial 4 -> 8
    assert y.shape == (B, out_channels, Dz * 2, Dz * 2, Dz * 2), y.shape
    assert bool(jnp.all(jnp.isfinite(y)))
    print("KERNEL_OK")
</pallas_src>

<mosaic_0001>
module attributes {stable_mosaic.version = 11 : i64} {
  func.func @_conv3d_kernel(%arg0: i32, %arg1: i32, %arg2: i32, %arg3: memref<1x1x8x4x4xbf16, #tpu.memory_space<vmem>>, %arg4: memref<1x1x8x4x4xbf16, #tpu.memory_space<vmem>>, %arg5: memref<1x1x8x4x4xbf16, #tpu.memory_space<vmem>>, %arg6: memref<108x8xbf16, #tpu.memory_space<vmem>>, %arg7: memref<1x8xf32, #tpu.memory_space<vmem>>, %arg8: memref<1x1x8x4x8xf32, #tpu.memory_space<vmem>>, %arg9: memref<3x10x6x4xbf16, #tpu.memory_space<vmem>>, %arg10: memref<32x108xbf16, #tpu.memory_space<vmem>>) attributes {dimension_semantics = [#tpu.dimension_semantics<parallel>, #tpu.dimension_semantics<parallel>, #tpu.dimension_semantics<arbitrary>], iteration_bounds = array<i64: 2, 1, 5>, scalar_prefetch = 0 : i64, scratch_operands = 2 : i64, tpu.core_type = #tpu.core_type<tc>, window_params = [{transform_indices = @transform_0, window_bounds = array<i64: 1, 1, 8, 4, 4>}, {transform_indices = @transform_1, window_bounds = array<i64: 1, 1, 8, 4, 4>}, {transform_indices = @transform_2, window_bounds = array<i64: 1, 1, 8, 4, 4>}, {pipeline_mode = #tpu.pipeline_mode<synchronous>, transform_indices = @transform_3, window_bounds = array<i64: 108, 8>}, {pipeline_mode = #tpu.pipeline_mode<synchronous>, transform_indices = @transform_4, window_bounds = array<i64: 1, 8>}, {transform_indices = @transform_5, window_bounds = array<i64: 1, 1, 8, 4, 8>}]} {
    %c5_i32 = arith.constant 5 : i32
    %0 = arith.muli %arg1, %c5_i32 : i32
    %1 = arith.addi %0, %arg2 : i32
    %c0_i32 = arith.constant 0 : i32
    %2 = arith.cmpi eq, %arg2, %c0_i32 : i32
    %3 = arith.extui %2 : i1 to i32
    %c0_i32_0 = arith.constant 0 : i32
    %4 = arith.cmpi ne, %3, %c0_i32_0 : i32
    scf.if %4 {
      %cst_152 = arith.constant 0.000000e+00 : bf16
      %205 = vector.broadcast %cst_152 : bf16 to vector<3x10x6x4xbf16>
      %c0_153 = arith.constant 0 : index
      %c0_154 = arith.constant 0 : index
      %c0_155 = arith.constant 0 : index
      %c0_156 = arith.constant 0 : index
      %206 = vector.load %arg9[%c0_153, %c0_154, %c0_155, %c0_156] : memref<3x10x6x4xbf16, #tpu.memory_space<vmem>>, vector<3x10x6x4xbf16>
      tpu.vector_store %arg9[%c0_153, %c0_154, %c0_155, %c0_156], %205 {strides = array<i32>} : memref<3x10x6x4xbf16, #tpu.memory_space<vmem>>, vector<3x10x6x4xbf16>,
      %c3_i32_157 = arith.constant 3 : i32
      %c0_i32_158 = arith.constant 0 : i32
      %207 = arith.cmpi eq, %c3_i32_157, %c0_i32_158 : i32
      %c1_i32_159 = arith.constant 1 : i32
      %208 = arith.select %207, %c1_i32_159, %c3_i32_157 : i32
      %209 = arith.remsi %1, %208 : i32
      %c0_i32_160 = arith.constant 0 : i32
      %210 = arith.cmpi ne, %209, %c0_i32_160 : i32
      %c0_i32_161 = arith.constant 0 : i32
      %211 = arith.cmpi slt, %209, %c0_i32_161 : i32
      %c0_i32_162 = arith.constant 0 : i32
      %212 = arith.cmpi slt, %208, %c0_i32_162 : i32
      %213 = arith.xori %211, %212 : i1
      %214 = arith.andi %213, %210 : i1
      %215 = arith.addi %209, %208 : i32
      %216 = arith.select %214, %215, %209 : i32
      %c0_163 = arith.constant 0 : index
      %c0_164 = arith.constant 0 : index
      %c0_165 = arith.constant 0 : index
      %c0_166 = arith.constant 0 : index
      %c0_167 = arith.constant 0 : index
      %217 = vector.load %arg4[%c0_163, %c0_164, %c0_165, %c0_166, %c0_167] : memref<1x1x8x4x4xbf16, #tpu.memory_space<vmem>>, vector<1x1x8x4x4xbf16>
      %218 = vector.shape_cast %217 : vector<1x1x8x4x4xbf16> to vector<8x4x4xbf16>
      %219 = arith.index_cast %216 : i32 to index
      %c1_168 = arith.constant 1 : index
      %c1_169 = arith.constant 1 : index
      %c0_170 = arith.constant 0 : index
      %220 = vector.load %arg9[%219, %c1_168, %c1_169, %c0_170] : memref<3x10x6x4xbf16, #tpu.memory_space<vmem>>, vector<1x8x4x4xbf16>
      %221 = vector.shape_cast %220 : vector<1x8x4x4xbf16> to vector<8x4x4xbf16>
      %222 = vector.shape_cast %218 : vector<8x4x4xbf16> to vector<1x8x4x4xbf16>
      tpu.vector_store %arg9[%219, %c1_168, %c1_169, %c0_170], %222 {strides = array<i32>} : memref<3x10x6x4xbf16, #tpu.memory_space<vmem>>, vector<1x8x4x4xbf16>,
      %c0_i32_171 = arith.constant 0 : i32
      %223 = arith.cmpi sgt, %1, %c0_i32_171 : i32
      %224 = arith.extui %223 : i1 to i32
      %c0_i32_172 = arith.constant 0 : i32
      %225 = arith.cmpi ne, %224, %c0_i32_172 : i32
      scf.if %225 {
        %c2_i32_173 = arith.constant 2 : i32
        %226 = arith.addi %1, %c2_i32_173 : i32
        %c3_i32_174 = arith.constant 3 : i32
        %c0_i32_175 = arith.constant 0 : i32
        %227 = arith.cmpi eq, %c3_i32_174, %c0_i32_175 : i32
        %c1_i32_176 = arith.constant 1 : i32
        %228 = arith.select %227, %c1_i32_176, %c3_i32_174 : i32
        %229 = arith.remsi %226, %228 : i32
        %c0_i32_177 = arith.constant 0 : i32
        %230 = arith.cmpi ne, %229, %c0_i32_177 : i32
        %c0_i32_178 = arith.constant 0 : i32
        %231 = arith.cmpi slt, %229, %c0_i32_178 : i32
        %c0_i32_179 = arith.constant 0 : i32
        %232 = arith.cmpi slt, %228, %c0_i32_179 : i32
        %233 = arith.xori %231, %232 : i1
        %234 = arith.andi %233, %230 : i1
        %235 = arith.addi %229, %228 : i32
        %236 = arith.select %234, %235, %229 : i32
        %c0_180 = arith.constant 0 : index
        %c0_181 = arith.constant 0 : index
        %c0_182 = arith.constant 0 : index
        %c0_183 = arith.constant 0 : index
        %c0_184 = arith.constant 0 : index
        %237 = vector.load %arg5[%c0_180, %c0_181, %c0_182, %c0_183, %c0_184] : memref<1x1x8x4x4xbf16, #tpu.memory_space<vmem>>, vector<1x1x8x4x4xbf16>
        %238 = vector.shape_cast %237 : vector<1x1x8x4x4xbf16> to vector<8x4x4xbf16>
        %239 = arith.index_cast %236 : i32 to index
        %c1_185 = arith.constant 1 : index
        %c1_186 = arith.constant 1 : index
        %c0_187 = arith.constant 0 : index
        %240 = vector.load %arg9[%239, %c1_185, %c1_186, %c0_187] : memref<3x10x6x4xbf16, #tpu.memory_space<vmem>>, vector<1x8x4x4xbf16>
        %241 = vector.shape_cast %240 : vector<1x8x4x4xbf16> to vector<8x4x4xbf16>
        %242 = vector.shape_cast %238 : vector<8x4x4xbf16> to vector<1x8x4x4xbf16>
        tpu.vector_store %arg9[%239, %c1_185, %c1_186, %c0_187], %242 {strides = array<i32>} : memref<3x10x6x4xbf16, #tpu.memory_space<vmem>>, vector<1x8x4x4xbf16>,
      } else {
      }
    } else {
    }
    %c1_i32 = arith.constant 1 : i32
    %5 = arith.addi %1, %c1_i32 : i32
    %c3_i32 = arith.constant 3 : i32
    %c0_i32_1 = arith.constant 0 : i32
    %6 = arith.cmpi eq, %c3_i32, %c0_i32_1 : i32
    %c1_i32_2 = arith.constant 1 : i32
    %7 = arith.select %6, %c1_i32_2, %c3_i32 : i32
    %8 = arith.remsi %5, %7 : i32
    %c0_i32_3 = arith.constant 0 : i32
    %9 = arith.cmpi ne, %8, %c0_i32_3 : i32
    %c0_i32_4 = arith.constant 0 : i32
    %10 = arith.cmpi slt, %8, %c0_i32_4 : i32
    %c0_i32_5 = arith.constant 0 : i32
    %11 = arith.cmpi slt, %7, %c0_i32_5 : i32
    %12 = arith.xori %10, %11 : i1
    %13 = arith.andi %12, %9 : i1
    %14 = arith.addi %8, %7 : i32
    %15 = arith.select %13, %14, %8 : i32
    %c1_i32_6 = arith.constant 1 : i32
    %16 = arith.addi %1, %c1_i32_6 : i32
    %c5_i32_7 = arith.constant 5 : i32
    %17 = arith.cmpi slt, %16, %c5_i32_7 : i32
    %18 = arith.extui %17 : i1 to i32
    %c0_i32_8 = arith.constant 0 : i32
    %19 = arith.cmpi ne, %18, %c0_i32_8 : i32
    scf.if %19 {
      %c0_152 = arith.constant 0 : index
      %c0_153 = arith.constant 0 : index
      %c0_154 = arith.constant 0 : index
      %c0_155 = arith.constant 0 : index
      %c0_156 = arith.constant 0 : index
      %205 = vector.load %arg3[%c0_152, %c0_153, %c0_154, %c0_155, %c0_156] : memref<1x1x8x4x4xbf16, #tpu.memory_space<vmem>>, vector<1x1x8x4x4xbf16>
      %206 = vector.shape_cast %205 : vector<1x1x8x4x4xbf16> to vector<8x4x4xbf16>
      %207 = arith.index_cast %15 : i32 to index
      %c1_157 = arith.constant 1 : index
      %c1_158 = arith.constant 1 : index
      %c0_159 = arith.constant 0 : index
      %208 = vector.load %arg9[%207, %c1_157, %c1_158, %c0_159] : memref<3x10x6x4xbf16, #tpu.memory_space<vmem>>, vector<1x8x4x4xbf16>
      %209 = vector.shape_cast %208 : vector<1x8x4x4xbf16> to vector<8x4x4xbf16>
      %210 = vector.shape_cast %206 : vector<8x4x4xbf16> to vector<1x8x4x4xbf16>
      tpu.vector_store %arg9[%207, %c1_157, %c1_158, %c0_159], %210 {strides = array<i32>} : memref<3x10x6x4xbf16, #tpu.memory_space<vmem>>, vector<1x8x4x4xbf16>,
    } else {
    }
    %c1_i32_9 = arith.constant 1 : i32
    %20 = arith.addi %1, %c1_i32_9 : i32
    %c5_i32_10 = arith.constant 5 : i32
    %21 = arith.cmpi sge, %20, %c5_i32_10 : i32
    %22 = arith.extui %21 : i1 to i32
    %c0_i32_11 = arith.constant 0 : i32
    %23 = arith.cmpi ne, %22, %c0_i32_11 : i32
    scf.if %23 {
      %cst_152 = arith.constant 0.000000e+00 : bf16
      %205 = vector.broadcast %cst_152 : bf16 to vector<8x4x4xbf16>
      %206 = arith.index_cast %15 : i32 to index
      %c1_153 = arith.constant 1 : index
      %c1_154 = arith.constant 1 : index
      %c0_155 = arith.constant 0 : index
      %207 = vector.load %arg9[%206, %c1_153, %c1_154, %c0_155] : memref<3x10x6x4xbf16, #tpu.memory_space<vmem>>, vector<1x8x4x4xbf16>
      %208 = vector.shape_cast %207 : vector<1x8x4x4xbf16> to vector<8x4x4xbf16>
      %209 = vector.shape_cast %205 : vector<8x4x4xbf16> to vector<1x8x4x4xbf16>
      tpu.vector_store %arg9[%206, %c1_153, %c1_154, %c0_155], %209 {strides = array<i32>} : memref<3x10x6x4xbf16, #tpu.memory_space<vmem>>, vector<1x8x4x4xbf16>,
    } else {
    }
    %c0_i32_12 = arith.constant 0 : i32
    %24 = arith.addi %1, %c0_i32_12 : i32
    %c2_i32 = arith.constant 2 : i32
    %25 = arith.addi %24, %c2_i32 : i32
    %c3_i32_13 = arith.constant 3 : i32
    %c0_i32_14 = arith.constant 0 : i32
    %26 = arith.cmpi eq, %c3_i32_13, %c0_i32_14 : i32
    %c1_i32_15 = arith.constant 1 : i32
    %27 = arith.select %26, %c1_i32_15, %c3_i32_13 : i32
    %28 = arith.remsi %25, %27 : i32
    %c0_i32_16 = arith.constant 0 : i32
    %29 = arith.cmpi ne, %28, %c0_i32_16 : i32
    %c0_i32_17 = arith.constant 0 : i32
    %30 = arith.cmpi slt, %28, %c0_i32_17 : i32
    %c0_i32_18 = arith.constant 0 : i32
    %31 = arith.cmpi slt, %27, %c0_i32_18 : i32
    %32 = arith.xori %30, %31 : i1
    %33 = arith.andi %32, %29 : i1
    %34 = arith.addi %28, %27 : i32
    %35 = arith.select %33, %34, %28 : i32
    %36 = arith.index_cast %35 : i32 to index
    %c0 = arith.constant 0 : index
    %c0_19 = arith.constant 0 : index
    %c0_20 = arith.constant 0 : index
    %37 = vector.load %arg9[%36, %c0, %c0_19, %c0_20] : memref<3x10x6x4xbf16, #tpu.memory_space<vmem>>, vector<1x8x4x4xbf16>
    %38 = vector.shape_cast %37 : vector<1x8x4x4xbf16> to vector<8x4x4xbf16>
    %39 = vector.shape_cast %38 : vector<8x4x4xbf16> to vector<32x4xbf16>
    %c0_21 = arith.constant 0 : index
    %c0_22 = arith.constant 0 : index
    %40 = vector.load %arg10[%c0_21, %c0_22] : memref<32x108xbf16, #tpu.memory_space<vmem>>, vector<32x4xbf16>
    tpu.vector_store %arg10[%c0_21, %c0_22], %39 {strides = array<i32>} : memref<32x108xbf16, #tpu.memory_space<vmem>>, vector<32x4xbf16>,
    %41 = arith.index_cast %35 : i32 to index
    %c0_23 = arith.constant 0 : index
    %c1 = arith.constant 1 : index
    %c0_24 = arith.constant 0 : index
    %42 = vector.load %arg9[%41, %c0_23, %c1, %c0_24] : memref<3x10x6x4xbf16, #tpu.memory_space<vmem>>, vector<1x8x4x4xbf16>
    %43 = vector.shape_cast %42 : vector<1x8x4x4xbf16> to vector<8x4x4xbf16>
    %44 = vector.shape_cast %43 : vector<8x4x4xbf16> to vector<32x4xbf16>
    %c0_25 = arith.constant 0 : index
    %c4 = arith.constant 4 : index
    %45 = vector.load %arg10[%c0_25, %c4] : memref<32x108xbf16, #tpu.memory_space<vmem>>, vector<32x4xbf16>
    tpu.vector_store %arg10[%c0_25, %c4], %44 {strides = array<i32>} : memref<32x108xbf16, #tpu.memory_space<vmem>>, vector<32x4xbf16>,
    %46 = arith.index_cast %35 : i32 to index
    %c0_26 = arith.constant 0 : index
    %c2 = arith.constant 2 : index
    %c0_27 = arith.constant 0 : index
    %47 = vector.load %arg9[%46, %c0_26, %c2, %c0_27] : memref<3x10x6x4xbf16, #tpu.memory_space<vmem>>, vector<1x8x4x4xbf16>
    %48 = vector.shape_cast %47 : vector<1x8x4x4xbf16> to vector<8x4x4xbf16>
    %49 = vector.shape_cast %48 : vector<8x4x4xbf16> to vector<32x4xbf16>
    %c0_28 = arith.constant 0 : index
    %c8 = arith.constant 8 : index
    %50 = vector.load %arg10[%c0_28, %c8] : memref<32x108xbf16, #tpu.memory_space<vmem>>, vector<32x4xbf16>
    tpu.vector_store %arg10[%c0_28, %c8], %49 {strides = array<i32>} : memref<32x108xbf16, #tpu.memory_space<vmem>>, vector<32x4xbf16>,
    %51 = arith.index_cast %35 : i32 to index
    %c1_29 = arith.constant 1 : index
    %c0_30 = arith.constant 0 : index
    %c0_31 = arith.constant 0 : index
    %52 = vector.load %arg9[%51, %c1_29, %c0_30, %c0_31] : memref<3x10x6x4xbf16, #tpu.memory_space<vmem>>, vector<1x8x4x4xbf16>
    %53 = vector.shape_cast %52 : vector<1x8x4x4xbf16> to vector<8x4x4xbf16>
    %54 = vector.shape_cast %53 : vector<8x4x4xbf16> to vector<32x4xbf16>
    %c0_32 = arith.constant 0 : index
    %c12 = arith.constant 12 : index
    %55 = vector.load %arg10[%c0_32, %c12] : memref<32x108xbf16, #tpu.memory_space<vmem>>, vector<32x4xbf16>
    tpu.vector_store %arg10[%c0_32, %c12], %54 {strides = array<i32>} : memref<32x108xbf16, #tpu.memory_space<vmem>>, vector<32x4xbf16>,
    %56 = arith.index_cast %35 : i32 to index
    %c1_33 = arith.constant 1 : index
    %c1_34 = arith.constant 1 : index
    %c0_35 = arith.constant 0 : index
    %57 = vector.load %arg9[%56, %c1_33, %c1_34, %c0_35] : memref<3x10x6x4xbf16, #tpu.memory_space<vmem>>, vector<1x8x4x4xbf16>
    %58 = vector.shape_cast %57 : vector<1x8x4x4xbf16> to vector<8x4x4xbf16>
    %59 = vector.shape_cast %58 : vector<8x4x4xbf16> to vector<32x4xbf16>
    %c0_36 = arith.constant 0 : index
    %c16 = arith.constant 16 : index
    %60 = vector.load %arg10[%c0_36, %c16] : memref<32x108xbf16, #tpu.memory_space<vmem>>, vector<32x4xbf16>
    tpu.vector_store %arg10[%c0_36, %c16], %59 {strides = array<i32>} : memref<32x108xbf16, #tpu.memory_space<vmem>>, vector<32x4xbf16>,
    %61 = arith.index_cast %35 : i32 to index
    %c1_37 = arith.constant 1 : index
    %c2_38 = arith.constant 2 : index
    %c0_39 = arith.constant 0 : index
    %62 = vector.load %arg9[%61, %c1_37, %c2_38, %c0_39] : memref<3x10x6x4xbf16, #tpu.memory_space<vmem>>, vector<1x8x4x4xbf16>
    %63 = vector.shape_cast %62 : vector<1x8x4x4xbf16> to vector<8x4x4xbf16>
    %64 = vector.shape_cast %63 : vector<8x4x4xbf16> to vector<32x4xbf16>
    %c0_40 = arith.constant 0 : index
    %c20 = arith.constant 20 : index
    %65 = vector.load %arg10[%c0_40, %c20] : memref<32x108xbf16, #tpu.memory_space<vmem>>, vector<32x4xbf16>
    tpu.vector_store %arg10[%c0_40, %c20], %64 {strides = array<i32>} : memref<32x108xbf16, #tpu.memory_space<vmem>>, vector<32x4xbf16>,
    %66 = arith.index_cast %35 : i32 to index
    %c2_41 = arith.constant 2 : index
    %c0_42 = arith.constant 0 : index
    %c0_43 = arith.constant 0 : index
    %67 = vector.load %arg9[%66, %c2_41, %c0_42, %c0_43] : memref<3x10x6x4xbf16, #tpu.memory_space<vmem>>, vector<1x8x4x4xbf16>
    %68 = vector.shape_cast %67 : vector<1x8x4x4xbf16> to vector<8x4x4xbf16>
    %69 = vector.shape_cast %68 : vector<8x4x4xbf16> to vector<32x4xbf16>
    %c0_44 = arith.constant 0 : index
    %c24 = arith.constant 24 : index
    %70 = vector.load %arg10[%c0_44, %c24] : memref<32x108xbf16, #tpu.memory_space<vmem>>, vector<32x4xbf16>
    tpu.vector_store %arg10[%c0_44, %c24], %69 {strides = array<i32>} : memref<32x108xbf16, #tpu.memory_space<vmem>>, vector<32x4xbf16>,
    %71 = arith.index_cast %35 : i32 to index
    %c2_45 = arith.constant 2 : index
    %c1_46 = arith.constant 1 : index
    %c0_47 = arith.constant 0 : index
    %72 = vector.load %arg9[%71, %c2_45, %c1_46, %c0_47] : memref<3x10x6x4xbf16, #tpu.memory_space<vmem>>, vector<1x8x4x4xbf16>
    %73 = vector.shape_cast %72 : vector<1x8x4x4xbf16> to vector<8x4x4xbf16>
    %74 = vector.shape_cast %73 : vector<8x4x4xbf16> to vector<32x4xbf16>
    %c0_48 = arith.constant 0 : index
    %c28 = arith.constant 28 : index
    %75 = vector.load %arg10[%c0_48, %c28] : memref<32x108xbf16, #tpu.memory_space<vmem>>, vector<32x4xbf16>
    tpu.vector_store %arg10[%c0_48, %c28], %74 {strides = array<i32>} : memref<32x108xbf16, #tpu.memory_space<vmem>>, vector<32x4xbf16>,
    %76 = arith.index_cast %35 : i32 to index
    %c2_49 = arith.constant 2 : index
    %c2_50 = arith.constant 2 : index
    %c0_51 = arith.constant 0 : index
    %77 = vector.load %arg9[%76, %c2_49, %c2_50, %c0_51] : memref<3x10x6x4xbf16, #tpu.memory_space<vmem>>, vector<1x8x4x4xbf16>
    %78 = vector.shape_cast %77 : vector<1x8x4x4xbf16> to vector<8x4x4xbf16>
    %79 = vector.shape_cast %78 : vector<8x4x4xbf16> to vector<32x4xbf16>
    %c0_52 = arith.constant 0 : index
    %c32 = arith.constant 32 : index
    %80 = vector.load %arg10[%c0_52, %c32] : memref<32x108xbf16, #tpu.memory_space<vmem>>, vector<32x4xbf16>
    tpu.vector_store %arg10[%c0_52, %c32], %79 {strides = array<i32>} : memref<32x108xbf16, #tpu.memory_space<vmem>>, vector<32x4xbf16>,
    %c1_i32_53 = arith.constant 1 : i32
    %81 = arith.addi %1, %c1_i32_53 : i32
    %c2_i32_54 = arith.constant 2 : i32
    %82 = arith.addi %81, %c2_i32_54 : i32
    %c3_i32_55 = arith.constant 3 : i32
    %c0_i32_56 = arith.constant 0 : i32
    %83 = arith.cmpi eq, %c3_i32_55, %c0_i32_56 : i32
    %c1_i32_57 = arith.constant 1 : i32
    %84 = arith.select %83, %c1_i32_57, %c3_i32_55 : i32
    %85 = arith.remsi %82, %84 : i32
    %c0_i32_58 = arith.constant 0 : i32
    %86 = arith.cmpi ne, %85, %c0_i32_58 : i32
    %c0_i32_59 = arith.constant 0 : i32
    %87 = arith.cmpi slt, %85, %c0_i32_59 : i32
    %c0_i32_60 = arith.constant 0 : i32
    %88 = arith.cmpi slt, %84, %c0_i32_60 : i32
    %89 = arith.xori %87, %88 : i1
    %90 = arith.andi %89, %86 : i1
    %91 = arith.addi %85, %84 : i32
    %92 = arith.select %90, %91, %85 : i32
    %93 = arith.index_cast %92 : i32 to index
    %c0_61 = arith.constant 0 : index
    %c0_62 = arith.constant 0 : index
    %c0_63 = arith.constant 0 : index
    %94 = vector.load %arg9[%93, %c0_61, %c0_62, %c0_63] : memref<3x10x6x4xbf16, #tpu.memory_space<vmem>>, vector<1x8x4x4xbf16>
    %95 = vector.shape_cast %94 : vector<1x8x4x4xbf16> to vector<8x4x4xbf16>
    %96 = vector.shape_cast %95 : vector<8x4x4xbf16> to vector<32x4xbf16>
    %c0_64 = arith.constant 0 : index
    %c36 = arith.constant 36 : index
    %97 = vector.load %arg10[%c0_64, %c36] : memref<32x108xbf16, #tpu.memory_space<vmem>>, vector<32x4xbf16>
    tpu.vector_store %arg10[%c0_64, %c36], %96 {strides = array<i32>} : memref<32x108xbf16, #tpu.memory_space<vmem>>, vector<32x4xbf16>,
    %98 = arith.index_cast %92 : i32 to index
    %c0_65 = arith.constant 0 : index
    %c1_66 = arith.constant 1 : index
    %c0_67 = arith.constant 0 : index
    %99 = vector.load %arg9[%98, %c0_65, %c1_66, %c0_67] : memref<3x10x6x4xbf16, #tpu.memory_space<vmem>>, vector<1x8x4x4xbf16>
    %100 = vector.shape_cast %99 : vector<1x8x4x4xbf16> to vector<8x4x4xbf16>
    %101 = vector.shape_cast %100 : vector<8x4x4xbf16> to vector<32x4xbf16>
    %c0_68 = arith.constant 0 : index
    %c40 = arith.constant 40 : index
    %102 = vector.load %arg10[%c0_68, %c40] : memref<32x108xbf16, #tpu.memory_space<vmem>>, vector<32x4xbf16>
    tpu.vector_store %arg10[%c0_68, %c40], %101 {strides = array<i32>} : memref<32x108xbf16, #tpu.memory_space<vmem>>, vector<32x4xbf16>,
    %103 = arith.index_cast %92 : i32 to index
    %c0_69 = arith.constant 0 : index
    %c2_70 = arith.constant 2 : index
    %c0_71 = arith.constant 0 : index
    %104 = vector.load %arg9[%103, %c0_69, %c2_70, %c0_71] : memref<3x10x6x4xbf16, #tpu.memory_space<vmem>>, vector<1x8x4x4xbf16>
    %105 = vector.shape_cast %104 : vector<1x8x4x4xbf16> to vector<8x4x4xbf16>
    %106 = vector.shape_cast %105 : vector<8x4x4xbf16> to vector<32x4xbf16>
    %c0_72 = arith.constant 0 : index
    %c44 = arith.constant 44 : index
    %107 = vector.load %arg10[%c0_72, %c44] : memref<32x108xbf16, #tpu.memory_space<vmem>>, vector<32x4xbf16>
    tpu.vector_store %arg10[%c0_72, %c44], %106 {strides = array<i32>} : memref<32x108xbf16, #tpu.memory_space<vmem>>, vector<32x4xbf16>,
    %108 = arith.index_cast %92 : i32 to index
    %c1_73 = arith.constant 1 : index
    %c0_74 = arith.constant 0 : index
    %c0_75 = arith.constant 0 : index
    %109 = vector.load %arg9[%108, %c1_73, %c0_74, %c0_75] : memref<3x10x6x4xbf16, #tpu.memory_space<vmem>>, vector<1x8x4x4xbf16>
    %110 = vector.shape_cast %109 : vector<1x8x4x4xbf16> to vector<8x4x4xbf16>
    %111 = vector.shape_cast %110 : vector<8x4x4xbf16> to vector<32x4xbf16>
    %c0_76 = arith.constant 0 : index
    %c48 = arith.constant 48 : index
    %112 = vector.load %arg10[%c0_76, %c48] : memref<32x108xbf16, #tpu.memory_space<vmem>>, vector<32x4xbf16>
    tpu.vector_store %arg10[%c0_76, %c48], %111 {strides = array<i32>} : memref<32x108xbf16, #tpu.memory_space<vmem>>, vector<32x4xbf16>,
    %113 = arith.index_cast %92 : i32 to index
    %c1_77 = arith.constant 1 : index
    %c1_78 = arith.constant 1 : index
    %c0_79 = arith.constant 0 : index
    %114 = vector.load %arg9[%113, %c1_77, %c1_78, %c0_79] : memref<3x10x6x4xbf16, #tpu.memory_space<vmem>>, vector<1x8x4x4xbf16>
    %115 = vector.shape_cast %114 : vector<1x8x4x4xbf16> to vector<8x4x4xbf16>
    %116 = vector.shape_cast %115 : vector<8x4x4xbf16> to vector<32x4xbf16>
    %c0_80 = arith.constant 0 : index
    %c52 = arith.constant 52 : index
    %117 = vector.load %arg10[%c0_80, %c52] : memref<32x108xbf16, #tpu.memory_space<vmem>>, vector<32x4xbf16>
    tpu.vector_store %arg10[%c0_80, %c52], %116 {strides = array<i32>} : memref<32x108xbf16, #tpu.memory_space<vmem>>, vector<32x4xbf16>,
    %118 = arith.index_cast %92 : i32 to index
    %c1_81 = arith.constant 1 : index
    %c2_82 = arith.constant 2 : index
    %c0_83 = arith.constant 0 : index
    %119 = vector.load %arg9[%118, %c1_81, %c2_82, %c0_83] : memref<3x10x6x4xbf16, #tpu.memory_space<vmem>>, vector<1x8x4x4xbf16>
    %120 = vector.shape_cast %119 : vector<1x8x4x4xbf16> to vector<8x4x4xbf16>
    %121 = vector.shape_cast %120 : vector<8x4x4xbf16> to vector<32x4xbf16>
    %c0_84 = arith.constant 0 : index
    %c56 = arith.constant 56 : index
    %122 = vector.load %arg10[%c0_84, %c56] : memref<32x108xbf16, #tpu.memory_space<vmem>>, vector<32x4xbf16>
    tpu.vector_store %arg10[%c0_84, %c56], %121 {strides = array<i32>} : memref<32x108xbf16, #tpu.memory_space<vmem>>, vector<32x4xbf16>,
    %123 = arith.index_cast %92 : i32 to index
    %c2_85 = arith.constant 2 : index
    %c0_86 = arith.constant 0 : index
    %c0_87 = arith.constant 0 : index
    %124 = vector.load %arg9[%123, %c2_85, %c0_86, %c0_87] : memref<3x10x6x4xbf16, #tpu.memory_space<vmem>>, vector<1x8x4x4xbf16>
    %125 = vector.shape_cast %124 : vector<1x8x4x4xbf16> to vector<8x4x4xbf16>
    %126 = vector.shape_cast %125 : vector<8x4x4xbf16> to vector<32x4xbf16>
    %c0_88 = arith.constant 0 : index
    %c60 = arith.constant 60 : index
    %127 = vector.load %arg10[%c0_88, %c60] : memref<32x108xbf16, #tpu.memory_space<vmem>>, vector<32x4xbf16>
    tpu.vector_store %arg10[%c0_88, %c60], %126 {strides = array<i32>} : memref<32x108xbf16, #tpu.memory_space<vmem>>, vector<32x4xbf16>,
    %128 = arith.index_cast %92 : i32 to index
    %c2_89 = arith.constant 2 : index
    %c1_90 = arith.constant 1 : index
    %c0_91 = arith.constant 0 : index
    %129 = vector.load %arg9[%128, %c2_89, %c1_90, %c0_91] : memref<3x10x6x4xbf16, #tpu.memory_space<vmem>>, vector<1x8x4x4xbf16>
    %130 = vector.shape_cast %129 : vector<1x8x4x4xbf16> to vector<8x4x4xbf16>
    %131 = vector.shape_cast %130 : vector<8x4x4xbf16> to vector<32x4xbf16>
    %c0_92 = arith.constant 0 : index
    %c64 = arith.constant 64 : index
    %132 = vector.load %arg10[%c0_92, %c64] : memref<32x108xbf16, #tpu.memory_space<vmem>>, vector<32x4xbf16>
    tpu.vector_store %arg10[%c0_92, %c64], %131 {strides = array<i32>} : memref<32x108xbf16, #tpu.memory_space<vmem>>, vector<32x4xbf16>,
    %133 = arith.index_cast %92 : i32 to index
    %c2_93 = arith.constant 2 : index
    %c2_94 = arith.constant 2 : index
    %c0_95 = arith.constant 0 : index
    %134 = vector.load %arg9[%133, %c2_93, %c2_94, %c0_95] : memref<3x10x6x4xbf16, #tpu.memory_space<vmem>>, vector<1x8x4x4xbf16>
    %135 = vector.shape_cast %134 : vector<1x8x4x4xbf16> to vector<8x4x4xbf16>
    %136 = vector.shape_cast %135 : vector<8x4x4xbf16> to vector<32x4xbf16>
    %c0_96 = arith.constant 0 : index
    %c68 = arith.constant 68 : index
    %137 = vector.load %arg10[%c0_96, %c68] : memref<32x108xbf16, #tpu.memory_space<vmem>>, vector<32x4xbf16>
    tpu.vector_store %arg10[%c0_96, %c68], %136 {strides = array<i32>} : memref<32x108xbf16, #tpu.memory_space<vmem>>, vector<32x4xbf16>,
    %c2_i32_97 = arith.constant 2 : i32
    %138 = arith.addi %1, %c2_i32_97 : i32
    %c2_i32_98 = arith.constant 2 : i32
    %139 = arith.addi %138, %c2_i32_98 : i32
    %c3_i32_99 = arith.constant 3 : i32
    %c0_i32_100 = arith.constant 0 : i32
    %140 = arith.cmpi eq, %c3_i32_99, %c0_i32_100 : i32
    %c1_i32_101 = arith.constant 1 : i32
    %141 = arith.select %140, %c1_i32_101, %c3_i32_99 : i32
    %142 = arith.remsi %139, %141 : i32
    %c0_i32_102 = arith.constant 0 : i32
    %143 = arith.cmpi ne, %142, %c0_i32_102 : i32
    %c0_i32_103 = arith.constant 0 : i32
    %144 = arith.cmpi slt, %142, %c0_i32_103 : i32
    %c0_i32_104 = arith.constant 0 : i32
    %145 = arith.cmpi slt, %141, %c0_i32_104 : i32
    %146 = arith.xori %144, %145 : i1
    %147 = arith.andi %146, %143 : i1
    %148 = arith.addi %142, %141 : i32
    %149 = arith.select %147, %148, %142 : i32
    %150 = arith.index_cast %149 : i32 to index
    %c0_105 = arith.constant 0 : index
    %c0_106 = arith.constant 0 : index
    %c0_107 = arith.constant 0 : index
    %151 = vector.load %arg9[%150, %c0_105, %c0_106, %c0_107] : memref<3x10x6x4xbf16, #tpu.memory_space<vmem>>, vector<1x8x4x4xbf16>
    %152 = vector.shape_cast %151 : vector<1x8x4x4xbf16> to vector<8x4x4xbf16>
    %153 = vector.shape_cast %152 : vector<8x4x4xbf16> to vector<32x4xbf16>
    %c0_108 = arith.constant 0 : index
    %c72 = arith.constant 72 : index
    %154 = vector.load %arg10[%c0_108, %c72] : memref<32x108xbf16, #tpu.memory_space<vmem>>, vector<32x4xbf16>
    tpu.vector_store %arg10[%c0_108, %c72], %153 {strides = array<i32>} : memref<32x108xbf16, #tpu.memory_space<vmem>>, vector<32x4xbf16>,
    %155 = arith.index_cast %149 : i32 to index
    %c0_109 = arith.constant 0 : index
    %c1_110 = arith.constant 1 : index
    %c0_111 = arith.constant 0 : index
    %156 = vector.load %arg9[%155, %c0_109, %c1_110, %c0_111] : memref<3x10x6x4xbf16, #tpu.memory_space<vmem>>, vector<1x8x4x4xbf16>
    %157 = vector.shape_cast %156 : vector<1x8x4x4xbf16> to vector<8x4x4xbf16>
    %158 = vector.shape_cast %157 : vector<8x4x4xbf16> to vector<32x4xbf16>
    %c0_112 = arith.constant 0 : index
    %c76 = arith.constant 76 : index
    %159 = vector.load %arg10[%c0_112, %c76] : memref<32x108xbf16, #tpu.memory_space<vmem>>, vector<32x4xbf16>
    tpu.vector_store %arg10[%c0_112, %c76], %158 {strides = array<i32>} : memref<32x108xbf16, #tpu.memory_space<vmem>>, vector<32x4xbf16>,
    %160 = arith.index_cast %149 : i32 to index
    %c0_113 = arith.constant 0 : index
    %c2_114 = arith.constant 2 : index
    %c0_115 = arith.constant 0 : index
    %161 = vector.load %arg9[%160, %c0_113, %c2_114, %c0_115] : memref<3x10x6x4xbf16, #tpu.memory_space<vmem>>, vector<1x8x4x4xbf16>
    %162 = vector.shape_cast %161 : vector<1x8x4x4xbf16> to vector<8x4x4xbf16>
    %163 = vector.shape_cast %162 : vector<8x4x4xbf16> to vector<32x4xbf16>
    %c0_116 = arith.constant 0 : index
    %c80 = arith.constant 80 : index
    %164 = vector.load %arg10[%c0_116, %c80] : memref<32x108xbf16, #tpu.memory_space<vmem>>, vector<32x4xbf16>
    tpu.vector_store %arg10[%c0_116, %c80], %163 {strides = array<i32>} : memref<32x108xbf16, #tpu.memory_space<vmem>>, vector<32x4xbf16>,
    %165 = arith.index_cast %149 : i32 to index
    %c1_117 = arith.constant 1 : index
    %c0_118 = arith.constant 0 : index
    %c0_119 = arith.constant 0 : index
    %166 = vector.load %arg9[%165, %c1_117, %c0_118, %c0_119] : memref<3x10x6x4xbf16, #tpu.memory_space<vmem>>, vector<1x8x4x4xbf16>
    %167 = vector.shape_cast %166 : vector<1x8x4x4xbf16> to vector<8x4x4xbf16>
    %168 = vector.shape_cast %167 : vector<8x4x4xbf16> to vector<32x4xbf16>
    %c0_120 = arith.constant 0 : index
    %c84 = arith.constant 84 : index
    %169 = vector.load %arg10[%c0_120, %c84] : memref<32x108xbf16, #tpu.memory_space<vmem>>, vector<32x4xbf16>
    tpu.vector_store %arg10[%c0_120, %c84], %168 {strides = array<i32>} : memref<32x108xbf16, #tpu.memory_space<vmem>>, vector<32x4xbf16>,
    %170 = arith.index_cast %149 : i32 to index
    %c1_121 = arith.constant 1 : index
    %c1_122 = arith.constant 1 : index
    %c0_123 = arith.constant 0 : index
    %171 = vector.load %arg9[%170, %c1_121, %c1_122, %c0_123] : memref<3x10x6x4xbf16, #tpu.memory_space<vmem>>, vector<1x8x4x4xbf16>
    %172 = vector.shape_cast %171 : vector<1x8x4x4xbf16> to vector<8x4x4xbf16>
    %173 = vector.shape_cast %172 : vector<8x4x4xbf16> to vector<32x4xbf16>
    %c0_124 = arith.constant 0 : index
    %c88 = arith.constant 88 : index
    %174 = vector.load %arg10[%c0_124, %c88] : memref<32x108xbf16, #tpu.memory_space<vmem>>, vector<32x4xbf16>
    tpu.vector_store %arg10[%c0_124, %c88], %173 {strides = array<i32>} : memref<32x108xbf16, #tpu.memory_space<vmem>>, vector<32x4xbf16>,
    %175 = arith.index_cast %149 : i32 to index
    %c1_125 = arith.constant 1 : index
    %c2_126 = arith.constant 2 : index
    %c0_127 = arith.constant 0 : index
    %176 = vector.load %arg9[%175, %c1_125, %c2_126, %c0_127] : memref<3x10x6x4xbf16, #tpu.memory_space<vmem>>, vector<1x8x4x4xbf16>
    %177 = vector.shape_cast %176 : vector<1x8x4x4xbf16> to vector<8x4x4xbf16>
    %178 = vector.shape_cast %177 : vector<8x4x4xbf16> to vector<32x4xbf16>
    %c0_128 = arith.constant 0 : index
    %c92 = arith.constant 92 : index
    %179 = vector.load %arg10[%c0_128, %c92] : memref<32x108xbf16, #tpu.memory_space<vmem>>, vector<32x4xbf16>
    tpu.vector_store %arg10[%c0_128, %c92], %178 {strides = array<i32>} : memref<32x108xbf16, #tpu.memory_space<vmem>>, vector<32x4xbf16>,
    %180 = arith.index_cast %149 : i32 to index
    %c2_129 = arith.constant 2 : index
    %c0_130 = arith.constant 0 : index
    %c0_131 = arith.constant 0 : index
    %181 = vector.load %arg9[%180, %c2_129, %c0_130, %c0_131] : memref<3x10x6x4xbf16, #tpu.memory_space<vmem>>, vector<1x8x4x4xbf16>
    %182 = vector.shape_cast %181 : vector<1x8x4x4xbf16> to vector<8x4x4xbf16>
    %183 = vector.shape_cast %182 : vector<8x4x4xbf16> to vector<32x4xbf16>
    %c0_132 = arith.constant 0 : index
    %c96 = arith.constant 96 : index
    %184 = vector.load %arg10[%c0_132, %c96] : memref<32x108xbf16, #tpu.memory_space<vmem>>, vector<32x4xbf16>
    tpu.vector_store %arg10[%c0_132, %c96], %183 {strides = array<i32>} : memref<32x108xbf16, #tpu.memory_space<vmem>>, vector<32x4xbf16>,
    %185 = arith.index_cast %149 : i32 to index
    %c2_133 = arith.constant 2 : index
    %c1_134 = arith.constant 1 : index
    %c0_135 = arith.constant 0 : index
    %186 = vector.load %arg9[%185, %c2_133, %c1_134, %c0_135] : memref<3x10x6x4xbf16, #tpu.memory_space<vmem>>, vector<1x8x4x4xbf16>
    %187 = vector.shape_cast %186 : vector<1x8x4x4xbf16> to vector<8x4x4xbf16>
    %188 = vector.shape_cast %187 : vector<8x4x4xbf16> to vector<32x4xbf16>
    %c0_136 = arith.constant 0 : index
    %c100 = arith.constant 100 : index
    %189 = vector.load %arg10[%c0_136, %c100] : memref<32x108xbf16, #tpu.memory_space<vmem>>, vector<32x4xbf16>
    tpu.vector_store %arg10[%c0_136, %c100], %188 {strides = array<i32>} : memref<32x108xbf16, #tpu.memory_space<vmem>>, vector<32x4xbf16>,
    %190 = arith.index_cast %149 : i32 to index
    %c2_137 = arith.constant 2 : index
    %c2_138 = arith.constant 2 : index
    %c0_139 = arith.constant 0 : index
    %191 = vector.load %arg9[%190, %c2_137, %c2_138, %c0_139] : memref<3x10x6x4xbf16, #tpu.memory_space<vmem>>, vector<1x8x4x4xbf16>
    %192 = vector.shape_cast %191 : vector<1x8x4x4xbf16> to vector<8x4x4xbf16>
    %193 = vector.shape_cast %192 : vector<8x4x4xbf16> to vector<32x4xbf16>
    %c0_140 = arith.constant 0 : index
    %c104 = arith.constant 104 : index
    %194 = vector.load %arg10[%c0_140, %c104] : memref<32x108xbf16, #tpu.memory_space<vmem>>, vector<32x4xbf16>
    tpu.vector_store %arg10[%c0_140, %c104], %193 {strides = array<i32>} : memref<32x108xbf16, #tpu.memory_space<vmem>>, vector<32x4xbf16>,
    %c0_141 = arith.constant 0 : index
    %c0_142 = arith.constant 0 : index
    %195 = vector.load %arg10[%c0_141, %c0_142] : memref<32x108xbf16, #tpu.memory_space<vmem>>, vector<32x108xbf16>
    %c0_143 = arith.constant 0 : index
    %c0_144 = arith.constant 0 : index
    %196 = vector.load %arg6[%c0_143, %c0_144] : memref<108x8xbf16, #tpu.memory_space<vmem>>, vector<108x8xbf16>
    %cst = arith.constant dense<0.000000e+00> : vector<32x8xf32>
    %197 = tpu.matmul %195, %196, %cst {dimension_numbers = #tpu.dot_dimension_numbers<[1], [0], [0], [1], [0, 0, 1, 1], [], []>} : vector<32x108xbf16>, vector<108x8xbf16>, vector<32x8xf32> -> vector<32x8xf32>
    %c0_145 = arith.constant 0 : index
    %c0_146 = arith.constant 0 : index
    %198 = vector.load %arg7[%c0_145, %c0_146] : memref<1x8xf32, #tpu.memory_space<vmem>>, vector<1x8xf32>
    %199 = vector.broadcast %198 : vector<1x8xf32> to vector<32x8xf32>
    %200 = arith.addf %197, %199 : vector<32x8xf32>
    %201 = vector.shape_cast %200 : vector<32x8xf32> to vector<8x4x8xf32>
    %c0_147 = arith.constant 0 : index
    %c0_148 = arith.constant 0 : index
    %c0_149 = arith.constant 0 : index
    %c0_150 = arith.constant 0 : index
    %c0_151 = arith.constant 0 : index
    %202 = vector.load %arg8[%c0_147, %c0_148, %c0_149, %c0_150, %c0_151] : memref<1x1x8x4x8xf32, #tpu.memory_space<vmem>>, vector<1x1x8x4x8xf32>
    %203 = vector.shape_cast %202 : vector<1x1x8x4x8xf32> to vector<8x4x8xf32>
    %204 = vector.shape_cast %201 : vector<8x4x8xf32> to vector<1x1x8x4x8xf32>
    tpu.vector_store %arg8[%c0_147, %c0_148, %c0_149, %c0_150, %c0_151], %204 {strides = array<i32>} : memref<1x1x8x4x8xf32, #tpu.memory_space<vmem>>, vector<1x1x8x4x8xf32>,
    return
  }
  func.func @transform_0(%arg0: i32, %arg1: i32, %arg2: i32) -> (i32, i32, i32, i32, i32) {
    %c5_i32 = arith.constant 5 : i32
    %0 = arith.muli %arg1, %c5_i32 : i32
    %1 = arith.addi %0, %arg2 : i32
    %c1_i32 = arith.constant 1 : i32
    %2 = arith.addi %1, %c1_i32 : i32
    %c4_i32 = arith.constant 4 : i32
    %3 = arith.minsi %2, %c4_i32 : i32
    %c0_i32 = arith.constant 0 : i32
    %c0_i32_0 = arith.constant 0 : i32
    %c0_i32_1 = arith.constant 0 : i32
    %c0_i32_2 = arith.constant 0 : i32
    return %arg0, %3, %c0_i32, %c0_i32_0, %c0_i32_1 : i32, i32, i32, i32, i32
  }
  func.func @transform_1(%arg0: i32, %arg1: i32, %arg2: i32) -> (i32, i32, i32, i32, i32) {
    %c5_i32 = arith.constant 5 : i32
    %0 = arith.muli %arg1, %c5_i32 : i32
    %c0_i32 = arith.constant 0 : i32
    %c0_i32_0 = arith.constant 0 : i32
    %c0_i32_1 = arith.constant 0 : i32
    %c0_i32_2 = arith.constant 0 : i32
    return %arg0, %0, %c0_i32, %c0_i32_0, %c0_i32_1 : i32, i32, i32, i32, i32
  }
  func.func @transform_2(%arg0: i32, %arg1: i32, %arg2: i32) -> (i32, i32, i32, i32, i32) {
    %c5_i32 = arith.constant 5 : i32
    %0 = arith.muli %arg1, %c5_i32 : i32
    %c1_i32 = arith.constant 1 : i32
    %1 = arith.subi %0, %c1_i32 : i32
    %c0_i32 = arith.constant 0 : i32
    %2 = arith.maxsi %1, %c0_i32 : i32
    %c0_i32_0 = arith.constant 0 : i32
    %c0_i32_1 = arith.constant 0 : i32
    %c0_i32_2 = arith.constant 0 : i32
    %c0_i32_3 = arith.constant 0 : i32
    return %arg0, %2, %c0_i32_0, %c0_i32_1, %c0_i32_2 : i32, i32, i32, i32, i32
  }
  func.func @transform_3(%arg0: i32, %arg1: i32, %arg2: i32) -> (i32, i32) {
    %c0_i32 = arith.constant 0 : i32
    %c0_i32_0 = arith.constant 0 : i32
    %c0_i32_1 = arith.constant 0 : i32
    return %c0_i32, %c0_i32_0 : i32, i32
  }
  func.func @transform_4(%arg0: i32, %arg1: i32, %arg2: i32) -> (i32, i32) {
    %c0_i32 = arith.constant 0 : i32
    %c0_i32_0 = arith.constant 0 : i32
    %c0_i32_1 = arith.constant 0 : i32
    return %c0_i32, %c0_i32_0 : i32, i32
  }
  func.func @transform_5(%arg0: i32, %arg1: i32, %arg2: i32) -> (i32, i32, i32, i32, i32) {
    %c5_i32 = arith.constant 5 : i32
    %0 = arith.muli %arg1, %c5_i32 : i32
    %1 = arith.addi %0, %arg2 : i32
    %c0_i32 = arith.constant 0 : i32
    %c0_i32_0 = arith.constant 0 : i32
    %c0_i32_1 = arith.constant 0 : i32
    %c0_i32_2 = arith.constant 0 : i32
    return %arg0, %1, %c0_i32, %c0_i32_0, %c0_i32_1 : i32, i32, i32, i32, i32
  }
}

</mosaic_0001>

<llo_original>
// kernel: tpu_custom_call.1
$region0: #{tpu_custom_call.1}
  #allocation0 [shape = 'u32[]', space=smem, size = 0x4, offset = 0x4, fixed_abs, tag = 'smem constant byte address 0x4 - core index']
  #allocation1 [shape = 'u32[144,128]{1,0:T(1,128)}', space=vmem, size = 0x12000, scoped, tag = 'internal scratch']
  #allocation2 [shape = 'bf16[3,10,6,4]{3,2,1,0:T(8,128)(2,1)}', space=vmem, size = 0xf000, scoped, tag = 'scratch operand']
  #allocation3 [shape = 'bf16[32,108]{1,0:T(8,128)(2,1)}', space=vmem, size = 0x2000, scoped, tag = 'scratch operand']
  %s0 = inlined_call_operand.vmem [shape: bf16[2,5,8,4,4], index: 0, kind: input, shape index: {}]
  %s1 = inlined_call_operand.vmem [shape: bf16[2,5,8,4,4], index: 1, kind: input, shape index: {}]
  %s2 = inlined_call_operand.vmem [shape: bf16[2,5,8,4,4], index: 2, kind: input, shape index: {}]
  %s3 = inlined_call_operand.vmem [shape: bf16[108,8], index: 3, kind: input, shape index: {}]
  %s4 = inlined_call_operand.vmem [shape: f32[1,8], index: 4, kind: input, shape index: {}]
  %s5 = inlined_call_operand.hbm [shape: f32[2,5,8,4,8], index: 5, kind: output, shape index: {}]
  %s6 = sld [smem:[#allocation0]]
  $region69: #{tpu_custom_call.1} parent=0
    _
  %s8 = ssub.s32 1, %s6
  %s9 = scalar_select 0, %s8, %s6
  $region1: #{tpu_custom_call.1} parent=0
    #allocation4 [shape = 'u8[32768]{0}', space=vmem, size = 0x8000, scoped, tag = 'output window, operand 0']
    #allocation5 [shape = 's32[2]{0}', space=sflag, size = 0x8, scoped, tag = 'scoped memory for tpu_custom_call.1']
    %10 = vsyncpa [#allocation5], 0
    %s11 = scalar_lea.sflag [#allocation5], 1
    %12 = vsyncpa %s11, 0
    loop: start=0, step=1, limit=12
    $region2: #{tpu_custom_call.1} parent=1 // loop_pre_header
      _
    $region3: #{tpu_custom_call.1} parent=1 // loop_header
      %s14 = sphi 0, %s18
      %p15 = scmp.ge.s32.totalorder %s14, 12
      %s21 = sphi 0, %s40
      %s22 = sphi 0, %s36
      %s23 = sphi 0, %s32
      %s24 = sphi 0, %s21
      %s25 = sphi 0, %s22
      %s26 = sphi 0, %s23
      %s27 = sphi 0, %s24
      %s28 = sphi 0, %s25
      %s29 = sphi 0, %s26
      %s55 = sphi 0, %s57
      %s58 = sphi 0, %s55
      %s59 = sphi 0, %s58
      %s75 = sphi 0, %s59
      %s85 = sphi 0, %s87
      %s88 = sphi 0, %s85
      %s89 = sphi 0, %s88
      %s105 = sphi 0, %s89
      %s121 = sphi 0, %s123
      %s124 = sphi 0, %s121
      %s125 = sphi 0, %s124
      %s141 = sphi 0, %s125
      %s145 = sphi 0, %s145
      %s147 = sphi 0, %s145
      %s148 = sphi 0, %s147
      %s162 = sphi 0, %s148
      %s166 = sphi 0, %s166
      %s168 = sphi 0, %s166
      %s169 = sphi 0, %s168
      %s183 = sphi 0, %s169
      %s195 = sphi 0, %s197
      %s198 = sphi 0, %s195
      %s199 = sphi 0, %s198
      %s215 = sphi 0, %s199
    $region4: #{tpu_custom_call.1} parent=1 // loop_header_branch
      %17 = sbr.rel (%p15) target = $region8
    $region5: #{tpu_custom_call.1} parent=1 // loop_body
      %s19 = ssub.s32 %s14, 1
      %s20 = ssub.s32 %s14, 2
      %s30 = sadd.s32 1, %s23
      %p31 = scmp.ge.s32.totalorder %s30, 5
      %s32 = scalar_select %p31, 0, %s30
      %s33 = sadd.s32 1, %s22
      %s34 = scalar_select %p31, %s33, %s22
      %p35 = scmp.ge.s32.totalorder %s34, 1
      %s36 = scalar_select %p35, 0, %s34
      %s37 = sadd.s32 1, %s21
      %s38 = scalar_select %p35, %s37, %s21
      %p39 = scmp.ge.s32.totalorder %s38, 2
      %s40 = scalar_select %p39, 0, %s38
      %s41 = smul.u32 %s22, 5
      %s42 = sadd.s32 %s41, %s23
      %s43 = sadd.s32 %s42, 1
      %p44 = scmp.lt.s32.totalorder %s43, 4
      %s45 = scalar_select %p44, %s43, 4
      %s46 = smul.u32 %s36, 5
      %s47 = sadd.s32 %s46, %s32
      %s48 = sadd.s32 %s47, 1
      %p49 = scmp.lt.s32.totalorder %s48, 4
      %s50 = scalar_select %p49, %s48, 4
      %s51 = ssub.s32 %s21, %s40
      %s52 = ssub.s32 %s45, %s50
      %s53 = sor.u32 %s51, %s52
      %p54 = scmp.eq.s32.totalorder %s53, 0
      %s56 = sadd.s32 %s55, 1
      %s57 = scalar_select %p54, %s55, %s56
      %p60 = pneg %p54
      %p61 = scmp.eq.s32.totalorder %s14, 9
      %p62 = por %p60, %p61
      %p63 = scmp.ne.s32.totalorder %s55, %s58
      %p64 = scmp.eq.s32.totalorder %s14, 0
      %p65 = por %p63, %p64
      %p66 = scmp.ne.s32.totalorder %s55, %s58
      %p67 = scmp.eq.s32.totalorder %s19, 9
      %p68 = por %p66, %p67
      %p69 = scmp.ne.s32.totalorder %s58, %s59
      %p70 = scmp.eq.s32.totalorder %s19, 0
      %p71 = por %p69, %p70
      %p72 = scmp.ne.s32.totalorder %s58, %s59
      %p73 = scmp.eq.s32.totalorder %s20, 9
      %p74 = por %p72, %p73
      %p76 = scmp.ne.s32.totalorder %s59, %s75
      %p77 = scmp.eq.s32.totalorder %s20, 0
      %p78 = por %p76, %p77
      %s79 = smul.u32 %s22, 5
      %s80 = smul.u32 %s36, 5
      %s81 = ssub.s32 %s21, %s40
      %s82 = ssub.s32 %s79, %s80
      %s83 = sor.u32 %s81, %s82
      %p84 = scmp.eq.s32.totalorder %s83, 0
      %s86 = sadd.s32 %s85, 1
      %s87 = scalar_select %p84, %s85, %s86
      %p90 = pneg %p84
      %p91 = scmp.eq.s32.totalorder %s14, 9
      %p92 = por %p90, %p91
      %p93 = scmp.ne.s32.totalorder %s85, %s88
      %p94 = scmp.eq.s32.totalorder %s14, 0
      %p95 = por %p93, %p94
      %p96 = scmp.ne.s32.totalorder %s85, %s88
      %p97 = scmp.eq.s32.totalorder %s19, 9
      %p98 = por %p96, %p97
      %p99 = scmp.ne.s32.totalorder %s88, %s89
      %p100 = scmp.eq.s32.totalorder %s19, 0
      %p101 = por %p99, %p100
      %p102 = scmp.ne.s32.totalorder %s88, %s89
      %p103 = scmp.eq.s32.totalorder %s20, 9
      %p104 = por %p102, %p103
      %p106 = scmp.ne.s32.totalorder %s89, %s105
      %p107 = scmp.eq.s32.totalorder %s20, 0
      %p108 = por %p106, %p107
      %s109 = smul.u32 %s22, 5
      %s110 = ssub.s32 %s109, 1
      %p111 = scmp.gt.s32.totalorder %s110, 0
      %s112 = scalar_select %p111, %s110, 0
      %s113 = smul.u32 %s36, 5
      %s114 = ssub.s32 %s113, 1
      %p115 = scmp.gt.s32.totalorder %s114, 0
      %s116 = scalar_select %p115, %s114, 0
      %s117 = ssub.s32 %s21, %s40
      %s118 = ssub.s32 %s112, %s116
      %s119 = sor.u32 %s117, %s118
      %p120 = scmp.eq.s32.totalorder %s119, 0
      %s122 = sadd.s32 %s121, 1
      %s123 = scalar_select %p120, %s121, %s122
      %p126 = pneg %p120
      %p127 = scmp.eq.s32.totalorder %s14, 9
      %p128 = por %p126, %p127
      %p129 = scmp.ne.s32.totalorder %s121, %s124
      %p130 = scmp.eq.s32.totalorder %s14, 0
      %p131 = por %p129, %p130
      %p132 = scmp.ne.s32.totalorder %s121, %s124
      %p133 = scmp.eq.s32.totalorder %s19, 9
      %p134 = por %p132, %p133
      %p135 = scmp.ne.s32.totalorder %s124, %s125
      %p136 = scmp.eq.s32.totalorder %s19, 0
      %p137 = por %p135, %p136
      %p138 = scmp.ne.s32.totalorder %s124, %s125
      %p139 = scmp.eq.s32.totalorder %s20, 9
      %p140 = por %p138, %p139
      %p142 = scmp.ne.s32.totalorder %s125, %s141
      %p143 = scmp.eq.s32.totalorder %s20, 0
      %p144 = por %p142, %p143
      %s146 = sadd.s32 %s145, 1
      %p149 = scmp.eq.s32.totalorder %s14, 9
      %p150 = scmp.ne.s32.totalorder %s145, %s147
      %p151 = scmp.eq.s32.totalorder %s14, 0
      %p152 = por %p150, %p151
      %p153 = scmp.ne.s32.totalorder %s145, %s147
      %p154 = scmp.eq.s32.totalorder %s19, 9
      %p155 = por %p153, %p154
      %p156 = scmp.ne.s32.totalorder %s147, %s148
      %p157 = scmp.eq.s32.totalorder %s19, 0
      %p158 = por %p156, %p157
      %p159 = scmp.ne.s32.totalorder %s147, %s148
      %p160 = scmp.eq.s32.totalorder %s20, 9
      %p161 = por %p159, %p160
      %p163 = scmp.ne.s32.totalorder %s148, %s162
      %p164 = scmp.eq.s32.totalorder %s20, 0
      %p165 = por %p163, %p164
      %s167 = sadd.s32 %s166, 1
      %p170 = scmp.eq.s32.totalorder %s14, 9
      %p171 = scmp.ne.s32.totalorder %s166, %s168
      %p172 = scmp.eq.s32.totalorder %s14, 0
      %p173 = por %p171, %p172
      %p174 = scmp.ne.s32.totalorder %s166, %s168
      %p175 = scmp.eq.s32.totalorder %s19, 9
      %p176 = por %p174, %p175
      %p177 = scmp.ne.s32.totalorder %s168, %s169
      %p178 = scmp.eq.s32.totalorder %s19, 0
      %p179 = por %p177, %p178
      %p180 = scmp.ne.s32.totalorder %s168, %s169
      %p181 = scmp.eq.s32.totalorder %s20, 9
      %p182 = por %p180, %p181
      %p184 = scmp.ne.s32.totalorder %s169, %s183
      %p185 = scmp.eq.s32.totalorder %s20, 0
      %p186 = por %p184, %p185
      %s187 = smul.u32 %s22, 5
      %s188 = sadd.s32 %s187, %s23
      %s189 = smul.u32 %s36, 5
      %s190 = sadd.s32 %s189, %s32
      %s191 = ssub.s32 %s21, %s40
      %s192 = ssub.s32 %s188, %s190
      %s193 = sor.u32 %s191, %s192
      %p194 = scmp.eq.s32.totalorder %s193, 0
      %s196 = sadd.s32 %s195, 1
      %s197 = scalar_select %p194, %s195, %s196
      %p200 = pneg %p194
      %p201 = scmp.eq.s32.totalorder %s14, 9
      %p202 = por %p200, %p201
      %p203 = scmp.ne.s32.totalorder %s195, %s198
      %p204 = scmp.eq.s32.totalorder %s14, 0
      %p205 = por %p203, %p204
      %p206 = scmp.ne.s32.totalorder %s195, %s198
      %p207 = scmp.eq.s32.totalorder %s19, 9
      %p208 = por %p206, %p207
      %p209 = scmp.ne.s32.totalorder %s198, %s199
      %p210 = scmp.eq.s32.totalorder %s19, 0
      %p211 = por %p209, %p210
      %p212 = scmp.ne.s32.totalorder %s198, %s199
      %p213 = scmp.eq.s32.totalorder %s20, 9
      %p214 = por %p212, %p213
      %p216 = scmp.ne.s32.totalorder %s199, %s215
      %p217 = scmp.eq.s32.totalorder %s20, 0
      %p218 = por %p216, %p217
      %p219 = scmp.le.s32.totalorder 1, %s14
      %p220 = scmp.lt.s32.totalorder %s14, 11
      %p221 = pnand %p219, %p220
      %p222 = pneg %p221
      // Predicated region
      $region9: #{tpu_custom_call.1} parent=5 // pred_check
        _
      $region10: #{tpu_custom_call.1} parent=5 // pred_check_branch
        %224 = sbr.rel (%p221) target = $region12
      $region11: #{tpu_custom_call.1} parent=5 // pred_region
        %s225 = ssub.s32 %s14, 1
        // Predicated region
        $region13: #{tpu_custom_call.1} parent=11 // pred_check
          %p226 = pneg %p158
        $region14: #{tpu_custom_call.1} parent=11 // pred_check_branch
          %228 = sbr.rel (%p226) target = $region16
        $region15: #{tpu_custom_call.1} parent=11 // pred_region
          _
        $region16: #{tpu_custom_call.1} parent=11 // pred_fallthru
          _
        // Predicated region
        $region17: #{tpu_custom_call.1} parent=11 // pred_check
          %p229 = pneg %p179
        $region18: #{tpu_custom_call.1} parent=11 // pred_check_branch
          %231 = sbr.rel (%p229) target = $region20
        $region19: #{tpu_custom_call.1} parent=11 // pred_region
          _
        $region20: #{tpu_custom_call.1} parent=11 // pred_fallthru
          _
      $region12: #{tpu_custom_call.1} parent=5 // pred_fallthru
        _
      %p232 = scmp.lt.s32.totalorder %s14, 10
      // Predicated region
      $region21: #{tpu_custom_call.1} parent=5 // pred_check
        %p233 = pneg %p232
      $region22: #{tpu_custom_call.1} parent=5 // pred_check_branch
        %235 = sbr.rel (%p233) target = $region24
      $region23: #{tpu_custom_call.1} parent=5 // pred_region
        // Predicated region
        $region25: #{tpu_custom_call.1} parent=23 // pred_check
          %p236 = pneg %p65
        $region26: #{tpu_custom_call.1} parent=23 // pred_check_branch
          %238 = sbr.rel (%p236) target = $region28
        $region27: #{tpu_custom_call.1} parent=23 // pred_region
          %s239 = smul.u32 %s22, 5
          %s240 = sadd.s32 %s239, %s23
          %s241 = sadd.s32 %s240, 1
          %p242 = scmp.lt.s32.totalorder %s241, 4
          %s243 = scalar_select %p242, %s241, 4
          %p244 = scmp.lt.s32.totalorder %s21, 1
          %s245 = scalar_select %p244, %s21, 1
          %p246 = scmp.lt.s32.totalorder %s243, 4
          %s247 = scalar_select %p246, %s243, 4
          %s248 = smul.addr %s247, 8
          %s249 = smul.addr %s245, 40
          %s250 = sadd.s32 %s248, %s249
          %s251 = smul.addr %s250, 2
          %s252 = scalar_lea.vmem %s0, %s251
          %s253 = smul.u32 %s22, 5
          %s254 = sadd.s32 %s253, %s23
          %s255 = sadd.s32 %s254, 1
          %p256 = scmp.lt.s32.totalorder %s255, 4
          %s257 = scalar_select %p256, %s255, 4
        $region28: #{tpu_custom_call.1} parent=23 // pred_fallthru
          _
        // Predicated region
        $region29: #{tpu_custom_call.1} parent=23 // pred_check
          %p258 = pneg %p95
        $region30: #{tpu_custom_call.1} parent=23 // pred_check_branch
          %260 = sbr.rel (%p258) target = $region32
        $region31: #{tpu_custom_call.1} parent=23 // pred_region
          %s261 = smul.u32 %s22, 5
          %p262 = scmp.lt.s32.totalorder %s21, 1
          %s263 = scalar_select %p262, %s21, 1
          %p264 = scmp.lt.s32.totalorder %s261, 4
          %s265 = scalar_select %p264, %s261, 4
          %s266 = smul.addr %s265, 8
          %s267 = smul.addr %s263, 40
          %s268 = sadd.s32 %s266, %s267
          %s269 = smul.addr %s268, 2
          %s270 = scalar_lea.vmem %s1, %s269
          %s271 = smul.u32 %s22, 5
        $region32: #{tpu_custom_call.1} parent=23 // pred_fallthru
          _
        // Predicated region
        $region33: #{tpu_custom_call.1} parent=23 // pred_check
          %p272 = pneg %p131
        $region34: #{tpu_custom_call.1} parent=23 // pred_check_branch
          %274 = sbr.rel (%p272) target = $region36
        $region35: #{tpu_custom_call.1} parent=23 // pred_region
          %s275 = smul.u32 %s22, 5
          %s276 = ssub.s32 %s275, 1
          %p277 = scmp.gt.s32.totalorder %s276, 0
          %s278 = scalar_select %p277, %s276, 0
          %p279 = scmp.lt.s32.totalorder %s21, 1
          %s280 = scalar_select %p279, %s21, 1
          %p281 = scmp.lt.s32.totalorder %s278, 4
          %s282 = scalar_select %p281, %s278, 4
          %s283 = smul.addr %s282, 8
          %s284 = smul.addr %s280, 40
          %s285 = sadd.s32 %s283, %s284
          %s286 = smul.addr %s285, 2
          %s287 = scalar_lea.vmem %s2, %s286
          %s288 = smul.u32 %s22, 5
          %s289 = ssub.s32 %s288, 1
          %p290 = scmp.gt.s32.totalorder %s289, 0
          %s291 = scalar_select %p290, %s289, 0
        $region36: #{tpu_custom_call.1} parent=23 // pred_fallthru
          _
      $region24: #{tpu_custom_call.1} parent=5 // pred_fallthru
        _
      %p292 = scmp.le.s32.totalorder 1, %s14
      %p293 = scmp.lt.s32.totalorder %s14, 11
      %p294 = pnand %p292, %p293
      %p295 = pneg %p294
      // Predicated region
      $region37: #{tpu_custom_call.1} parent=5 // pred_check
        _
      $region38: #{tpu_custom_call.1} parent=5 // pred_check_branch
        %297 = sbr.rel (%p294) target = $region40
      $region39: #{tpu_custom_call.1} parent=5 // pred_region
        %s298 = ssub.s32 %s14, 1
        %s299 = smul.u32 %s25, 5
        %s300 = sadd.s32 %s299, %s26
        %s301 = sadd.s32 %s300, 1
        %p302 = scmp.lt.s32.totalorder %s301, 4
        %s303 = scalar_select %p302, %s301, 4
        %p304 = scmp.lt.s32.totalorder %s24, 1
        %s305 = scalar_select %p304, %s24, 1
        %p306 = scmp.lt.s32.totalorder %s303, 4
        %s307 = scalar_select %p306, %s303, 4
        %s308 = smul.addr %s307, 8
        %s309 = smul.addr %s305, 40
        %s310 = sadd.s32 %s308, %s309
        %s311 = smul.addr %s310, 2
        %s312 = scalar_lea.vmem %s0, %s311
        %p313 = pneg %p71
        %p314 = pneg %p68
        %s315 = smul.u32 %s25, 5
        %p316 = scmp.lt.s32.totalorder %s24, 1
        %s317 = scalar_select %p316, %s24, 1
        %p318 = scmp.lt.s32.totalorder %s315, 4
        %s319 = scalar_select %p318, %s315, 4
        %s320 = smul.addr %s319, 8
        %s321 = smul.addr %s317, 40
        %s322 = sadd.s32 %s320, %s321
        %s323 = smul.addr %s322, 2
        %s324 = scalar_lea.vmem %s1, %s323
        %p325 = pneg %p101
        %p326 = pneg %p98
        %s327 = smul.u32 %s25, 5
        %s328 = ssub.s32 %s327, 1
        %p329 = scmp.gt.s32.totalorder %s328, 0
        %s330 = scalar_select %p329, %s328, 0
        %p331 = scmp.lt.s32.totalorder %s24, 1
        %s332 = scalar_select %p331, %s24, 1
        %p333 = scmp.lt.s32.totalorder %s330, 4
        %s334 = scalar_select %p333, %s330, 4
        %s335 = smul.addr %s334, 8
        %s336 = smul.addr %s332, 40
        %s337 = sadd.s32 %s335, %s336
        %s338 = smul.addr %s337, 2
        %s339 = scalar_lea.vmem %s2, %s338
        %p340 = pneg %p137
        %p341 = pneg %p134
        %p342 = pneg %p158
        %p343 = pneg %p155
        %p344 = pneg %p179
        %p345 = pneg %p176
        %p346 = pneg %p211
        %p347 = pneg %p208
        %s348 = sand.u32 %s198, 1
        %s349 = scalar_lea.sflag [#allocation5], %s348
        %s350 = sand.u32 %s198, 1
        %s351 = smul.addr %s350, 32
        %s352 = scalar_lea.vmem [#allocation4], %s351
        %s353 = smul.u32 %s25, 5
        %s354 = sadd.s32 %s353, %s26
        %s355 = sadd.s32 %s354, 1
        %p356 = scmp.lt.s32.totalorder %s355, 4
        %s357 = scalar_select %p356, %s355, 4
        %p358 = scmp.lt.s32.totalorder %s24, 1
        %s359 = scalar_select %p358, %s24, 1
        %p360 = scmp.lt.s32.totalorder %s357, 4
        %s361 = scalar_select %p360, %s357, 4
        %s362 = smul.addr %s361, 8
        %s363 = smul.addr %s359, 40
        %s364 = sadd.s32 %s362, %s363
        %s365 = smul.addr %s364, 2
        %s366 = scalar_lea.vmem %s0, %s365
        %s367 = smul.u32 %s25, 5
        %s368 = sadd.s32 %s367, %s26
        %s369 = sadd.s32 %s368, 1
        %p370 = scmp.lt.s32.totalorder %s369, 4
        %s371 = scalar_select %p370, %s369, 4
        %s372 = smul.u32 %s25, 5
        %p373 = scmp.lt.s32.totalorder %s24, 1
        %s374 = scalar_select %p373, %s24, 1
        %p375 = scmp.lt.s32.totalorder %s372, 4
        %s376 = scalar_select %p375, %s372, 4
        %s377 = smul.addr %s376, 8
        %s378 = smul.addr %s374, 40
        %s379 = sadd.s32 %s377, %s378
        %s380 = smul.addr %s379, 2
        %s381 = scalar_lea.vmem %s1, %s380
        %s382 = smul.u32 %s25, 5
        %s383 = smul.u32 %s25, 5
        %s384 = ssub.s32 %s383, 1
        %p385 = scmp.gt.s32.totalorder %s384, 0
        %s386 = scalar_select %p385, %s384, 0
        %p387 = scmp.lt.s32.totalorder %s24, 1
        %s388 = scalar_select %p387, %s24, 1
        %p389 = scmp.lt.s32.totalorder %s386, 4
        %s390 = scalar_select %p389, %s386, 4
        %s391 = smul.addr %s390, 8
        %s392 = smul.addr %s388, 40
        %s393 = sadd.s32 %s391, %s392
        %s394 = smul.addr %s393, 2
        %s395 = scalar_lea.vmem %s2, %s394
        %s396 = smul.u32 %s25, 5
        %s397 = ssub.s32 %s396, 1
        %p398 = scmp.gt.s32.totalorder %s397, 0
        %s399 = scalar_select %p398, %s397, 0
        %s400 = smul.u32 %s25, 5
        %s401 = sadd.s32 %s400, %s26
        %s403 = smul.u32 %s25, 5
        %s404 = sadd.s32 %s403, %s26
        %p405 = scmp.eq.s32.totalorder %s26, 0
        // Predicated region
        $region41: #{tpu_custom_call.1} parent=39 // pred_check
          %p406 = pneg %p405
        $region42: #{tpu_custom_call.1} parent=39 // pred_check_branch
          %408 = sbr.rel (%p406) target = $region44
        $region43: #{tpu_custom_call.1} parent=39 // pred_region
          %vm409 = vcmask 26624
          %410 = vst.msk [vmem:[#allocation2] sm:$0x7] %vm409, 0
          %411 = vst.msk [vmem:[#allocation2 + $0x4] sm:$0x7] %vm409, 0
          %412 = vst.msk [vmem:[#allocation2 + $0x8] sm:$0x7] %vm409, 0
          %413 = vst.msk [vmem:[#allocation2 + $0xc] sm:$0x7] %vm409, 0
          %414 = vst.msk [vmem:[#allocation2 + $0x10] sm:$0x7] %vm409, 0
          %415 = vst.msk [vmem:[#allocation2 + $0x14] sm:$0x7] %vm409, 0
          %416 = vst.msk [vmem:[#allocation2 + $0x18] sm:$0x7] %vm409, 0
          %417 = vst.msk [vmem:[#allocation2 + $0x1c] sm:$0x7] %vm409, 0
          %418 = vst.msk [vmem:[#allocation2 + $0x20] sm:$0x7] %vm409, 0
          %419 = vst.msk [vmem:[#allocation2 + $0x24] sm:$0x7] %vm409, 0
          %420 = vst.msk [vmem:[#allocation2 + $0x28] sm:$0x7] %vm409, 0
          %421 = vst.msk [vmem:[#allocation2 + $0x2c] sm:$0x7] %vm409, 0
          %422 = vst.msk [vmem:[#allocation2 + $0x30] sm:$0x7] %vm409, 0
          %423 = vst.msk [vmem:[#allocation2 + $0x34] sm:$0x7] %vm409, 0
          %424 = vst.msk [vmem:[#allocation2 + $0x38] sm:$0x7] %vm409, 0
          %425 = vst.msk [vmem:[#allocation2 + $0x3c] sm:$0x7] %vm409, 0
          %426 = vst.msk [vmem:[#allocation2 + $0x40] sm:$0x7] %vm409, 0
          %427 = vst.msk [vmem:[#allocation2 + $0x44] sm:$0x7] %vm409, 0
          %428 = vst.msk [vmem:[#allocation2 + $0x48] sm:$0x7] %vm409, 0
          %429 = vst.msk [vmem:[#allocation2 + $0x4c] sm:$0x7] %vm409, 0
          %430 = vst.msk [vmem:[#allocation2 + $0x50] sm:$0x7] %vm409, 0
          %431 = vst.msk [vmem:[#allocation2 + $0x54] sm:$0x7] %vm409, 0
          %432 = vst.msk [vmem:[#allocation2 + $0x58] sm:$0x7] %vm409, 0
          %433 = vst.msk [vmem:[#allocation2 + $0x5c] sm:$0x7] %vm409, 0
          %434 = vst.msk [vmem:[#allocation2 + $0x60] sm:$0x7] %vm409, 0
          %435 = vst.msk [vmem:[#allocation2 + $0x64] sm:$0x7] %vm409, 0
          %436 = vst.msk [vmem:[#allocation2 + $0x68] sm:$0x7] %vm409, 0
          %437 = vst.msk [vmem:[#allocation2 + $0x6c] sm:$0x7] %vm409, 0
          %438 = vst.msk [vmem:[#allocation2 + $0x70] sm:$0x7] %vm409, 0
          %439 = vst.msk [vmem:[#allocation2 + $0x74] sm:$0x7] %vm409, 0
          %p440 = scmp.lt.s32.totalorder %s404, 0
          %s441 = ssub.s32 0, %s404
          %s442 = scalar_select %p440, %s441, %s404
          %s443 = sdiv.u32.pop %s442, 3
          %s444 = srem.u32.pop %s442, 3
          %s445 = ssub.s32 0, %s444
          %s446 = scalar_select %p440, %s445, %s444
          %p447 = scmp.ne.s32.totalorder %s446, 0
          %p448 = scmp.lt.s32.totalorder %s446, 0
          %p449 = pnand %p448, %p447
          %p450 = pneg %p449
          %s451 = sadd.s32 %s446, 3
          %s452 = scalar_select %p450, %s451, %s446
          %v453 = vld [vmem:[%s381] sm:$0x3]
          %v454 = vld [vmem:[%s381 + $0x2] sm:$0x3]
          %v455 = vld [vmem:[%s381 + $0x4] sm:$0x3]
          %v456 = vld [vmem:[%s381 + $0x6] sm:$0x3]
          %v457 = vld [vmem:[%s381 + $0x8] sm:$0x3]
          %v458 = vld [vmem:[%s381 + $0xa] sm:$0x3]
          %v459 = vld [vmem:[%s381 + $0xc] sm:$0x3]
          %v460 = vld [vmem:[%s381 + $0xe] sm:$0x3]
          %v470 = vunpack.c.l.s4 1983009808
          %v471 = vunpack.c.0.s8 %v470
          %v472 = vlaneseq
          %v473 = vshrl.u32 %v472, 7
          %v474 = vsub.s32 %v471, %v473
          %v475 = vrot.slane %v453, %v474
          %v477 = vunpack.c.l.s4 1983009808
          %v478 = vunpack.c.0.s8 %v477
          %v479 = vlaneseq
          %v480 = vshrl.u32 %v479, 7
          %v481 = vsub.s32 %v478, %v480
          %v482 = vrot.slane %v454, %v481
          %v484 = vunpack.c.l.s4 1983009808
          %v485 = vunpack.c.0.s8 %v484
          %v486 = vlaneseq
          %v487 = vshrl.u32 %v486, 7
          %v488 = vsub.s32 %v485, %v487
          %v489 = vrot.slane %v455, %v488
          %v491 = vunpack.c.l.s4 1983009808
          %v492 = vunpack.c.0.s8 %v491
          %v493 = vlaneseq
          %v494 = vshrl.u32 %v493, 7
          %v495 = vsub.s32 %v492, %v494
          %v496 = vrot.slane %v456, %v495
          %v498 = vunpack.c.l.s4 1983009808
          %v499 = vunpack.c.0.s8 %v498
          %v500 = vlaneseq
          %v501 = vshrl.u32 %v500, 7
          %v502 = vsub.s32 %v499, %v501
          %v503 = vrot.slane %v457, %v502
          %v505 = vunpack.c.l.s4 1983009808
          %v506 = vunpack.c.0.s8 %v505
          %v507 = vlaneseq
          %v508 = vshrl.u32 %v507, 7
          %v509 = vsub.s32 %v506, %v508
          %v510 = vrot.slane %v458, %v509
          %v512 = vunpack.c.l.s4 1983009808
          %v513 = vunpack.c.0.s8 %v512
          %v514 = vlaneseq
          %v515 = vshrl.u32 %v514, 7
          %v516 = vsub.s32 %v513, %v515
          %v517 = vrot.slane %v459, %v516
          %v519 = vunpack.c.l.s4 1983009808
          %v520 = vunpack.c.0.s8 %v519
          %v521 = vlaneseq
          %v522 = vshrl.u32 %v521, 7
          %v523 = vsub.s32 %v520, %v522
          %v524 = vrot.slane %v460, %v523
          %v526 = vshrl.u32 %v475, 16
          %v528 = vrot.slane %v526, 7
          %v529 = vshll.u32 %v475, 16
          %v531 = vor.u32 %v528, %v529
          %v533 = vshrl.u32 %v482, 16
          %v535 = vrot.slane %v533, 7
          %v536 = vshll.u32 %v482, 16
          %v538 = vor.u32 %v535, %v536
          %v540 = vshrl.u32 %v489, 16
          %v542 = vrot.slane %v540, 7
          %v543 = vshll.u32 %v489, 16
          %v545 = vor.u32 %v542, %v543
          %v547 = vshrl.u32 %v496, 16
          %v549 = vrot.slane %v547, 7
          %v550 = vshll.u32 %v496, 16
          %v552 = vor.u32 %v549, %v550
          %v554 = vshrl.u32 %v503, 16
          %v556 = vrot.slane %v554, 7
          %v557 = vshll.u32 %v503, 16
          %v559 = vor.u32 %v556, %v557
          %v561 = vshrl.u32 %v510, 16
          %v563 = vrot.slane %v561, 7
          %v564 = vshll.u32 %v510, 16
          %v566 = vor.u32 %v563, %v564
          %v568 = vshrl.u32 %v517, 16
          %v570 = vrot.slane %v568, 7
          %v571 = vshll.u32 %v517, 16
          %v573 = vor.u32 %v570, %v571
          %v575 = vshrl.u32 %v524, 16
          %v577 = vrot.slane %v575, 7
          %v578 = vshll.u32 %v524, 16
          %v580 = vor.u32 %v577, %v578
          %s589 = smul.u32 %s452, 10
          %s590 = sadd.s32 1, %s589
          %s591 = smul.addr %s590, 4
          %s592 = scalar_lea.vmem [#allocation2], %s591
          %vm593 = vcmask 26624
          %vm594 = vsmask.f32 2306
          %vm595 = vmand %vm593, %vm594
          %v596 = vld [vmem:[%s592] sm:$0x7]
          %v597 = vsel %vm595, %v531, %v596
          %598 = vst [vmem:[%s592] sm:$0x7] %v597
          %v599 = vld [vmem:[%s592 + $0x4] sm:$0x7]
          %v600 = vsel %vm595, %v538, %v599
          %601 = vst [vmem:[%s592 + $0x4] sm:$0x7] %v600
          %v602 = vld [vmem:[%s592 + $0x8] sm:$0x7]
          %v603 = vsel %vm595, %v545, %v602
          %604 = vst [vmem:[%s592 + $0x8] sm:$0x7] %v603
          %v605 = vld [vmem:[%s592 + $0xc] sm:$0x7]
          %v606 = vsel %vm595, %v552, %v605
          %607 = vst [vmem:[%s592 + $0xc] sm:$0x7] %v606
          %v608 = vld [vmem:[%s592 + $0x10] sm:$0x7]
          %v609 = vsel %vm595, %v559, %v608
          %610 = vst [vmem:[%s592 + $0x10] sm:$0x7] %v609
          %v611 = vld [vmem:[%s592 + $0x14] sm:$0x7]
          %v612 = vsel %vm595, %v566, %v611
          %613 = vst [vmem:[%s592 + $0x14] sm:$0x7] %v612
          %v614 = vld [vmem:[%s592 + $0x18] sm:$0x7]
          %v615 = vsel %vm595, %v573, %v614
          %616 = vst [vmem:[%s592 + $0x18] sm:$0x7] %v615
          %v617 = vld [vmem:[%s592 + $0x1c] sm:$0x7]
          %v618 = vsel %vm595, %v580, %v617
          %619 = vst [vmem:[%s592 + $0x1c] sm:$0x7] %v618
          %p620 = scmp.gt.s32.totalorder %s404, 0
          // Predicated region
          $region45: #{tpu_custom_call.1} parent=43 // pred_check
            %p621 = pneg %p620
          $region46: #{tpu_custom_call.1} parent=43 // pred_check_branch
            %623 = sbr.rel (%p621) target = $region48
          $region47: #{tpu_custom_call.1} parent=43 // pred_region
            %s624 = sadd.s32 %s404, 2
            %p625 = scmp.lt.s32.totalorder %s624, 0
            %s626 = ssub.s32 0, %s624
            %s627 = scalar_select %p625, %s626, %s624
            %s628 = sdiv.u32.pop %s627, 3
            %s629 = srem.u32.pop %s627, 3
            %s630 = ssub.s32 0, %s629
            %s631 = scalar_select %p625, %s630, %s629
            %p632 = scmp.ne.s32.totalorder %s631, 0
            %p633 = scmp.lt.s32.totalorder %s631, 0
            %p634 = pnand %p633, %p632
            %p635 = pneg %p634
            %s636 = sadd.s32 %s631, 3
            %s637 = scalar_select %p635, %s636, %s631
            %v638 = vld [vmem:[%s395] sm:$0x3]
            %v639 = vld [vmem:[%s395 + $0x2] sm:$0x3]
            %v640 = vld [vmem:[%s395 + $0x4] sm:$0x3]
            %v641 = vld [vmem:[%s395 + $0x6] sm:$0x3]
            %v642 = vld [vmem:[%s395 + $0x8] sm:$0x3]
            %v643 = vld [vmem:[%s395 + $0xa] sm:$0x3]
            %v644 = vld [vmem:[%s395 + $0xc] sm:$0x3]
            %v645 = vld [vmem:[%s395 + $0xe] sm:$0x3]
            %v655 = vunpack.c.l.s4 1983009808
            %v656 = vunpack.c.0.s8 %v655
            %v657 = vlaneseq
            %v658 = vshrl.u32 %v657, 7
            %v659 = vsub.s32 %v656, %v658
            %v660 = vrot.slane %v638, %v659
            %v662 = vunpack.c.l.s4 1983009808
            %v663 = vunpack.c.0.s8 %v662
            %v664 = vlaneseq
            %v665 = vshrl.u32 %v664, 7
            %v666 = vsub.s32 %v663, %v665
            %v667 = vrot.slane %v639, %v666
            %v669 = vunpack.c.l.s4 1983009808
            %v670 = vunpack.c.0.s8 %v669
            %v671 = vlaneseq
            %v672 = vshrl.u32 %v671, 7
            %v673 = vsub.s32 %v670, %v672
            %v674 = vrot.slane %v640, %v673
            %v676 = vunpack.c.l.s4 1983009808
            %v677 = vunpack.c.0.s8 %v676
            %v678 = vlaneseq
            %v679 = vshrl.u32 %v678, 7
            %v680 = vsub.s32 %v677, %v679
            %v681 = vrot.slane %v641, %v680
            %v683 = vunpack.c.l.s4 1983009808
            %v684 = vunpack.c.0.s8 %v683
            %v685 = vlaneseq
            %v686 = vshrl.u32 %v685, 7
            %v687 = vsub.s32 %v684, %v686
            %v688 = vrot.slane %v642, %v687
            %v690 = vunpack.c.l.s4 1983009808
            %v691 = vunpack.c.0.s8 %v690
            %v692 = vlaneseq
            %v693 = vshrl.u32 %v692, 7
            %v694 = vsub.s32 %v691, %v693
            %v695 = vrot.slane %v643, %v694
            %v697 = vunpack.c.l.s4 1983009808
            %v698 = vunpack.c.0.s8 %v697
            %v699 = vlaneseq
            %v700 = vshrl.u32 %v699, 7
            %v701 = vsub.s32 %v698, %v700
            %v702 = vrot.slane %v644, %v701
            %v704 = vunpack.c.l.s4 1983009808
            %v705 = vunpack.c.0.s8 %v704
            %v706 = vlaneseq
            %v707 = vshrl.u32 %v706, 7
            %v708 = vsub.s32 %v705, %v707
            %v709 = vrot.slane %v645, %v708
            %v711 = vshrl.u32 %v660, 16
            %v713 = vrot.slane %v711, 7
            %v714 = vshll.u32 %v660, 16
            %v716 = vor.u32 %v713, %v714
            %v718 = vshrl.u32 %v667, 16
            %v720 = vrot.slane %v718, 7
            %v721 = vshll.u32 %v667, 16
            %v723 = vor.u32 %v720, %v721
            %v725 = vshrl.u32 %v674, 16
            %v727 = vrot.slane %v725, 7
            %v728 = vshll.u32 %v674, 16
            %v730 = vor.u32 %v727, %v728
            %v732 = vshrl.u32 %v681, 16
            %v734 = vrot.slane %v732, 7
            %v735 = vshll.u32 %v681, 16
            %v737 = vor.u32 %v734, %v735
            %v739 = vshrl.u32 %v688, 16
            %v741 = vrot.slane %v739, 7
            %v742 = vshll.u32 %v688, 16
            %v744 = vor.u32 %v741, %v742
            %v746 = vshrl.u32 %v695, 16
            %v748 = vrot.slane %v746, 7
            %v749 = vshll.u32 %v695, 16
            %v751 = vor.u32 %v748, %v749
            %v753 = vshrl.u32 %v702, 16
            %v755 = vrot.slane %v753, 7
            %v756 = vshll.u32 %v702, 16
            %v758 = vor.u32 %v755, %v756
            %v760 = vshrl.u32 %v709, 16
            %v762 = vrot.slane %v760, 7
            %v763 = vshll.u32 %v709, 16
            %v765 = vor.u32 %v762, %v763
            %s774 = smul.u32 %s637, 10
            %s775 = sadd.s32 1, %s774
            %s776 = smul.addr %s775, 4
            %s777 = scalar_lea.vmem [#allocation2], %s776
            %v778 = vld [vmem:[%s777] sm:$0x7]
            %v779 = vsel %vm595, %v716, %v778
            %780 = vst [vmem:[%s777] sm:$0x7] %v779
            %v781 = vld [vmem:[%s777 + $0x4] sm:$0x7]
            %v782 = vsel %vm595, %v723, %v781
            %783 = vst [vmem:[%s777 + $0x4] sm:$0x7] %v782
            %v784 = vld [vmem:[%s777 + $0x8] sm:$0x7]
            %v785 = vsel %vm595, %v730, %v784
            %786 = vst [vmem:[%s777 + $0x8] sm:$0x7] %v785
            %v787 = vld [vmem:[%s777 + $0xc] sm:$0x7]
            %v788 = vsel %vm595, %v737, %v787
            %789 = vst [vmem:[%s777 + $0xc] sm:$0x7] %v788
            %v790 = vld [vmem:[%s777 + $0x10] sm:$0x7]
            %v791 = vsel %vm595, %v744, %v790
            %792 = vst [vmem:[%s777 + $0x10] sm:$0x7] %v791
            %v793 = vld [vmem:[%s777 + $0x14] sm:$0x7]
            %v794 = vsel %vm595, %v751, %v793
            %795 = vst [vmem:[%s777 + $0x14] sm:$0x7] %v794
            %v796 = vld [vmem:[%s777 + $0x18] sm:$0x7]
            %v797 = vsel %vm595, %v758, %v796
            %798 = vst [vmem:[%s777 + $0x18] sm:$0x7] %v797
            %v799 = vld [vmem:[%s777 + $0x1c] sm:$0x7]
            %v800 = vsel %vm595, %v765, %v799
            %801 = vst [vmem:[%s777 + $0x1c] sm:$0x7] %v800
          $region48: #{tpu_custom_call.1} parent=43 // pred_fallthru
            _
        $region44: #{tpu_custom_call.1} parent=39 // pred_fallthru
          _
        %s802 = sadd.s32 %s404, 1
        %p803 = scmp.lt.s32.totalorder %s802, 0
        %s804 = ssub.s32 0, %s802
        %s805 = scalar_select %p803, %s804, %s802
        %s806 = sdiv.u32.pop %s805, 3
        %s807 = srem.u32.pop %s805, 3
        %s808 = ssub.s32 0, %s807
        %s809 = scalar_select %p803, %s808, %s807
        %p810 = scmp.ne.s32.totalorder %s809, 0
        %p811 = scmp.lt.s32.totalorder %s809, 0
        %p812 = pnand %p811, %p810
        %p813 = pneg %p812
        %s814 = sadd.s32 %s809, 3
        %s815 = scalar_select %p813, %s814, %s809
        %p816 = scmp.lt.s32.totalorder %s802, 5
        // Predicated region
        $region49: #{tpu_custom_call.1} parent=39 // pred_check
          %p817 = pneg %p816
        $region50: #{tpu_custom_call.1} parent=39 // pred_check_branch
          %819 = sbr.rel (%p817) target = $region52
        $region51: #{tpu_custom_call.1} parent=39 // pred_region
          %v820 = vld [vmem:[%s366] sm:$0x3]
          %v821 = vld [vmem:[%s366 + $0x2] sm:$0x3]
          %v822 = vld [vmem:[%s366 + $0x4] sm:$0x3]
          %v823 = vld [vmem:[%s366 + $0x6] sm:$0x3]
          %v824 = vld [vmem:[%s366 + $0x8] sm:$0x3]
          %v825 = vld [vmem:[%s366 + $0xa] sm:$0x3]
          %v826 = vld [vmem:[%s366 + $0xc] sm:$0x3]
          %v827 = vld [vmem:[%s366 + $0xe] sm:$0x3]
          %v837 = vunpack.c.l.s4 1983009808
          %v838 = vunpack.c.0.s8 %v837
          %v839 = vlaneseq
          %v840 = vshrl.u32 %v839, 7
          %v841 = vsub.s32 %v838, %v840
          %v842 = vrot.slane %v820, %v841
          %v844 = vunpack.c.l.s4 1983009808
          %v845 = vunpack.c.0.s8 %v844
          %v846 = vlaneseq
          %v847 = vshrl.u32 %v846, 7
          %v848 = vsub.s32 %v845, %v847
          %v849 = vrot.slane %v821, %v848
          %v851 = vunpack.c.l.s4 1983009808
          %v852 = vunpack.c.0.s8 %v851
          %v853 = vlaneseq
          %v854 = vshrl.u32 %v853, 7
          %v855 = vsub.s32 %v852, %v854
          %v856 = vrot.slane %v822, %v855
          %v858 = vunpack.c.l.s4 1983009808
          %v859 = vunpack.c.0.s8 %v858
          %v860 = vlaneseq
          %v861 = vshrl.u32 %v860, 7
          %v862 = vsub.s32 %v859, %v861
          %v863 = vrot.slane %v823, %v862
          %v865 = vunpack.c.l.s4 1983009808
          %v866 = vunpack.c.0.s8 %v865
          %v867 = vlaneseq
          %v868 = vshrl.u32 %v867, 7
          %v869 = vsub.s32 %v866, %v868
          %v870 = vrot.slane %v824, %v869
          %v872 = vunpack.c.l.s4 1983009808
          %v873 = vunpack.c.0.s8 %v872
          %v874 = vlaneseq
          %v875 = vshrl.u32 %v874, 7
          %v876 = vsub.s32 %v873, %v875
          %v877 = vrot.slane %v825, %v876
          %v879 = vunpack.c.l.s4 1983009808
          %v880 = vunpack.c.0.s8 %v879
          %v881 = vlaneseq
          %v882 = vshrl.u32 %v881, 7
          %v883 = vsub.s32 %v880, %v882
          %v884 = vrot.slane %v826, %v883
          %v886 = vunpack.c.l.s4 1983009808
          %v887 = vunpack.c.0.s8 %v886
          %v888 = vlaneseq
          %v889 = vshrl.u32 %v888, 7
          %v890 = vsub.s32 %v887, %v889
          %v891 = vrot.slane %v827, %v890
          %v893 = vshrl.u32 %v842, 16
          %v895 = vrot.slane %v893, 7
          %v896 = vshll.u32 %v842, 16
          %v898 = vor.u32 %v895, %v896
          %v900 = vshrl.u32 %v849, 16
          %v902 = vrot.slane %v900, 7
          %v903 = vshll.u32 %v849, 16
          %v905 = vor.u32 %v902, %v903
          %v907 = vshrl.u32 %v856, 16
          %v909 = vrot.slane %v907, 7
          %v910 = vshll.u32 %v856, 16
          %v912 = vor.u32 %v909, %v910
          %v914 = vshrl.u32 %v863, 16
          %v916 = vrot.slane %v914, 7
          %v917 = vshll.u32 %v863, 16
          %v919 = vor.u32 %v916, %v917
          %v921 = vshrl.u32 %v870, 16
          %v923 = vrot.slane %v921, 7
          %v924 = vshll.u32 %v870, 16
          %v926 = vor.u32 %v923, %v924
          %v928 = vshrl.u32 %v877, 16
          %v930 = vrot.slane %v928, 7
          %v931 = vshll.u32 %v877, 16
          %v933 = vor.u32 %v930, %v931
          %v935 = vshrl.u32 %v884, 16
          %v937 = vrot.slane %v935, 7
          %v938 = vshll.u32 %v884, 16
          %v940 = vor.u32 %v937, %v938
          %v942 = vshrl.u32 %v891, 16
          %v944 = vrot.slane %v942, 7
          %v945 = vshll.u32 %v891, 16
          %v947 = vor.u32 %v944, %v945
          %s956 = smul.u32 %s815, 10
          %s957 = sadd.s32 1, %s956
          %s958 = smul.addr %s957, 4
          %s959 = scalar_lea.vmem [#allocation2], %s958
          %vm960 = vcmask 26624
          %vm961 = vsmask.f32 2306
          %vm962 = vmand %vm960, %vm961
          %v963 = vld [vmem:[%s959] sm:$0x7]
          %v964 = vsel %vm962, %v898, %v963
          %965 = vst [vmem:[%s959] sm:$0x7] %v964
          %v966 = vld [vmem:[%s959 + $0x4] sm:$0x7]
          %v967 = vsel %vm962, %v905, %v966
          %968 = vst [vmem:[%s959 + $0x4] sm:$0x7] %v967
          %v969 = vld [vmem:[%s959 + $0x8] sm:$0x7]
          %v970 = vsel %vm962, %v912, %v969
          %971 = vst [vmem:[%s959 + $0x8] sm:$0x7] %v970
          %v972 = vld [vmem:[%s959 + $0xc] sm:$0x7]
          %v973 = vsel %vm962, %v919, %v972
          %974 = vst [vmem:[%s959 + $0xc] sm:$0x7] %v973
          %v975 = vld [vmem:[%s959 + $0x10] sm:$0x7]
          %v976 = vsel %vm962, %v926, %v975
          %977 = vst [vmem:[%s959 + $0x10] sm:$0x7] %v976
          %v978 = vld [vmem:[%s959 + $0x14] sm:$0x7]
          %v979 = vsel %vm962, %v933, %v978
          %980 = vst [vmem:[%s959 + $0x14] sm:$0x7] %v979
          %v981 = vld [vmem:[%s959 + $0x18] sm:$0x7]
          %v982 = vsel %vm962, %v940, %v981
          %983 = vst [vmem:[%s959 + $0x18] sm:$0x7] %v982
          %v984 = vld [vmem:[%s959 + $0x1c] sm:$0x7]
          %v985 = vsel %vm962, %v947, %v984
          %986 = vst [vmem:[%s959 + $0x1c] sm:$0x7] %v985
        $region52: #{tpu_custom_call.1} parent=39 // pred_fallthru
          _
        %p987 = scmp.ge.s32.totalorder %s802, 5
        // Predicated region
        $region53: #{tpu_custom_call.1} parent=39 // pred_check
          %p988 = pneg %p987
        $region54: #{tpu_custom_call.1} parent=39 // pred_check_branch
          %990 = sbr.rel (%p988) target = $region56
        $region55: #{tpu_custom_call.1} parent=39 // pred_region
          %s991 = smul.u32 %s815, 10
          %s992 = sadd.s32 1, %s991
          %s993 = smul.addr %s992, 4
          %s994 = scalar_lea.vmem [#allocation2], %s993
          %vm995 = vcmask 26624
          %vm996 = vsmask.f32 2306
          %vm997 = vmand %vm995, %vm996
          %v998 = vld [vmem:[%s994] sm:$0x7]
          %v999 = vsel %vm997, 0, %v998
          %1000 = vst [vmem:[%s994] sm:$0x7] %v999
          %v1001 = vld [vmem:[%s994 + $0x4] sm:$0x7]
          %v1002 = vsel %vm997, 0, %v1001
          %1003 = vst [vmem:[%s994 + $0x4] sm:$0x7] %v1002
          %v1004 = vld [vmem:[%s994 + $0x8] sm:$0x7]
          %v1005 = vsel %vm997, 0, %v1004
          %1006 = vst [vmem:[%s994 + $0x8] sm:$0x7] %v1005
          %v1007 = vld [vmem:[%s994 + $0xc] sm:$0x7]
          %v1008 = vsel %vm997, 0, %v1007
          %1009 = vst [vmem:[%s994 + $0xc] sm:$0x7] %v1008
          %v1010 = vld [vmem:[%s994 + $0x10] sm:$0x7]
          %v1011 = vsel %vm997, 0, %v1010
          %1012 = vst [vmem:[%s994 + $0x10] sm:$0x7] %v1011
          %v1013 = vld [vmem:[%s994 + $0x14] sm:$0x7]
          %v1014 = vsel %vm997, 0, %v1013
          %1015 = vst [vmem:[%s994 + $0x14] sm:$0x7] %v1014
          %v1016 = vld [vmem:[%s994 + $0x18] sm:$0x7]
          %v1017 = vsel %vm997, 0, %v1016
          %1018 = vst [vmem:[%s994 + $0x18] sm:$0x7] %v1017
          %v1019 = vld [vmem:[%s994 + $0x1c] sm:$0x7]
          %v1020 = vsel %vm997, 0, %v1019
          %1021 = vst [vmem:[%s994 + $0x1c] sm:$0x7] %v1020
        $region56: #{tpu_custom_call.1} parent=39 // pred_fallthru
          _
        %s1022 = sadd.s32 %s404, 2
        %p1023 = scmp.lt.s32.totalorder %s1022, 0
        %s1024 = ssub.s32 0, %s1022
        %s1025 = scalar_select %p1023, %s1024, %s1022
        %s1026 = sdiv.u32.pop %s1025, 3
        %s1027 = srem.u32.pop %s1025, 3
        %s1028 = ssub.s32 0, %s1027
        %s1029 = scalar_select %p1023, %s1028, %s1027
        %p1030 = scmp.ne.s32.totalorder %s1029, 0
        %p1031 = scmp.lt.s32.totalorder %s1029, 0
        %p1032 = pnand %p1031, %p1030
        %p1033 = pneg %p1032
        %s1034 = sadd.s32 %s1029, 3
        %s1035 = scalar_select %p1033, %s1034, %s1029
        %s1036 = smul.u32 %s1035, 10
        %s1037 = smul.addr %s1036, 4
        %s1038 = scalar_lea.vmem [#allocation2], %s1037
        %v1039 = vld [vmem:[%s1038] sm:$0x3]
        %v1040 = vld [vmem:[%s1038 + $0x4] sm:$0x3]
        %v1041 = vld [vmem:[%s1038 + $0x8] sm:$0x3]
        %v1042 = vld [vmem:[%s1038 + $0xc] sm:$0x3]
        %v1043 = vld [vmem:[%s1038 + $0x10] sm:$0x3]
        %v1044 = vld [vmem:[%s1038 + $0x14] sm:$0x3]
        %v1045 = vld [vmem:[%s1038 + $0x18] sm:$0x3]
        %v1046 = vld [vmem:[%s1038 + $0x1c] sm:$0x3]
        %v1055 = vcombine.low %v1039, %v1040
        %v1057 = vunpack.c.l.s4 1983009808
        %v1058 = vunpack.c.0.s8 %v1057
        %v1059 = vlaneseq
        %v1060 = vshrl.u32 %v1059, 7
        %v1061 = vsub.s32 %v1058, %v1060
        %v1062 = vrot.slane %v1055, %v1061
        %v1063 = vcombine.low %v1041, %v1042
        %v1065 = vunpack.c.l.s4 1983009808
        %v1066 = vunpack.c.0.s8 %v1065
        %v1067 = vlaneseq
        %v1068 = vshrl.u32 %v1067, 7
        %v1069 = vsub.s32 %v1066, %v1068
        %v1070 = vrot.slane %v1063, %v1069
        %v1071 = vcombine.low %v1043, %v1044
        %v1073 = vunpack.c.l.s4 1983009808
        %v1074 = vunpack.c.0.s8 %v1073
        %v1075 = vlaneseq
        %v1076 = vshrl.u32 %v1075, 7
        %v1077 = vsub.s32 %v1074, %v1076
        %v1078 = vrot.slane %v1071, %v1077
        %v1079 = vcombine.low %v1045, %v1046
        %v1081 = vunpack.c.l.s4 1983009808
        %v1082 = vunpack.c.0.s8 %v1081
        %v1083 = vlaneseq
        %v1084 = vshrl.u32 %v1083, 7
        %v1085 = vsub.s32 %v1082, %v1084
        %v1086 = vrot.slane %v1079, %v1085
        %vm1091 = vcmask 27648
        %1092 = vst.msk [vmem:[#allocation3] sm:$0xf] %vm1091, %v1062
        %1093 = vst.msk [vmem:[#allocation3 + $0x4] sm:$0xf] %vm1091, %v1070
        %1094 = vst.msk [vmem:[#allocation3 + $0x8] sm:$0xf] %vm1091, %v1078
        %1095 = vst.msk [vmem:[#allocation3 + $0xc] sm:$0xf] %vm1091, %v1086
        %v1096 = vld [vmem:[%s1038] sm:$0x7]
        %v1097 = vld [vmem:[%s1038 + $0x4] sm:$0x7]
        %v1098 = vld [vmem:[%s1038 + $0x8] sm:$0x7]
        %v1099 = vld [vmem:[%s1038 + $0xc] sm:$0x7]
        %v1100 = vld [vmem:[%s1038 + $0x10] sm:$0x7]
        %v1101 = vld [vmem:[%s1038 + $0x14] sm:$0x7]
        %v1102 = vld [vmem:[%s1038 + $0x18] sm:$0x7]
        %v1103 = vld [vmem:[%s1038 + $0x1c] sm:$0x7]
        %v1113 = vunpack.c.l.s4 1983009808
        %v1114 = vunpack.c.0.s8 %v1113
        %v1115 = vlaneseq
        %v1116 = vshrl.u32 %v1115, 7
        %v1117 = vsub.s32 %v1114, %v1116
        %v1118 = vrot.slane %v1096, %v1117
        %v1119 = vcombine.high %v1118, %v1118
        %v1121 = vunpack.c.l.s4 1983009808
        %v1122 = vunpack.c.0.s8 %v1121
        %v1123 = vlaneseq
        %v1124 = vshrl.u32 %v1123, 7
        %v1125 = vsub.s32 %v1122, %v1124
        %v1126 = vrot.slane %v1097, %v1125
        %v1127 = vcombine.high %v1126, %v1126
        %v1129 = vunpack.c.l.s4 1983009808
        %v1130 = vunpack.c.0.s8 %v1129
        %v1131 = vlaneseq
        %v1132 = vshrl.u32 %v1131, 7
        %v1133 = vsub.s32 %v1130, %v1132
        %v1134 = vrot.slane %v1098, %v1133
        %v1135 = vcombine.high %v1134, %v1134
        %v1137 = vunpack.c.l.s4 1983009808
        %v1138 = vunpack.c.0.s8 %v1137
        %v1139 = vlaneseq
        %v1140 = vshrl.u32 %v1139, 7
        %v1141 = vsub.s32 %v1138, %v1140
        %v1142 = vrot.slane %v1099, %v1141
        %v1143 = vcombine.high %v1142, %v1142
        %v1145 = vunpack.c.l.s4 1983009808
        %v1146 = vunpack.c.0.s8 %v1145
        %v1147 = vlaneseq
        %v1148 = vshrl.u32 %v1147, 7
        %v1149 = vsub.s32 %v1146, %v1148
        %v1150 = vrot.slane %v1100, %v1149
        %v1151 = vcombine.high %v1150, %v1150
        %v1153 = vunpack.c.l.s4 1983009808
        %v1154 = vunpack.c.0.s8 %v1153
        %v1155 = vlaneseq
        %v1156 = vshrl.u32 %v1155, 7
        %v1157 = vsub.s32 %v1154, %v1156
        %v1158 = vrot.slane %v1101, %v1157
        %v1159 = vcombine.high %v1158, %v1158
        %v1161 = vunpack.c.l.s4 1983009808
        %v1162 = vunpack.c.0.s8 %v1161
        %v1163 = vlaneseq
        %v1164 = vshrl.u32 %v1163, 7
        %v1165 = vsub.s32 %v1162, %v1164
        %v1166 = vrot.slane %v1102, %v1165
        %v1167 = vcombine.high %v1166, %v1166
        %v1169 = vunpack.c.l.s4 1983009808
        %v1170 = vunpack.c.0.s8 %v1169
        %v1171 = vlaneseq
        %v1172 = vshrl.u32 %v1171, 7
        %v1173 = vsub.s32 %v1170, %v1172
        %v1174 = vrot.slane %v1103, %v1173
        %v1175 = vcombine.high %v1174, %v1174
        %vm1176 = vsmask.f32 1280
        %vm1177 = vsmask.f32 3336
        %vm1178 = vmor %vm1176, %vm1177
        %vm1179 = vsmask.f32 5392
        %vm1180 = vmor %vm1178, %vm1179
        %vm1181 = vsmask.f32 7448
        %vm1182 = vmor %vm1180, %vm1181
        %v1184 = vshrl.u32 %v1118, 16
        %v1186 = vrot.slane %v1184, 6
        %v1187 = vshll.u32 %v1118, 16
        %v1189 = vrot.slane %v1187, 7
        %v1190 = vor.u32 %v1186, %v1189
        %v1191 = vrot.slane %v1190, 2
        %v1193 = vshll.u32 %v1119, 16
        %v1195 = vrot.slane %v1193, 7
        %v1196 = vsel %vm1182, %v1191, %v1195
        %v1198 = vshrl.u32 %v1126, 16
        %v1200 = vrot.slane %v1198, 6
        %v1201 = vshll.u32 %v1126, 16
        %v1203 = vrot.slane %v1201, 7
        %v1204 = vor.u32 %v1200, %v1203
        %v1205 = vrot.slane %v1204, 2
        %v1207 = vshll.u32 %v1127, 16
        %v1209 = vrot.slane %v1207, 7
        %v1210 = vsel %vm1182, %v1205, %v1209
        %v1212 = vshrl.u32 %v1134, 16
        %v1214 = vrot.slane %v1212, 6
        %v1215 = vshll.u32 %v1134, 16
        %v1217 = vrot.slane %v1215, 7
        %v1218 = vor.u32 %v1214, %v1217
        %v1219 = vrot.slane %v1218, 2
        %v1221 = vshll.u32 %v1135, 16
        %v1223 = vrot.slane %v1221, 7
        %v1224 = vsel %vm1182, %v1219, %v1223
        %v1226 = vshrl.u32 %v1142, 16
        %v1228 = vrot.slane %v1226, 6
        %v1229 = vshll.u32 %v1142, 16
        %v1231 = vrot.slane %v1229, 7
        %v1232 = vor.u32 %v1228, %v1231
        %v1233 = vrot.slane %v1232, 2
        %v1235 = vshll.u32 %v1143, 16
        %v1237 = vrot.slane %v1235, 7
        %v1238 = vsel %vm1182, %v1233, %v1237
        %v1240 = vshrl.u32 %v1150, 16
        %v1242 = vrot.slane %v1240, 6
        %v1243 = vshll.u32 %v1150, 16
        %v1245 = vrot.slane %v1243, 7
        %v1246 = vor.u32 %v1242, %v1245
        %v1247 = vrot.slane %v1246, 2
        %v1249 = vshll.u32 %v1151, 16
        %v1251 = vrot.slane %v1249, 7
        %v1252 = vsel %vm1182, %v1247, %v1251
        %v1254 = vshrl.u32 %v1158, 16
        %v1256 = vrot.slane %v1254, 6
        %v1257 = vshll.u32 %v1158, 16
        %v1259 = vrot.slane %v1257, 7
        %v1260 = vor.u32 %v1256, %v1259
        %v1261 = vrot.slane %v1260, 2
        %v1263 = vshll.u32 %v1159, 16
        %v1265 = vrot.slane %v1263, 7
        %v1266 = vsel %vm1182, %v1261, %v1265
        %v1268 = vshrl.u32 %v1166, 16
        %v1270 = vrot.slane %v1268, 6
        %v1271 = vshll.u32 %v1166, 16
        %v1273 = vrot.slane %v1271, 7
        %v1274 = vor.u32 %v1270, %v1273
        %v1275 = vrot.slane %v1274, 2
        %v1277 = vshll.u32 %v1167, 16
        %v1279 = vrot.slane %v1277, 7
        %v1280 = vsel %vm1182, %v1275, %v1279
        %v1282 = vshrl.u32 %v1174, 16
        %v1284 = vrot.slane %v1282, 6
        %v1285 = vshll.u32 %v1174, 16
        %v1287 = vrot.slane %v1285, 7
        %v1288 = vor.u32 %v1284, %v1287
        %v1289 = vrot.slane %v1288, 2
        %v1291 = vshll.u32 %v1175, 16
        %v1293 = vrot.slane %v1291, 7
        %v1294 = vsel %vm1182, %v1289, %v1293
        %v1295 = vcombine.low %v1196, %v1210
        %v1297 = vunpack.c.l.s4 1983009808
        %v1298 = vunpack.c.0.s8 %v1297
        %v1299 = vlaneseq
        %v1300 = vshrl.u32 %v1299, 7
        %v1301 = vsub.s32 %v1298, %v1300
        %v1302 = vrot.slane %v1295, %v1301
        %v1303 = vcombine.low %v1224, %v1238
        %v1305 = vunpack.c.l.s4 1983009808
        %v1306 = vunpack.c.0.s8 %v1305
        %v1307 = vlaneseq
        %v1308 = vshrl.u32 %v1307, 7
        %v1309 = vsub.s32 %v1306, %v1308
        %v1310 = vrot.slane %v1303, %v1309
        %v1311 = vcombine.low %v1252, %v1266
        %v1313 = vunpack.c.l.s4 1983009808
        %v1314 = vunpack.c.0.s8 %v1313
        %v1315 = vlaneseq
        %v1316 = vshrl.u32 %v1315, 7
        %v1317 = vsub.s32 %v1314, %v1316
        %v1318 = vrot.slane %v1311, %v1317
        %v1319 = vcombine.low %v1280, %v1294
        %v1321 = vunpack.c.l.s4 1983009808
        %v1322 = vunpack.c.0.s8 %v1321
        %v1323 = vlaneseq
        %v1324 = vshrl.u32 %v1323, 7
        %v1325 = vsub.s32 %v1322, %v1324
        %v1326 = vrot.slane %v1319, %v1325
        %1327 = vrot.lane.b32.xlu0 %v1302, 4
        %v1328 = vpop.permute.xlu0 %1327
        %1329 = vrot.lane.b32.xlu0 %v1310, 4
        %v1330 = vpop.permute.xlu0 %1329
        %1331 = vrot.lane.b32.xlu0 %v1318, 4
        %v1332 = vpop.permute.xlu0 %1331
        %1333 = vrot.lane.b32.xlu0 %v1326, 4
        %v1334 = vpop.permute.xlu0 %1333
        %vm1339 = vcmask 60448
        %1340 = vst.msk [vmem:[#allocation3] sm:$0xf] %vm1339, %v1328
        %1341 = vst.msk [vmem:[#allocation3 + $0x4] sm:$0xf] %vm1339, %v1330
        %1342 = vst.msk [vmem:[#allocation3 + $0x8] sm:$0xf] %vm1339, %v1332
        %1343 = vst.msk [vmem:[#allocation3 + $0xc] sm:$0xf] %vm1339, %v1334
        %v1344 = vld [vmem:[%s1038] sm:$0x6]
        %v1345 = vld [vmem:[%s1038 + $0x4] sm:$0x6]
        %v1346 = vld [vmem:[%s1038 + $0x8] sm:$0x6]
        %v1347 = vld [vmem:[%s1038 + $0xc] sm:$0x6]
        %v1348 = vld [vmem:[%s1038 + $0x10] sm:$0x6]
        %v1349 = vld [vmem:[%s1038 + $0x14] sm:$0x6]
        %v1350 = vld [vmem:[%s1038 + $0x18] sm:$0x6]
        %v1351 = vld [vmem:[%s1038 + $0x1c] sm:$0x6]
        %v1361 = vunpack.c.l.s4 1983009808
        %v1362 = vunpack.c.0.s8 %v1361
        %v1363 = vlaneseq
        %v1364 = vshrl.u32 %v1363, 7
        %v1365 = vsub.s32 %v1362, %v1364
        %v1366 = vrot.slane %v1344, %v1365
        %v1367 = vcombine.high %v1366, %v1366
        %v1369 = vunpack.c.l.s4 1983009808
        %v1370 = vunpack.c.0.s8 %v1369
        %v1371 = vlaneseq
        %v1372 = vshrl.u32 %v1371, 7
        %v1373 = vsub.s32 %v1370, %v1372
        %v1374 = vrot.slane %v1345, %v1373
        %v1375 = vcombine.high %v1374, %v1374
        %v1377 = vunpack.c.l.s4 1983009808
        %v1378 = vunpack.c.0.s8 %v1377
        %v1379 = vlaneseq
        %v1380 = vshrl.u32 %v1379, 7
        %v1381 = vsub.s32 %v1378, %v1380
        %v1382 = vrot.slane %v1346, %v1381
        %v1383 = vcombine.high %v1382, %v1382
        %v1385 = vunpack.c.l.s4 1983009808
        %v1386 = vunpack.c.0.s8 %v1385
        %v1387 = vlaneseq
        %v1388 = vshrl.u32 %v1387, 7
        %v1389 = vsub.s32 %v1386, %v1388
        %v1390 = vrot.slane %v1347, %v1389
        %v1391 = vcombine.high %v1390, %v1390
        %v1393 = vunpack.c.l.s4 1983009808
        %v1394 = vunpack.c.0.s8 %v1393
        %v1395 = vlaneseq
        %v1396 = vshrl.u32 %v1395, 7
        %v1397 = vsub.s32 %v1394, %v1396
        %v1398 = vrot.slane %v1348, %v1397
        %v1399 = vcombine.high %v1398, %v1398
        %v1401 = vunpack.c.l.s4 1983009808
        %v1402 = vunpack.c.0.s8 %v1401
        %v1403 = vlaneseq
        %v1404 = vshrl.u32 %v1403, 7
        %v1405 = vsub.s32 %v1402, %v1404
        %v1406 = vrot.slane %v1349, %v1405
        %v1407 = vcombine.high %v1406, %v1406
        %v1409 = vunpack.c.l.s4 1983009808
        %v1410 = vunpack.c.0.s8 %v1409
        %v1411 = vlaneseq
        %v1412 = vshrl.u32 %v1411, 7
        %v1413 = vsub.s32 %v1410, %v1412
        %v1414 = vrot.slane %v1350, %v1413
        %v1415 = vcombine.high %v1414, %v1414
        %v1417 = vunpack.c.l.s4 1983009808
        %v1418 = vunpack.c.0.s8 %v1417
        %v1419 = vlaneseq
        %v1420 = vshrl.u32 %v1419, 7
        %v1421 = vsub.s32 %v1418, %v1420
        %v1422 = vrot.slane %v1351, %v1421
        %v1423 = vcombine.high %v1422, %v1422
        %vm1424 = vcmask 1040384
        %vm1425 = vcmask 1042434
        %vm1426 = vmor %vm1424, %vm1425
        %vm1427 = vcmask 1044484
        %vm1428 = vmor %vm1426, %vm1427
        %vm1429 = vcmask 1046534
        %vm1430 = vmor %vm1428, %vm1429
        %v1431 = vrot.slane %v1366, 7
        %v1432 = vrot.slane %v1431, 2
        %v1433 = vrot.slane %v1367, 7
        %v1434 = vsel %vm1430, %v1432, %v1433
        %v1435 = vrot.slane %v1374, 7
        %v1436 = vrot.slane %v1435, 2
        %v1437 = vrot.slane %v1375, 7
        %v1438 = vsel %vm1430, %v1436, %v1437
        %v1439 = vrot.slane %v1382, 7
        %v1440 = vrot.slane %v1439, 2
        %v1441 = vrot.slane %v1383, 7
        %v1442 = vsel %vm1430, %v1440, %v1441
        %v1443 = vrot.slane %v1390, 7
        %v1444 = vrot.slane %v1443, 2
        %v1445 = vrot.slane %v1391, 7
        %v1446 = vsel %vm1430, %v1444, %v1445
        %v1447 = vrot.slane %v1398, 7
        %v1448 = vrot.slane %v1447, 2
        %v1449 = vrot.slane %v1399, 7
        %v1450 = vsel %vm1430, %v1448, %v1449
        %v1451 = vrot.slane %v1406, 7
        %v1452 = vrot.slane %v1451, 2
        %v1453 = vrot.slane %v1407, 7
        %v1454 = vsel %vm1430, %v1452, %v1453
        %v1455 = vrot.slane %v1414, 7
        %v1456 = vrot.slane %v1455, 2
        %v1457 = vrot.slane %v1415, 7
        %v1458 = vsel %vm1430, %v1456, %v1457
        %v1459 = vrot.slane %v1422, 7
        %v1460 = vrot.slane %v1459, 2
        %v1461 = vrot.slane %v1423, 7
        %v1462 = vsel %vm1430, %v1460, %v1461
        %v1463 = vcombine.low %v1434, %v1438
        %v1465 = vunpack.c.l.s4 1983009808
        %v1466 = vunpack.c.0.s8 %v1465
        %v1467 = vlaneseq
        %v1468 = vshrl.u32 %v1467, 7
        %v1469 = vsub.s32 %v1466, %v1468
        %v1470 = vrot.slane %v1463, %v1469
        %v1471 = vcombine.low %v1442, %v1446
        %v1473 = vunpack.c.l.s4 1983009808
        %v1474 = vunpack.c.0.s8 %v1473
        %v1475 = vlaneseq
        %v1476 = vshrl.u32 %v1475, 7
        %v1477 = vsub.s32 %v1474, %v1476
        %v1478 = vrot.slane %v1471, %v1477
        %v1479 = vcombine.low %v1450, %v1454
        %v1481 = vunpack.c.l.s4 1983009808
        %v1482 = vunpack.c.0.s8 %v1481
        %v1483 = vlaneseq
        %v1484 = vshrl.u32 %v1483, 7
        %v1485 = vsub.s32 %v1482, %v1484
        %v1486 = vrot.slane %v1479, %v1485
        %v1487 = vcombine.low %v1458, %v1462
        %v1489 = vunpack.c.l.s4 1983009808
        %v1490 = vunpack.c.0.s8 %v1489
        %v1491 = vlaneseq
        %v1492 = vshrl.u32 %v1491, 7
        %v1493 = vsub.s32 %v1490, %v1492
        %v1494 = vrot.slane %v1487, %v1493
        %1495 = vrot.lane.b32.xlu0 %v1470, 8
        %v1496 = vpop.permute.xlu0 %1495
        %1497 = vrot.lane.b32.xlu0 %v1478, 8
        %v1498 = vpop.permute.xlu0 %1497
        %1499 = vrot.lane.b32.xlu0 %v1486, 8
        %v1500 = vpop.permute.xlu0 %1499
        %1501 = vrot.lane.b32.xlu0 %v1494, 8
        %v1502 = vpop.permute.xlu0 %1501
        %vm1507 = vcmask 93248
        %1508 = vst.msk [vmem:[#allocation3] sm:$0xf] %vm1507, %v1496
        %1509 = vst.msk [vmem:[#allocation3 + $0x4] sm:$0xf] %vm1507, %v1498
        %1510 = vst.msk [vmem:[#allocation3 + $0x8] sm:$0xf] %vm1507, %v1500
        %1511 = vst.msk [vmem:[#allocation3 + $0xc] sm:$0xf] %vm1507, %v1502
        %s1512 = sadd.s32 1, %s1036
        %s1513 = smul.addr %s1512, 4
        %s1514 = scalar_lea.vmem [#allocation2], %s1513
        %v1515 = vld [vmem:[%s1514] sm:$0x3]
        %v1516 = vld [vmem:[%s1514 + $0x4] sm:$0x3]
        %v1517 = vld [vmem:[%s1514 + $0x8] sm:$0x3]
        %v1518 = vld [vmem:[%s1514 + $0xc] sm:$0x3]
        %v1519 = vld [vmem:[%s1514 + $0x10] sm:$0x3]
        %v1520 = vld [vmem:[%s1514 + $0x14] sm:$0x3]
        %v1521 = vld [vmem:[%s1514 + $0x18] sm:$0x3]
        %v1522 = vld [vmem:[%s1514 + $0x1c] sm:$0x3]
        %v1531 = vcombine.low %v1515, %v1516
        %v1533 = vunpack.c.l.s4 1983009808
        %v1534 = vunpack.c.0.s8 %v1533
        %v1535 = vlaneseq
        %v1536 = vshrl.u32 %v1535, 7
        %v1537 = vsub.s32 %v1534, %v1536
        %v1538 = vrot.slane %v1531, %v1537
        %v1539 = vcombine.low %v1517, %v1518
        %v1541 = vunpack.c.l.s4 1983009808
        %v1542 = vunpack.c.0.s8 %v1541
        %v1543 = vlaneseq
        %v1544 = vshrl.u32 %v1543, 7
        %v1545 = vsub.s32 %v1542, %v1544
        %v1546 = vrot.slane %v1539, %v1545
        %v1547 = vcombine.low %v1519, %v1520
        %v1549 = vunpack.c.l.s4 1983009808
        %v1550 = vunpack.c.0.s8 %v1549
        %v1551 = vlaneseq
        %v1552 = vshrl.u32 %v1551, 7
        %v1553 = vsub.s32 %v1550, %v1552
        %v1554 = vrot.slane %v1547, %v1553
        %v1555 = vcombine.low %v1521, %v1522
        %v1557 = vunpack.c.l.s4 1983009808
        %v1558 = vunpack.c.0.s8 %v1557
        %v1559 = vlaneseq
        %v1560 = vshrl.u32 %v1559, 7
        %v1561 = vsub.s32 %v1558, %v1560
        %v1562 = vrot.slane %v1555, %v1561
        %1563 = vrot.lane.b32.xlu0 %v1538, 12
        %v1564 = vpop.permute.xlu0 %1563
        %1565 = vrot.lane.b32.xlu0 %v1546, 12
        %v1566 = vpop.permute.xlu0 %1565
        %1567 = vrot.lane.b32.xlu0 %v1554, 12
        %v1568 = vpop.permute.xlu0 %1567
        %1569 = vrot.lane.b32.xlu0 %v1562, 12
        %v1570 = vpop.permute.xlu0 %1569
        %vm1575 = vcmask 126048
        %1576 = vst.msk [vmem:[#allocation3] sm:$0xf] %vm1575, %v1564
        %1577 = vst.msk [vmem:[#allocation3 + $0x4] sm:$0xf] %vm1575, %v1566
        %1578 = vst.msk [vmem:[#allocation3 + $0x8] sm:$0xf] %vm1575, %v1568
        %1579 = vst.msk [vmem:[#allocation3 + $0xc] sm:$0xf] %vm1575, %v1570
        %v1580 = vld [vmem:[%s1514] sm:$0x7]
        %v1581 = vld [vmem:[%s1514 + $0x4] sm:$0x7]
        %v1582 = vld [vmem:[%s1514 + $0x8] sm:$0x7]
        %v1583 = vld [vmem:[%s1514 + $0xc] sm:$0x7]
        %v1584 = vld [vmem:[%s1514 + $0x10] sm:$0x7]
        %v1585 = vld [vmem:[%s1514 + $0x14] sm:$0x7]
        %v1586 = vld [vmem:[%s1514 + $0x18] sm:$0x7]
        %v1587 = vld [vmem:[%s1514 + $0x1c] sm:$0x7]
        %v1597 = vunpack.c.l.s4 1983009808
        %v1598 = vunpack.c.0.s8 %v1597
        %v1599 = vlaneseq
        %v1600 = vshrl.u32 %v1599, 7
        %v1601 = vsub.s32 %v1598, %v1600
        %v1602 = vrot.slane %v1580, %v1601
        %v1603 = vcombine.high %v1602, %v1602
        %v1605 = vunpack.c.l.s4 1983009808
        %v1606 = vunpack.c.0.s8 %v1605
        %v1607 = vlaneseq
        %v1608 = vshrl.u32 %v1607, 7
        %v1609 = vsub.s32 %v1606, %v1608
        %v1610 = vrot.slane %v1581, %v1609
        %v1611 = vcombine.high %v1610, %v1610
        %v1613 = vunpack.c.l.s4 1983009808
        %v1614 = vunpack.c.0.s8 %v1613
        %v1615 = vlaneseq
        %v1616 = vshrl.u32 %v1615, 7
        %v1617 = vsub.s32 %v1614, %v1616
        %v1618 = vrot.slane %v1582, %v1617
        %v1619 = vcombine.high %v1618, %v1618
        %v1621 = vunpack.c.l.s4 1983009808
        %v1622 = vunpack.c.0.s8 %v1621
        %v1623 = vlaneseq
        %v1624 = vshrl.u32 %v1623, 7
        %v1625 = vsub.s32 %v1622, %v1624
        %v1626 = vrot.slane %v1583, %v1625
        %v1627 = vcombine.high %v1626, %v1626
        %v1629 = vunpack.c.l.s4 1983009808
        %v1630 = vunpack.c.0.s8 %v1629
        %v1631 = vlaneseq
        %v1632 = vshrl.u32 %v1631, 7
        %v1633 = vsub.s32 %v1630, %v1632
        %v1634 = vrot.slane %v1584, %v1633
        %v1635 = vcombine.high %v1634, %v1634
        %v1637 = vunpack.c.l.s4 1983009808
        %v1638 = vunpack.c.0.s8 %v1637
        %v1639 = vlaneseq
        %v1640 = vshrl.u32 %v1639, 7
        %v1641 = vsub.s32 %v1638, %v1640
        %v1642 = vrot.slane %v1585, %v1641
        %v1643 = vcombine.high %v1642, %v1642
        %v1645 = vunpack.c.l.s4 1983009808
        %v1646 = vunpack.c.0.s8 %v1645
        %v1647 = vlaneseq
        %v1648 = vshrl.u32 %v1647, 7
        %v1649 = vsub.s32 %v1646, %v1648
        %v1650 = vrot.slane %v1586, %v1649
        %v1651 = vcombine.high %v1650, %v1650
        %v1653 = vunpack.c.l.s4 1983009808
        %v1654 = vunpack.c.0.s8 %v1653
        %v1655 = vlaneseq
        %v1656 = vshrl.u32 %v1655, 7
        %v1657 = vsub.s32 %v1654, %v1656
        %v1658 = vrot.slane %v1587, %v1657
        %v1659 = vcombine.high %v1658, %v1658
        %v1661 = vshrl.u32 %v1602, 16
        %v1663 = vrot.slane %v1661, 6
        %v1664 = vshll.u32 %v1602, 16
        %v1666 = vrot.slane %v1664, 7
        %v1667 = vor.u32 %v1663, %v1666
        %v1668 = vrot.slane %v1667, 2
        %v1670 = vshll.u32 %v1603, 16
        %v1672 = vrot.slane %v1670, 7
        %v1673 = vsel %vm1182, %v1668, %v1672
        %v1675 = vshrl.u32 %v1610, 16
        %v1677 = vrot.slane %v1675, 6
        %v1678 = vshll.u32 %v1610, 16
        %v1680 = vrot.slane %v1678, 7
        %v1681 = vor.u32 %v1677, %v1680
        %v1682 = vrot.slane %v1681, 2
        %v1684 = vshll.u32 %v1611, 16
        %v1686 = vrot.slane %v1684, 7
        %v1687 = vsel %vm1182, %v1682, %v1686
        %v1689 = vshrl.u32 %v1618, 16
        %v1691 = vrot.slane %v1689, 6
        %v1692 = vshll.u32 %v1618, 16
        %v1694 = vrot.slane %v1692, 7
        %v1695 = vor.u32 %v1691, %v1694
        %v1696 = vrot.slane %v1695, 2
        %v1698 = vshll.u32 %v1619, 16
        %v1700 = vrot.slane %v1698, 7
        %v1701 = vsel %vm1182, %v1696, %v1700
        %v1703 = vshrl.u32 %v1626, 16
        %v1705 = vrot.slane %v1703, 6
        %v1706 = vshll.u32 %v1626, 16
        %v1708 = vrot.slane %v1706, 7
        %v1709 = vor.u32 %v1705, %v1708
        %v1710 = vrot.slane %v1709, 2
        %v1712 = vshll.u32 %v1627, 16
        %v1714 = vrot.slane %v1712, 7
        %v1715 = vsel %vm1182, %v1710, %v1714
        %v1717 = vshrl.u32 %v1634, 16
        %v1719 = vrot.slane %v1717, 6
        %v1720 = vshll.u32 %v1634, 16
        %v1722 = vrot.slane %v1720, 7
        %v1723 = vor.u32 %v1719, %v1722
        %v1724 = vrot.slane %v1723, 2
        %v1726 = vshll.u32 %v1635, 16
        %v1728 = vrot.slane %v1726, 7
        %v1729 = vsel %vm1182, %v1724, %v1728
        %v1731 = vshrl.u32 %v1642, 16
        %v1733 = vrot.slane %v1731, 6
        %v1734 = vshll.u32 %v1642, 16
        %v1736 = vrot.slane %v1734, 7
        %v1737 = vor.u32 %v1733, %v1736
        %v1738 = vrot.slane %v1737, 2
        %v1740 = vshll.u32 %v1643, 16
        %v1742 = vrot.slane %v1740, 7
        %v1743 = vsel %vm1182, %v1738, %v1742
        %v1745 = vshrl.u32 %v1650, 16
        %v1747 = vrot.slane %v1745, 6
        %v1748 = vshll.u32 %v1650, 16
        %v1750 = vrot.slane %v1748, 7
        %v1751 = vor.u32 %v1747, %v1750
        %v1752 = vrot.slane %v1751, 2
        %v1754 = vshll.u32 %v1651, 16
        %v1756 = vrot.slane %v1754, 7
        %v1757 = vsel %vm1182, %v1752, %v1756
        %v1759 = vshrl.u32 %v1658, 16
        %v1761 = vrot.slane %v1759, 6
        %v1762 = vshll.u32 %v1658, 16
        %v1764 = vrot.slane %v1762, 7
        %v1765 = vor.u32 %v1761, %v1764
        %v1766 = vrot.slane %v1765, 2
        %v1768 = vshll.u32 %v1659, 16
        %v1770 = vrot.slane %v1768, 7
        %v1771 = vsel %vm1182, %v1766, %v1770
        %v1772 = vcombine.low %v1673, %v1687
        %v1774 = vunpack.c.l.s4 1983009808
        %v1775 = vunpack.c.0.s8 %v1774
        %v1776 = vlaneseq
        %v1777 = vshrl.u32 %v1776, 7
        %v1778 = vsub.s32 %v1775, %v1777
        %v1779 = vrot.slane %v1772, %v1778
        %v1780 = vcombine.low %v1701, %v1715
        %v1782 = vunpack.c.l.s4 1983009808
        %v1783 = vunpack.c.0.s8 %v1782
        %v1784 = vlaneseq
        %v1785 = vshrl.u32 %v1784, 7
        %v1786 = vsub.s32 %v1783, %v1785
        %v1787 = vrot.slane %v1780, %v1786
        %v1788 = vcombine.low %v1729, %v1743
        %v1790 = vunpack.c.l.s4 1983009808
        %v1791 = vunpack.c.0.s8 %v1790
        %v1792 = vlaneseq
        %v1793 = vshrl.u32 %v1792, 7
        %v1794 = vsub.s32 %v1791, %v1793
        %v1795 = vrot.slane %v1788, %v1794
        %v1796 = vcombine.low %v1757, %v1771
        %v1798 = vunpack.c.l.s4 1983009808
        %v1799 = vunpack.c.0.s8 %v1798
        %v1800 = vlaneseq
        %v1801 = vshrl.u32 %v1800, 7
        %v1802 = vsub.s32 %v1799, %v1801
        %v1803 = vrot.slane %v1796, %v1802
        %1804 = vrot.lane.b32.xlu0 %v1779, 16
        %v1805 = vpop.permute.xlu0 %1804
        %1806 = vrot.lane.b32.xlu0 %v1787, 16
        %v1807 = vpop.permute.xlu0 %1806
        %1808 = vrot.lane.b32.xlu0 %v1795, 16
        %v1809 = vpop.permute.xlu0 %1808
        %1810 = vrot.lane.b32.xlu0 %v1803, 16
        %v1811 = vpop.permute.xlu0 %1810
        %vm1816 = vcmask 158848
        %1817 = vst.msk [vmem:[#allocation3] sm:$0xf] %vm1816, %v1805
        %1818 = vst.msk [vmem:[#allocation3 + $0x4] sm:$0xf] %vm1816, %v1807
        %1819 = vst.msk [vmem:[#allocation3 + $0x8] sm:$0xf] %vm1816, %v1809
        %1820 = vst.msk [vmem:[#allocation3 + $0xc] sm:$0xf] %vm1816, %v1811
        %v1821 = vld [vmem:[%s1514] sm:$0x6]
        %v1822 = vld [vmem:[%s1514 + $0x4] sm:$0x6]
        %v1823 = vld [vmem:[%s1514 + $0x8] sm:$0x6]
        %v1824 = vld [vmem:[%s1514 + $0xc] sm:$0x6]
        %v1825 = vld [vmem:[%s1514 + $0x10] sm:$0x6]
        %v1826 = vld [vmem:[%s1514 + $0x14] sm:$0x6]
        %v1827 = vld [vmem:[%s1514 + $0x18] sm:$0x6]
        %v1828 = vld [vmem:[%s1514 + $0x1c] sm:$0x6]
        %v1838 = vunpack.c.l.s4 1983009808
        %v1839 = vunpack.c.0.s8 %v1838
        %v1840 = vlaneseq
        %v1841 = vshrl.u32 %v1840, 7
        %v1842 = vsub.s32 %v1839, %v1841
        %v1843 = vrot.slane %v1821, %v1842
        %v1844 = vcombine.high %v1843, %v1843
        %v1846 = vunpack.c.l.s4 1983009808
        %v1847 = vunpack.c.0.s8 %v1846
        %v1848 = vlaneseq
        %v1849 = vshrl.u32 %v1848, 7
        %v1850 = vsub.s32 %v1847, %v1849
        %v1851 = vrot.slane %v1822, %v1850
        %v1852 = vcombine.high %v1851, %v1851
        %v1854 = vunpack.c.l.s4 1983009808
        %v1855 = vunpack.c.0.s8 %v1854
        %v1856 = vlaneseq
        %v1857 = vshrl.u32 %v1856, 7
        %v1858 = vsub.s32 %v1855, %v1857
        %v1859 = vrot.slane %v1823, %v1858
        %v1860 = vcombine.high %v1859, %v1859
        %v1862 = vunpack.c.l.s4 1983009808
        %v1863 = vunpack.c.0.s8 %v1862
        %v1864 = vlaneseq
        %v1865 = vshrl.u32 %v1864, 7
        %v1866 = vsub.s32 %v1863, %v1865
        %v1867 = vrot.slane %v1824, %v1866
        %v1868 = vcombine.high %v1867, %v1867
        %v1870 = vunpack.c.l.s4 1983009808
        %v1871 = vunpack.c.0.s8 %v1870
        %v1872 = vlaneseq
        %v1873 = vshrl.u32 %v1872, 7
        %v1874 = vsub.s32 %v1871, %v1873
        %v1875 = vrot.slane %v1825, %v1874
        %v1876 = vcombine.high %v1875, %v1875
        %v1878 = vunpack.c.l.s4 1983009808
        %v1879 = vunpack.c.0.s8 %v1878
        %v1880 = vlaneseq
        %v1881 = vshrl.u32 %v1880, 7
        %v1882 = vsub.s32 %v1879, %v1881
        %v1883 = vrot.slane %v1826, %v1882
        %v1884 = vcombine.high %v1883, %v1883
        %v1886 = vunpack.c.l.s4 1983009808
        %v1887 = vunpack.c.0.s8 %v1886
        %v1888 = vlaneseq
        %v1889 = vshrl.u32 %v1888, 7
        %v1890 = vsub.s32 %v1887, %v1889
        %v1891 = vrot.slane %v1827, %v1890
        %v1892 = vcombine.high %v1891, %v1891
        %v1894 = vunpack.c.l.s4 1983009808
        %v1895 = vunpack.c.0.s8 %v1894
        %v1896 = vlaneseq
        %v1897 = vshrl.u32 %v1896, 7
        %v1898 = vsub.s32 %v1895, %v1897
        %v1899 = vrot.slane %v1828, %v1898
        %v1900 = vcombine.high %v1899, %v1899
        %v1901 = vrot.slane %v1843, 7
        %v1902 = vrot.slane %v1901, 2
        %v1903 = vrot.slane %v1844, 7
        %v1904 = vsel %vm1430, %v1902, %v1903
        %v1905 = vrot.slane %v1851, 7
        %v1906 = vrot.slane %v1905, 2
        %v1907 = vrot.slane %v1852, 7
        %v1908 = vsel %vm1430, %v1906, %v1907
        %v1909 = vrot.slane %v1859, 7
        %v1910 = vrot.slane %v1909, 2
        %v1911 = vrot.slane %v1860, 7
        %v1912 = vsel %vm1430, %v1910, %v1911
        %v1913 = vrot.slane %v1867, 7
        %v1914 = vrot.slane %v1913, 2
        %v1915 = vrot.slane %v1868, 7
        %v1916 = vsel %vm1430, %v1914, %v1915
        %v1917 = vrot.slane %v1875, 7
        %v1918 = vrot.slane %v1917, 2
        %v1919 = vrot.slane %v1876, 7
        %v1920 = vsel %vm1430, %v1918, %v1919
        %v1921 = vrot.slane %v1883, 7
        %v1922 = vrot.slane %v1921, 2
        %v1923 = vrot.slane %v1884, 7
        %v1924 = vsel %vm1430, %v1922, %v1923
        %v1925 = vrot.slane %v1891, 7
        %v1926 = vrot.slane %v1925, 2
        %v1927 = vrot.slane %v1892, 7
        %v1928 = vsel %vm1430, %v1926, %v1927
        %v1929 = vrot.slane %v1899, 7
        %v1930 = vrot.slane %v1929, 2
        %v1931 = vrot.slane %v1900, 7
        %v1932 = vsel %vm1430, %v1930, %v1931
        %v1933 = vcombine.low %v1904, %v1908
        %v1935 = vunpack.c.l.s4 1983009808
        %v1936 = vunpack.c.0.s8 %v1935
        %v1937 = vlaneseq
        %v1938 = vshrl.u32 %v1937, 7
        %v1939 = vsub.s32 %v1936, %v1938
        %v1940 = vrot.slane %v1933, %v1939
        %v1941 = vcombine.low %v1912, %v1916
        %v1943 = vunpack.c.l.s4 1983009808
        %v1944 = vunpack.c.0.s8 %v1943
        %v1945 = vlaneseq
        %v1946 = vshrl.u32 %v1945, 7
        %v1947 = vsub.s32 %v1944, %v1946
        %v1948 = vrot.slane %v1941, %v1947
        %v1949 = vcombine.low %v1920, %v1924
        %v1951 = vunpack.c.l.s4 1983009808
        %v1952 = vunpack.c.0.s8 %v1951
        %v1953 = vlaneseq
        %v1954 = vshrl.u32 %v1953, 7
        %v1955 = vsub.s32 %v1952, %v1954
        %v1956 = vrot.slane %v1949, %v1955
        %v1957 = vcombine.low %v1928, %v1932
        %v1959 = vunpack.c.l.s4 1983009808
        %v1960 = vunpack.c.0.s8 %v1959
        %v1961 = vlaneseq
        %v1962 = vshrl.u32 %v1961, 7
        %v1963 = vsub.s32 %v1960, %v1962
        %v1964 = vrot.slane %v1957, %v1963
        %1965 = vrot.lane.b32.xlu0 %v1940, 20
        %v1966 = vpop.permute.xlu0 %1965
        %1967 = vrot.lane.b32.xlu0 %v1948, 20
        %v1968 = vpop.permute.xlu0 %1967
        %1969 = vrot.lane.b32.xlu0 %v1956, 20
        %v1970 = vpop.permute.xlu0 %1969
        %1971 = vrot.lane.b32.xlu0 %v1964, 20
        %v1972 = vpop.permute.xlu0 %1971
        %vm1977 = vcmask 191648
        %1978 = vst.msk [vmem:[#allocation3] sm:$0xf] %vm1977, %v1966
        %1979 = vst.msk [vmem:[#allocation3 + $0x4] sm:$0xf] %vm1977, %v1968
        %1980 = vst.msk [vmem:[#allocation3 + $0x8] sm:$0xf] %vm1977, %v1970
        %1981 = vst.msk [vmem:[#allocation3 + $0xc] sm:$0xf] %vm1977, %v1972
        %s1982 = sadd.s32 2, %s1036
        %s1983 = smul.addr %s1982, 4
        %s1984 = scalar_lea.vmem [#allocation2], %s1983
        %v1985 = vld [vmem:[%s1984] sm:$0x3]
        %v1986 = vld [vmem:[%s1984 + $0x4] sm:$0x3]
        %v1987 = vld [vmem:[%s1984 + $0x8] sm:$0x3]
        %v1988 = vld [vmem:[%s1984 + $0xc] sm:$0x3]
        %v1989 = vld [vmem:[%s1984 + $0x10] sm:$0x3]
        %v1990 = vld [vmem:[%s1984 + $0x14] sm:$0x3]
        %v1991 = vld [vmem:[%s1984 + $0x18] sm:$0x3]
        %v1992 = vld [vmem:[%s1984 + $0x1c] sm:$0x3]
        %v2001 = vcombine.low %v1985, %v1986
        %v2003 = vunpack.c.l.s4 1983009808
        %v2004 = vunpack.c.0.s8 %v2003
        %v2005 = vlaneseq
        %v2006 = vshrl.u32 %v2005, 7
        %v2007 = vsub.s32 %v2004, %v2006
        %v2008 = vrot.slane %v2001, %v2007
        %v2009 = vcombine.low %v1987, %v1988
        %v2011 = vunpack.c.l.s4 1983009808
        %v2012 = vunpack.c.0.s8 %v2011
        %v2013 = vlaneseq
        %v2014 = vshrl.u32 %v2013, 7
        %v2015 = vsub.s32 %v2012, %v2014
        %v2016 = vrot.slane %v2009, %v2015
        %v2017 = vcombine.low %v1989, %v1990
        %v2019 = vunpack.c.l.s4 1983009808
        %v2020 = vunpack.c.0.s8 %v2019
        %v2021 = vlaneseq
        %v2022 = vshrl.u32 %v2021, 7
        %v2023 = vsub.s32 %v2020, %v2022
        %v2024 = vrot.slane %v2017, %v2023
        %v2025 = vcombine.low %v1991, %v1992
        %v2027 = vunpack.c.l.s4 1983009808
        %v2028 = vunpack.c.0.s8 %v2027
        %v2029 = vlaneseq
        %v2030 = vshrl.u32 %v2029, 7
        %v2031 = vsub.s32 %v2028, %v2030
        %v2032 = vrot.slane %v2025, %v2031
        %2033 = vrot.lane.b32.xlu0 %v2008, 24
        %v2034 = vpop.permute.xlu0 %2033
        %2035 = vrot.lane.b32.xlu0 %v2016, 24
        %v2036 = vpop.permute.xlu0 %2035
        %2037 = vrot.lane.b32.xlu0 %v2024, 24
        %v2038 = vpop.permute.xlu0 %2037
        %2039 = vrot.lane.b32.xlu0 %v2032, 24
        %v2040 = vpop.permute.xlu0 %2039
        %vm2045 = vcmask 224448
        %2046 = vst.msk [vmem:[#allocation3] sm:$0xf] %vm2045, %v2034
        %2047 = vst.msk [vmem:[#allocation3 + $0x4] sm:$0xf] %vm2045, %v2036
        %2048 = vst.msk [vmem:[#allocation3 + $0x8] sm:$0xf] %vm2045, %v2038
        %2049 = vst.msk [vmem:[#allocation3 + $0xc] sm:$0xf] %vm2045, %v2040
        %v2050 = vld [vmem:[%s1984] sm:$0x7]
        %v2051 = vld [vmem:[%s1984 + $0x4] sm:$0x7]
        %v2052 = vld [vmem:[%s1984 + $0x8] sm:$0x7]
        %v2053 = vld [vmem:[%s1984 + $0xc] sm:$0x7]
        %v2054 = vld [vmem:[%s1984 + $0x10] sm:$0x7]
        %v2055 = vld [vmem:[%s1984 + $0x14] sm:$0x7]
        %v2056 = vld [vmem:[%s1984 + $0x18] sm:$0x7]
        %v2057 = vld [vmem:[%s1984 + $0x1c] sm:$0x7]
        %v2067 = vunpack.c.l.s4 1983009808
        %v2068 = vunpack.c.0.s8 %v2067
        %v2069 = vlaneseq
        %v2070 = vshrl.u32 %v2069, 7
        %v2071 = vsub.s32 %v2068, %v2070
        %v2072 = vrot.slane %v2050, %v2071
        %v2073 = vcombine.high %v2072, %v2072
        %v2075 = vunpack.c.l.s4 1983009808
        %v2076 = vunpack.c.0.s8 %v2075
        %v2077 = vlaneseq
        %v2078 = vshrl.u32 %v2077, 7
        %v2079 = vsub.s32 %v2076, %v2078
        %v2080 = vrot.slane %v2051, %v2079
        %v2081 = vcombine.high %v2080, %v2080
        %v2083 = vunpack.c.l.s4 1983009808
        %v2084 = vunpack.c.0.s8 %v2083
        %v2085 = vlaneseq
        %v2086 = vshrl.u32 %v2085, 7
        %v2087 = vsub.s32 %v2084, %v2086
        %v2088 = vrot.slane %v2052, %v2087
        %v2089 = vcombine.high %v2088, %v2088
        %v2091 = vunpack.c.l.s4 1983009808
        %v2092 = vunpack.c.0.s8 %v2091
        %v2093 = vlaneseq
        %v2094 = vshrl.u32 %v2093, 7
        %v2095 = vsub.s32 %v2092, %v2094
        %v2096 = vrot.slane %v2053, %v2095
        %v2097 = vcombine.high %v2096, %v2096
        %v2099 = vunpack.c.l.s4 1983009808
        %v2100 = vunpack.c.0.s8 %v2099
        %v2101 = vlaneseq
        %v2102 = vshrl.u32 %v2101, 7
        %v2103 = vsub.s32 %v2100, %v2102
        %v2104 = vrot.slane %v2054, %v2103
        %v2105 = vcombine.high %v2104, %v2104
        %v2107 = vunpack.c.l.s4 1983009808
        %v2108 = vunpack.c.0.s8 %v2107
        %v2109 = vlaneseq
        %v2110 = vshrl.u32 %v2109, 7
        %v2111 = vsub.s32 %v2108, %v2110
        %v2112 = vrot.slane %v2055, %v2111
        %v2113 = vcombine.high %v2112, %v2112
        %v2115 = vunpack.c.l.s4 1983009808
        %v2116 = vunpack.c.0.s8 %v2115
        %v2117 = vlaneseq
        %v2118 = vshrl.u32 %v2117, 7
        %v2119 = vsub.s32 %v2116, %v2118
        %v2120 = vrot.slane %v2056, %v2119
        %v2121 = vcombine.high %v2120, %v2120
        %v2123 = vunpack.c.l.s4 1983009808
        %v2124 = vunpack.c.0.s8 %v2123
        %v2125 = vlaneseq
        %v2126 = vshrl.u32 %v2125, 7
        %v2127 = vsub.s32 %v2124, %v2126
        %v2128 = vrot.slane %v2057, %v2127
        %v2129 = vcombine.high %v2128, %v2128
        %v2131 = vshrl.u32 %v2072, 16
        %v2133 = vrot.slane %v2131, 6
        %v2134 = vshll.u32 %v2072, 16
        %v2136 = vrot.slane %v2134, 7
        %v2137 = vor.u32 %v2133, %v2136
        %v2138 = vrot.slane %v2137, 2
        %v2140 = vshll.u32 %v2073, 16
        %v2142 = vrot.slane %v2140, 7
        %v2143 = vsel %vm1182, %v2138, %v2142
        %v2145 = vshrl.u32 %v2080, 16
        %v2147 = vrot.slane %v2145, 6
        %v2148 = vshll.u32 %v2080, 16
        %v2150 = vrot.slane %v2148, 7
        %v2151 = vor.u32 %v2147, %v2150
        %v2152 = vrot.slane %v2151, 2
        %v2154 = vshll.u32 %v2081, 16
        %v2156 = vrot.slane %v2154, 7
        %v2157 = vsel %vm1182, %v2152, %v2156
        %v2159 = vshrl.u32 %v2088, 16
        %v2161 = vrot.slane %v2159, 6
        %v2162 = vshll.u32 %v2088, 16
        %v2164 = vrot.slane %v2162, 7
        %v2165 = vor.u32 %v2161, %v2164
        %v2166 = vrot.slane %v2165, 2
        %v2168 = vshll.u32 %v2089, 16
        %v2170 = vrot.slane %v2168, 7
        %v2171 = vsel %vm1182, %v2166, %v2170
        %v2173 = vshrl.u32 %v2096, 16
        %v2175 = vrot.slane %v2173, 6
        %v2176 = vshll.u32 %v2096, 16
        %v2178 = vrot.slane %v2176, 7
        %v2179 = vor.u32 %v2175, %v2178
        %v2180 = vrot.slane %v2179, 2
        %v2182 = vshll.u32 %v2097, 16
        %v2184 = vrot.slane %v2182, 7
        %v2185 = vsel %vm1182, %v2180, %v2184
        %v2187 = vshrl.u32 %v2104, 16
        %v2189 = vrot.slane %v2187, 6
        %v2190 = vshll.u32 %v2104, 16
        %v2192 = vrot.slane %v2190, 7
        %v2193 = vor.u32 %v2189, %v2192
        %v2194 = vrot.slane %v2193, 2
        %v2196 = vshll.u32 %v2105, 16
        %v2198 = vrot.slane %v2196, 7
        %v2199 = vsel %vm1182, %v2194, %v2198
        %v2201 = vshrl.u32 %v2112, 16
        %v2203 = vrot.slane %v2201, 6
        %v2204 = vshll.u32 %v2112, 16
        %v2206 = vrot.slane %v2204, 7
        %v2207 = vor.u32 %v2203, %v2206
        %v2208 = vrot.slane %v2207, 2
        %v2210 = vshll.u32 %v2113, 16
        %v2212 = vrot.slane %v2210, 7
        %v2213 = vsel %vm1182, %v2208, %v2212
        %v2215 = vshrl.u32 %v2120, 16
        %v2217 = vrot.slane %v2215, 6
        %v2218 = vshll.u32 %v2120, 16
        %v2220 = vrot.slane %v2218, 7
        %v2221 = vor.u32 %v2217, %v2220
        %v2222 = vrot.slane %v2221, 2
        %v2224 = vshll.u32 %v2121, 16
        %v2226 = vrot.slane %v2224, 7
        %v2227 = vsel %vm1182, %v2222, %v2226
        %v2229 = vshrl.u32 %v2128, 16
        %v2231 = vrot.slane %v2229, 6
        %v2232 = vshll.u32 %v2128, 16
        %v2234 = vrot.slane %v2232, 7
        %v2235 = vor.u32 %v2231, %v2234
        %v2236 = vrot.slane %v2235, 2
        %v2238 = vshll.u32 %v2129, 16
        %v2240 = vrot.slane %v2238, 7
        %v2241 = vsel %vm1182, %v2236, %v2240
        %v2242 = vcombine.low %v2143, %v2157
        %v2244 = vunpack.c.l.s4 1983009808
        %v2245 = vunpack.c.0.s8 %v2244
        %v2246 = vlaneseq
        %v2247 = vshrl.u32 %v2246, 7
        %v2248 = vsub.s32 %v2245, %v2247
        %v2249 = vrot.slane %v2242, %v2248
        %v2250 = vcombine.low %v2171, %v2185
        %v2252 = vunpack.c.l.s4 1983009808
        %v2253 = vunpack.c.0.s8 %v2252
        %v2254 = vlaneseq
        %v2255 = vshrl.u32 %v2254, 7
        %v2256 = vsub.s32 %v2253, %v2255
        %v2257 = vrot.slane %v2250, %v2256
        %v2258 = vcombine.low %v2199, %v2213
        %v2260 = vunpack.c.l.s4 1983009808
        %v2261 = vunpack.c.0.s8 %v2260
        %v2262 = vlaneseq
        %v2263 = vshrl.u32 %v2262, 7
        %v2264 = vsub.s32 %v2261, %v2263
        %v2265 = vrot.slane %v2258, %v2264
        %v2266 = vcombine.low %v2227, %v2241
        %v2268 = vunpack.c.l.s4 1983009808
        %v2269 = vunpack.c.0.s8 %v2268
        %v2270 = vlaneseq
        %v2271 = vshrl.u32 %v2270, 7
        %v2272 = vsub.s32 %v2269, %v2271
        %v2273 = vrot.slane %v2266, %v2272
        %2274 = vrot.lane.b32.xlu0 %v2249, 28
        %v2275 = vpop.permute.xlu0 %2274
        %2276 = vrot.lane.b32.xlu0 %v2257, 28
        %v2277 = vpop.permute.xlu0 %2276
        %2278 = vrot.lane.b32.xlu0 %v2265, 28
        %v2279 = vpop.permute.xlu0 %2278
        %2280 = vrot.lane.b32.xlu0 %v2273, 28
        %v2281 = vpop.permute.xlu0 %2280
        %vm2286 = vcmask 257248
        %2287 = vst.msk [vmem:[#allocation3] sm:$0xf] %vm2286, %v2275
        %2288 = vst.msk [vmem:[#allocation3 + $0x4] sm:$0xf] %vm2286, %v2277
        %2289 = vst.msk [vmem:[#allocation3 + $0x8] sm:$0xf] %vm2286, %v2279
        %2290 = vst.msk [vmem:[#allocation3 + $0xc] sm:$0xf] %vm2286, %v2281
        %v2291 = vld [vmem:[%s1984] sm:$0x6]
        %v2292 = vld [vmem:[%s1984 + $0x4] sm:$0x6]
        %v2293 = vld [vmem:[%s1984 + $0x8] sm:$0x6]
        %v2294 = vld [vmem:[%s1984 + $0xc] sm:$0x6]
        %v2295 = vld [vmem:[%s1984 + $0x10] sm:$0x6]
        %v2296 = vld [vmem:[%s1984 + $0x14] sm:$0x6]
        %v2297 = vld [vmem:[%s1984 + $0x18] sm:$0x6]
        %v2298 = vld [vmem:[%s1984 + $0x1c] sm:$0x6]
        %v2308 = vunpack.c.l.s4 1983009808
        %v2309 = vunpack.c.0.s8 %v2308
        %v2310 = vlaneseq
        %v2311 = vshrl.u32 %v2310, 7
        %v2312 = vsub.s32 %v2309, %v2311
        %v2313 = vrot.slane %v2291, %v2312
        %v2314 = vcombine.high %v2313, %v2313
        %v2316 = vunpack.c.l.s4 1983009808
        %v2317 = vunpack.c.0.s8 %v2316
        %v2318 = vlaneseq
        %v2319 = vshrl.u32 %v2318, 7
        %v2320 = vsub.s32 %v2317, %v2319
        %v2321 = vrot.slane %v2292, %v2320
        %v2322 = vcombine.high %v2321, %v2321
        %v2324 = vunpack.c.l.s4 1983009808
        %v2325 = vunpack.c.0.s8 %v2324
        %v2326 = vlaneseq
        %v2327 = vshrl.u32 %v2326, 7
        %v2328 = vsub.s32 %v2325, %v2327
        %v2329 = vrot.slane %v2293, %v2328
        %v2330 = vcombine.high %v2329, %v2329
        %v2332 = vunpack.c.l.s4 1983009808
        %v2333 = vunpack.c.0.s8 %v2332
        %v2334 = vlaneseq
        %v2335 = vshrl.u32 %v2334, 7
        %v2336 = vsub.s32 %v2333, %v2335
        %v2337 = vrot.slane %v2294, %v2336
        %v2338 = vcombine.high %v2337, %v2337
        %v2340 = vunpack.c.l.s4 1983009808
        %v2341 = vunpack.c.0.s8 %v2340
        %v2342 = vlaneseq
        %v2343 = vshrl.u32 %v2342, 7
        %v2344 = vsub.s32 %v2341, %v2343
        %v2345 = vrot.slane %v2295, %v2344
        %v2346 = vcombine.high %v2345, %v2345
        %v2348 = vunpack.c.l.s4 1983009808
        %v2349 = vunpack.c.0.s8 %v2348
        %v2350 = vlaneseq
        %v2351 = vshrl.u32 %v2350, 7
        %v2352 = vsub.s32 %v2349, %v2351
        %v2353 = vrot.slane %v2296, %v2352
        %v2354 = vcombine.high %v2353, %v2353
        %v2356 = vunpack.c.l.s4 1983009808
        %v2357 = vunpack.c.0.s8 %v2356
        %v2358 = vlaneseq
        %v2359 = vshrl.u32 %v2358, 7
        %v2360 = vsub.s32 %v2357, %v2359
        %v2361 = vrot.slane %v2297, %v2360
        %v2362 = vcombine.high %v2361, %v2361
        %v2364 = vunpack.c.l.s4 1983009808
        %v2365 = vunpack.c.0.s8 %v2364
        %v2366 = vlaneseq
        %v2367 = vshrl.u32 %v2366, 7
        %v2368 = vsub.s32 %v2365, %v2367
        %v2369 = vrot.slane %v2298, %v2368
        %v2370 = vcombine.high %v2369, %v2369
        %v2371 = vrot.slane %v2313, 7
        %v2372 = vrot.slane %v2371, 2
        %v2373 = vrot.slane %v2314, 7
        %v2374 = vsel %vm1430, %v2372, %v2373
        %v2375 = vrot.slane %v2321, 7
        %v2376 = vrot.slane %v2375, 2
        %v2377 = vrot.slane %v2322, 7
        %v2378 = vsel %vm1430, %v2376, %v2377
        %v2379 = vrot.slane %v2329, 7
        %v2380 = vrot.slane %v2379, 2
        %v2381 = vrot.slane %v2330, 7
        %v2382 = vsel %vm1430, %v2380, %v2381
        %v2383 = vrot.slane %v2337, 7
        %v2384 = vrot.slane %v2383, 2
        %v2385 = vrot.slane %v2338, 7
        %v2386 = vsel %vm1430, %v2384, %v2385
        %v2387 = vrot.slane %v2345, 7
        %v2388 = vrot.slane %v2387, 2
        %v2389 = vrot.slane %v2346, 7
        %v2390 = vsel %vm1430, %v2388, %v2389
        %v2391 = vrot.slane %v2353, 7
        %v2392 = vrot.slane %v2391, 2
        %v2393 = vrot.slane %v2354, 7
        %v2394 = vsel %vm1430, %v2392, %v2393
        %v2395 = vrot.slane %v2361, 7
        %v2396 = vrot.slane %v2395, 2
        %v2397 = vrot.slane %v2362, 7
        %v2398 = vsel %vm1430, %v2396, %v2397
        %v2399 = vrot.slane %v2369, 7
        %v2400 = vrot.slane %v2399, 2
        %v2401 = vrot.slane %v2370, 7
        %v2402 = vsel %vm1430, %v2400, %v2401
        %v2403 = vcombine.low %v2374, %v2378
        %v2405 = vunpack.c.l.s4 1983009808
        %v2406 = vunpack.c.0.s8 %v2405
        %v2407 = vlaneseq
        %v2408 = vshrl.u32 %v2407, 7
        %v2409 = vsub.s32 %v2406, %v2408
        %v2410 = vrot.slane %v2403, %v2409
        %v2411 = vcombine.low %v2382, %v2386
        %v2413 = vunpack.c.l.s4 1983009808
        %v2414 = vunpack.c.0.s8 %v2413
        %v2415 = vlaneseq
        %v2416 = vshrl.u32 %v2415, 7
        %v2417 = vsub.s32 %v2414, %v2416
        %v2418 = vrot.slane %v2411, %v2417
        %v2419 = vcombine.low %v2390, %v2394
        %v2421 = vunpack.c.l.s4 1983009808
        %v2422 = vunpack.c.0.s8 %v2421
        %v2423 = vlaneseq
        %v2424 = vshrl.u32 %v2423, 7
        %v2425 = vsub.s32 %v2422, %v2424
        %v2426 = vrot.slane %v2419, %v2425
        %v2427 = vcombine.low %v2398, %v2402
        %v2429 = vunpack.c.l.s4 1983009808
        %v2430 = vunpack.c.0.s8 %v2429
        %v2431 = vlaneseq
        %v2432 = vshrl.u32 %v2431, 7
        %v2433 = vsub.s32 %v2430, %v2432
        %v2434 = vrot.slane %v2427, %v2433
        %2435 = vrot.lane.b32.xlu0 %v2410, 32
        %v2436 = vpop.permute.xlu0 %2435
        %2437 = vrot.lane.b32.xlu0 %v2418, 32
        %v2438 = vpop.permute.xlu0 %2437
        %2439 = vrot.lane.b32.xlu0 %v2426, 32
        %v2440 = vpop.permute.xlu0 %2439
        %2441 = vrot.lane.b32.xlu0 %v2434, 32
        %v2442 = vpop.permute.xlu0 %2441
        %vm2447 = vcmask 290048
        %2448 = vst.msk [vmem:[#allocation3] sm:$0xf] %vm2447, %v2436
        %2449 = vst.msk [vmem:[#allocation3 + $0x4] sm:$0xf] %vm2447, %v2438
        %2450 = vst.msk [vmem:[#allocation3 + $0x8] sm:$0xf] %vm2447, %v2440
        %2451 = vst.msk [vmem:[#allocation3 + $0xc] sm:$0xf] %vm2447, %v2442
        %s2452 = sadd.s32 %s404, 3
        %p2453 = scmp.lt.s32.totalorder %s2452, 0
        %s2454 = ssub.s32 0, %s2452
        %s2455 = scalar_select %p2453, %s2454, %s2452
        %s2456 = sdiv.u32.pop %s2455, 3
        %s2457 = srem.u32.pop %s2455, 3
        %s2458 = ssub.s32 0, %s2457
        %s2459 = scalar_select %p2453, %s2458, %s2457
        %p2460 = scmp.ne.s32.totalorder %s2459, 0
        %p2461 = scmp.lt.s32.totalorder %s2459, 0
        %p2462 = pnand %p2461, %p2460
        %p2463 = pneg %p2462
        %s2464 = sadd.s32 %s2459, 3
        %s2465 = scalar_select %p2463, %s2464, %s2459
        %s2466 = smul.u32 %s2465, 10
        %s2467 = smul.addr %s2466, 4
        %s2468 = scalar_lea.vmem [#allocation2], %s2467
        %v2469 = vld [vmem:[%s2468] sm:$0x3]
        %v2470 = vld [vmem:[%s2468 + $0x4] sm:$0x3]
        %v2471 = vld [vmem:[%s2468 + $0x8] sm:$0x3]
        %v2472 = vld [vmem:[%s2468 + $0xc] sm:$0x3]
        %v2473 = vld [vmem:[%s2468 + $0x10] sm:$0x3]
        %v2474 = vld [vmem:[%s2468 + $0x14] sm:$0x3]
        %v2475 = vld [vmem:[%s2468 + $0x18] sm:$0x3]
        %v2476 = vld [vmem:[%s2468 + $0x1c] sm:$0x3]
        %v2485 = vcombine.low %v2469, %v2470
        %v2487 = vunpack.c.l.s4 1983009808
        %v2488 = vunpack.c.0.s8 %v2487
        %v2489 = vlaneseq
        %v2490 = vshrl.u32 %v2489, 7
        %v2491 = vsub.s32 %v2488, %v2490
        %v2492 = vrot.slane %v2485, %v2491
        %v2493 = vcombine.low %v2471, %v2472
        %v2495 = vunpack.c.l.s4 1983009808
        %v2496 = vunpack.c.0.s8 %v2495
        %v2497 = vlaneseq
        %v2498 = vshrl.u32 %v2497, 7
        %v2499 = vsub.s32 %v2496, %v2498
        %v2500 = vrot.slane %v2493, %v2499
        %v2501 = vcombine.low %v2473, %v2474
        %v2503 = vunpack.c.l.s4 1983009808
        %v2504 = vunpack.c.0.s8 %v2503
        %v2505 = vlaneseq
        %v2506 = vshrl.u32 %v2505, 7
        %v2507 = vsub.s32 %v2504, %v2506
        %v2508 = vrot.slane %v2501, %v2507
        %v2509 = vcombine.low %v2475, %v2476
        %v2511 = vunpack.c.l.s4 1983009808
        %v2512 = vunpack.c.0.s8 %v2511
        %v2513 = vlaneseq
        %v2514 = vshrl.u32 %v2513, 7
        %v2515 = vsub.s32 %v2512, %v2514
        %v2516 = vrot.slane %v2509, %v2515
        %2517 = vrot.lane.b32.xlu0 %v2492, 36
        %v2518 = vpop.permute.xlu0 %2517
        %2519 = vrot.lane.b32.xlu0 %v2500, 36
        %v2520 = vpop.permute.xlu0 %2519
        %2521 = vrot.lane.b32.xlu0 %v2508, 36
        %v2522 = vpop.permute.xlu0 %2521
        %2523 = vrot.lane.b32.xlu0 %v2516, 36
        %v2524 = vpop.permute.xlu0 %2523
        %vm2529 = vcmask 322848
        %2530 = vst.msk [vmem:[#allocation3] sm:$0xf] %vm2529, %v2518
        %2531 = vst.msk [vmem:[#allocation3 + $0x4] sm:$0xf] %vm2529, %v2520
        %2532 = vst.msk [vmem:[#allocation3 + $0x8] sm:$0xf] %vm2529, %v2522
        %2533 = vst.msk [vmem:[#allocation3 + $0xc] sm:$0xf] %vm2529, %v2524
        %v2534 = vld [vmem:[%s2468] sm:$0x7]
        %v2535 = vld [vmem:[%s2468 + $0x4] sm:$0x7]
        %v2536 = vld [vmem:[%s2468 + $0x8] sm:$0x7]
        %v2537 = vld [vmem:[%s2468 + $0xc] sm:$0x7]
        %v2538 = vld [vmem:[%s2468 + $0x10] sm:$0x7]
        %v2539 = vld [vmem:[%s2468 + $0x14] sm:$0x7]
        %v2540 = vld [vmem:[%s2468 + $0x18] sm:$0x7]
        %v2541 = vld [vmem:[%s2468 + $0x1c] sm:$0x7]
        %v2551 = vunpack.c.l.s4 1983009808
        %v2552 = vunpack.c.0.s8 %v2551
        %v2553 = vlaneseq
        %v2554 = vshrl.u32 %v2553, 7
        %v2555 = vsub.s32 %v2552, %v2554
        %v2556 = vrot.slane %v2534, %v2555
        %v2557 = vcombine.high %v2556, %v2556
        %v2559 = vunpack.c.l.s4 1983009808
        %v2560 = vunpack.c.0.s8 %v2559
        %v2561 = vlaneseq
        %v2562 = vshrl.u32 %v2561, 7
        %v2563 = vsub.s32 %v2560, %v2562
        %v2564 = vrot.slane %v2535, %v2563
        %v2565 = vcombine.high %v2564, %v2564
        %v2567 = vunpack.c.l.s4 1983009808
        %v2568 = vunpack.c.0.s8 %v2567
        %v2569 = vlaneseq
        %v2570 = vshrl.u32 %v2569, 7
        %v2571 = vsub.s32 %v2568, %v2570
        %v2572 = vrot.slane %v2536, %v2571
        %v2573 = vcombine.high %v2572, %v2572
        %v2575 = vunpack.c.l.s4 1983009808
        %v2576 = vunpack.c.0.s8 %v2575
        %v2577 = vlaneseq
        %v2578 = vshrl.u32 %v2577, 7
        %v2579 = vsub.s32 %v2576, %v2578
        %v2580 = vrot.slane %v2537, %v2579
        %v2581 = vcombine.high %v2580, %v2580
        %v2583 = vunpack.c.l.s4 1983009808
        %v2584 = vunpack.c.0.s8 %v2583
        %v2585 = vlaneseq
        %v2586 = vshrl.u32 %v2585, 7
        %v2587 = vsub.s32 %v2584, %v2586
        %v2588 = vrot.slane %v2538, %v2587
        %v2589 = vcombine.high %v2588, %v2588
        %v2591 = vunpack.c.l.s4 1983009808
        %v2592 = vunpack.c.0.s8 %v2591
        %v2593 = vlaneseq
        %v2594 = vshrl.u32 %v2593, 7
        %v2595 = vsub.s32 %v2592, %v2594
        %v2596 = vrot.slane %v2539, %v2595
        %v2597 = vcombine.high %v2596, %v2596
        %v2599 = vunpack.c.l.s4 1983009808
        %v2600 = vunpack.c.0.s8 %v2599
        %v2601 = vlaneseq
        %v2602 = vshrl.u32 %v2601, 7
        %v2603 = vsub.s32 %v2600, %v2602
        %v2604 = vrot.slane %v2540, %v2603
        %v2605 = vcombine.high %v2604, %v2604
        %v2607 = vunpack.c.l.s4 1983009808
        %v2608 = vunpack.c.0.s8 %v2607
        %v2609 = vlaneseq
        %v2610 = vshrl.u32 %v2609, 7
        %v2611 = vsub.s32 %v2608, %v2610
        %v2612 = vrot.slane %v2541, %v2611
        %v2613 = vcombine.high %v2612, %v2612
        %v2615 = vshrl.u32 %v2556, 16
        %v2617 = vrot.slane %v2615, 6
        %v2618 = vshll.u32 %v2556, 16
        %v2620 = vrot.slane %v2618, 7
        %v2621 = vor.u32 %v2617, %v2620
        %v2622 = vrot.slane %v2621, 2
        %v2624 = vshll.u32 %v2557, 16
        %v2626 = vrot.slane %v2624, 7
        %v2627 = vsel %vm1182, %v2622, %v2626
        %v2629 = vshrl.u32 %v2564, 16
        %v2631 = vrot.slane %v2629, 6
        %v2632 = vshll.u32 %v2564, 16
        %v2634 = vrot.slane %v2632, 7
        %v2635 = vor.u32 %v2631, %v2634
        %v2636 = vrot.slane %v2635, 2
        %v2638 = vshll.u32 %v2565, 16
        %v2640 = vrot.slane %v2638, 7
        %v2641 = vsel %vm1182, %v2636, %v2640
        %v2643 = vshrl.u32 %v2572, 16
        %v2645 = vrot.slane %v2643, 6
        %v2646 = vshll.u32 %v2572, 16
        %v2648 = vrot.slane %v2646, 7
        %v2649 = vor.u32 %v2645, %v2648
        %v2650 = vrot.slane %v2649, 2
        %v2652 = vshll.u32 %v2573, 16
        %v2654 = vrot.slane %v2652, 7
        %v2655 = vsel %vm1182, %v2650, %v2654
        %v2657 = vshrl.u32 %v2580, 16
        %v2659 = vrot.slane %v2657, 6
        %v2660 = vshll.u32 %v2580, 16
        %v2662 = vrot.slane %v2660, 7
        %v2663 = vor.u32 %v2659, %v2662
        %v2664 = vrot.slane %v2663, 2
        %v2666 = vshll.u32 %v2581, 16
        %v2668 = vrot.slane %v2666, 7
        %v2669 = vsel %vm1182, %v2664, %v2668
        %v2671 = vshrl.u32 %v2588, 16
        %v2673 = vrot.slane %v2671, 6
        %v2674 = vshll.u32 %v2588, 16
        %v2676 = vrot.slane %v2674, 7
        %v2677 = vor.u32 %v2673, %v2676
        %v2678 = vrot.slane %v2677, 2
        %v2680 = vshll.u32 %v2589, 16
        %v2682 = vrot.slane %v2680, 7
        %v2683 = vsel %vm1182, %v2678, %v2682
        %v2685 = vshrl.u32 %v2596, 16
        %v2687 = vrot.slane %v2685, 6
        %v2688 = vshll.u32 %v2596, 16
        %v2690 = vrot.slane %v2688, 7
        %v2691 = vor.u32 %v2687, %v2690
        %v2692 = vrot.slane %v2691, 2
        %v2694 = vshll.u32 %v2597, 16
        %v2696 = vrot.slane %v2694, 7
        %v2697 = vsel %vm1182, %v2692, %v2696
        %v2699 = vshrl.u32 %v2604, 16
        %v2701 = vrot.slane %v2699, 6
        %v2702 = vshll.u32 %v2604, 16
        %v2704 = vrot.slane %v2702, 7
        %v2705 = vor.u32 %v2701, %v2704
        %v2706 = vrot.slane %v2705, 2
        %v2708 = vshll.u32 %v2605, 16
        %v2710 = vrot.slane %v2708, 7
        %v2711 = vsel %vm1182, %v2706, %v2710
        %v2713 = vshrl.u32 %v2612, 16
        %v2715 = vrot.slane %v2713, 6
        %v2716 = vshll.u32 %v2612, 16
        %v2718 = vrot.slane %v2716, 7
        %v2719 = vor.u32 %v2715, %v2718
        %v2720 = vrot.slane %v2719, 2
        %v2722 = vshll.u32 %v2613, 16
        %v2724 = vrot.slane %v2722, 7
        %v2725 = vsel %vm1182, %v2720, %v2724
        %v2726 = vcombine.low %v2627, %v2641
        %v2728 = vunpack.c.l.s4 1983009808
        %v2729 = vunpack.c.0.s8 %v2728
        %v2730 = vlaneseq
        %v2731 = vshrl.u32 %v2730, 7
        %v2732 = vsub.s32 %v2729, %v2731
        %v2733 = vrot.slane %v2726, %v2732
        %v2734 = vcombine.low %v2655, %v2669
        %v2736 = vunpack.c.l.s4 1983009808
        %v2737 = vunpack.c.0.s8 %v2736
        %v2738 = vlaneseq
        %v2739 = vshrl.u32 %v2738, 7
        %v2740 = vsub.s32 %v2737, %v2739
        %v2741 = vrot.slane %v2734, %v2740
        %v2742 = vcombine.low %v2683, %v2697
        %v2744 = vunpack.c.l.s4 1983009808
        %v2745 = vunpack.c.0.s8 %v2744
        %v2746 = vlaneseq
        %v2747 = vshrl.u32 %v2746, 7
        %v2748 = vsub.s32 %v2745, %v2747
        %v2749 = vrot.slane %v2742, %v2748
        %v2750 = vcombine.low %v2711, %v2725
        %v2752 = vunpack.c.l.s4 1983009808
        %v2753 = vunpack.c.0.s8 %v2752
        %v2754 = vlaneseq
        %v2755 = vshrl.u32 %v2754, 7
        %v2756 = vsub.s32 %v2753, %v2755
        %v2757 = vrot.slane %v2750, %v2756
        %2758 = vrot.lane.b32.xlu0 %v2733, 40
        %v2759 = vpop.permute.xlu0 %2758
        %2760 = vrot.lane.b32.xlu0 %v2741, 40
        %v2761 = vpop.permute.xlu0 %2760
        %2762 = vrot.lane.b32.xlu0 %v2749, 40
        %v2763 = vpop.permute.xlu0 %2762
        %2764 = vrot.lane.b32.xlu0 %v2757, 40
        %v2765 = vpop.permute.xlu0 %2764
        %vm2770 = vcmask 355648
        %2771 = vst.msk [vmem:[#allocation3] sm:$0xf] %vm2770, %v2759
        %2772 = vst.msk [vmem:[#allocation3 + $0x4] sm:$0xf] %vm2770, %v2761
        %2773 = vst.msk [vmem:[#allocation3 + $0x8] sm:$0xf] %vm2770, %v2763
        %2774 = vst.msk [vmem:[#allocation3 + $0xc] sm:$0xf] %vm2770, %v2765
        %v2775 = vld [vmem:[%s2468] sm:$0x6]
        %v2776 = vld [vmem:[%s2468 + $0x4] sm:$0x6]
        %v2777 = vld [vmem:[%s2468 + $0x8] sm:$0x6]
        %v2778 = vld [vmem:[%s2468 + $0xc] sm:$0x6]
        %v2779 = vld [vmem:[%s2468 + $0x10] sm:$0x6]
        %v2780 = vld [vmem:[%s2468 + $0x14] sm:$0x6]
        %v2781 = vld [vmem:[%s2468 + $0x18] sm:$0x6]
        %v2782 = vld [vmem:[%s2468 + $0x1c] sm:$0x6]
        %v2792 = vunpack.c.l.s4 1983009808
        %v2793 = vunpack.c.0.s8 %v2792
        %v2794 = vlaneseq
        %v2795 = vshrl.u32 %v2794, 7
        %v2796 = vsub.s32 %v2793, %v2795
        %v2797 = vrot.slane %v2775, %v2796
        %v2798 = vcombine.high %v2797, %v2797
        %v2800 = vunpack.c.l.s4 1983009808
        %v2801 = vunpack.c.0.s8 %v2800
        %v2802 = vlaneseq
        %v2803 = vshrl.u32 %v2802, 7
        %v2804 = vsub.s32 %v2801, %v2803
        %v2805 = vrot.slane %v2776, %v2804
        %v2806 = vcombine.high %v2805, %v2805
        %v2808 = vunpack.c.l.s4 1983009808
        %v2809 = vunpack.c.0.s8 %v2808
        %v2810 = vlaneseq
        %v2811 = vshrl.u32 %v2810, 7
        %v2812 = vsub.s32 %v2809, %v2811
        %v2813 = vrot.slane %v2777, %v2812
        %v2814 = vcombine.high %v2813, %v2813
        %v2816 = vunpack.c.l.s4 1983009808
        %v2817 = vunpack.c.0.s8 %v2816
        %v2818 = vlaneseq
        %v2819 = vshrl.u32 %v2818, 7
        %v2820 = vsub.s32 %v2817, %v2819
        %v2821 = vrot.slane %v2778, %v2820
        %v2822 = vcombine.high %v2821, %v2821
        %v2824 = vunpack.c.l.s4 1983009808
        %v2825 = vunpack.c.0.s8 %v2824
        %v2826 = vlaneseq
        %v2827 = vshrl.u32 %v2826, 7
        %v2828 = vsub.s32 %v2825, %v2827
        %v2829 = vrot.slane %v2779, %v2828
        %v2830 = vcombine.high %v2829, %v2829
        %v2832 = vunpack.c.l.s4 1983009808
        %v2833 = vunpack.c.0.s8 %v2832
        %v2834 = vlaneseq
        %v2835 = vshrl.u32 %v2834, 7
        %v2836 = vsub.s32 %v2833, %v2835
        %v2837 = vrot.slane %v2780, %v2836
        %v2838 = vcombine.high %v2837, %v2837
        %v2840 = vunpack.c.l.s4 1983009808
        %v2841 = vunpack.c.0.s8 %v2840
        %v2842 = vlaneseq
        %v2843 = vshrl.u32 %v2842, 7
        %v2844 = vsub.s32 %v2841, %v2843
        %v2845 = vrot.slane %v2781, %v2844
        %v2846 = vcombine.high %v2845, %v2845
        %v2848 = vunpack.c.l.s4 1983009808
        %v2849 = vunpack.c.0.s8 %v2848
        %v2850 = vlaneseq
        %v2851 = vshrl.u32 %v2850, 7
        %v2852 = vsub.s32 %v2849, %v2851
        %v2853 = vrot.slane %v2782, %v2852
        %v2854 = vcombine.high %v2853, %v2853
        %v2855 = vrot.slane %v2797, 7
        %v2856 = vrot.slane %v2855, 2
        %v2857 = vrot.slane %v2798, 7
        %v2858 = vsel %vm1430, %v2856, %v2857
        %v2859 = vrot.slane %v2805, 7
        %v2860 = vrot.slane %v2859, 2
        %v2861 = vrot.slane %v2806, 7
        %v2862 = vsel %vm1430, %v2860, %v2861
        %v2863 = vrot.slane %v2813, 7
        %v2864 = vrot.slane %v2863, 2
        %v2865 = vrot.slane %v2814, 7
        %v2866 = vsel %vm1430, %v2864, %v2865
        %v2867 = vrot.slane %v2821, 7
        %v2868 = vrot.slane %v2867, 2
        %v2869 = vrot.slane %v2822, 7
        %v2870 = vsel %vm1430, %v2868, %v2869
        %v2871 = vrot.slane %v2829, 7
        %v2872 = vrot.slane %v2871, 2
        %v2873 = vrot.slane %v2830, 7
        %v2874 = vsel %vm1430, %v2872, %v2873
        %v2875 = vrot.slane %v2837, 7
        %v2876 = vrot.slane %v2875, 2
        %v2877 = vrot.slane %v2838, 7
        %v2878 = vsel %vm1430, %v2876, %v2877
        %v2879 = vrot.slane %v2845, 7
        %v2880 = vrot.slane %v2879, 2
        %v2881 = vrot.slane %v2846, 7
        %v2882 = vsel %vm1430, %v2880, %v2881
        %v2883 = vrot.slane %v2853, 7
        %v2884 = vrot.slane %v2883, 2
        %v2885 = vrot.slane %v2854, 7
        %v2886 = vsel %vm1430, %v2884, %v2885
        %v2887 = vcombine.low %v2858, %v2862
        %v2889 = vunpack.c.l.s4 1983009808
        %v2890 = vunpack.c.0.s8 %v2889
        %v2891 = vlaneseq
        %v2892 = vshrl.u32 %v2891, 7
        %v2893 = vsub.s32 %v2890, %v2892
        %v2894 = vrot.slane %v2887, %v2893
        %v2895 = vcombine.low %v2866, %v2870
        %v2897 = vunpack.c.l.s4 1983009808
        %v2898 = vunpack.c.0.s8 %v2897
        %v2899 = vlaneseq
        %v2900 = vshrl.u32 %v2899, 7
        %v2901 = vsub.s32 %v2898, %v2900
        %v2902 = vrot.slane %v2895, %v2901
        %v2903 = vcombine.low %v2874, %v2878
        %v2905 = vunpack.c.l.s4 1983009808
        %v2906 = vunpack.c.0.s8 %v2905
        %v2907 = vlaneseq
        %v2908 = vshrl.u32 %v2907, 7
        %v2909 = vsub.s32 %v2906, %v2908
        %v2910 = vrot.slane %v2903, %v2909
        %v2911 = vcombine.low %v2882, %v2886
        %v2913 = vunpack.c.l.s4 1983009808
        %v2914 = vunpack.c.0.s8 %v2913
        %v2915 = vlaneseq
        %v2916 = vshrl.u32 %v2915, 7
        %v2917 = vsub.s32 %v2914, %v2916
        %v2918 = vrot.slane %v2911, %v2917
        %2919 = vrot.lane.b32.xlu0 %v2894, 44
        %v2920 = vpop.permute.xlu0 %2919
        %2921 = vrot.lane.b32.xlu0 %v2902, 44
        %v2922 = vpop.permute.xlu0 %2921
        %2923 = vrot.lane.b32.xlu0 %v2910, 44
        %v2924 = vpop.permute.xlu0 %2923
        %2925 = vrot.lane.b32.xlu0 %v2918, 44
        %v2926 = vpop.permute.xlu0 %2925
        %vm2931 = vcmask 388448
        %2932 = vst.msk [vmem:[#allocation3] sm:$0xf] %vm2931, %v2920
        %2933 = vst.msk [vmem:[#allocation3 + $0x4] sm:$0xf] %vm2931, %v2922
        %2934 = vst.msk [vmem:[#allocation3 + $0x8] sm:$0xf] %vm2931, %v2924
        %2935 = vst.msk [vmem:[#allocation3 + $0xc] sm:$0xf] %vm2931, %v2926
        %s2936 = sadd.s32 1, %s2466
        %s2937 = smul.addr %s2936, 4
        %s2938 = scalar_lea.vmem [#allocation2], %s2937
        %v2939 = vld [vmem:[%s2938] sm:$0x3]
        %v2940 = vld [vmem:[%s2938 + $0x4] sm:$0x3]
        %v2941 = vld [vmem:[%s2938 + $0x8] sm:$0x3]
        %v2942 = vld [vmem:[%s2938 + $0xc] sm:$0x3]
        %v2943 = vld [vmem:[%s2938 + $0x10] sm:$0x3]
        %v2944 = vld [vmem:[%s2938 + $0x14] sm:$0x3]
        %v2945 = vld [vmem:[%s2938 + $0x18] sm:$0x3]
        %v2946 = vld [vmem:[%s2938 + $0x1c] sm:$0x3]
        %v2955 = vcombine.low %v2939, %v2940
        %v2957 = vunpack.c.l.s4 1983009808
        %v2958 = vunpack.c.0.s8 %v2957
        %v2959 = vlaneseq
        %v2960 = vshrl.u32 %v2959, 7
        %v2961 = vsub.s32 %v2958, %v2960
        %v2962 = vrot.slane %v2955, %v2961
        %v2963 = vcombine.low %v2941, %v2942
        %v2965 = vunpack.c.l.s4 1983009808
        %v2966 = vunpack.c.0.s8 %v2965
        %v2967 = vlaneseq
        %v2968 = vshrl.u32 %v2967, 7
        %v2969 = vsub.s32 %v2966, %v2968
        %v2970 = vrot.slane %v2963, %v2969
        %v2971 = vcombine.low %v2943, %v2944
        %v2973 = vunpack.c.l.s4 1983009808
        %v2974 = vunpack.c.0.s8 %v2973
        %v2975 = vlaneseq
        %v2976 = vshrl.u32 %v2975, 7
        %v2977 = vsub.s32 %v2974, %v2976
        %v2978 = vrot.slane %v2971, %v2977
        %v2979 = vcombine.low %v2945, %v2946
        %v2981 = vunpack.c.l.s4 1983009808
        %v2982 = vunpack.c.0.s8 %v2981
        %v2983 = vlaneseq
        %v2984 = vshrl.u32 %v2983, 7
        %v2985 = vsub.s32 %v2982, %v2984
        %v2986 = vrot.slane %v2979, %v2985
        %2987 = vrot.lane.b32.xlu0 %v2962, 48
        %v2988 = vpop.permute.xlu0 %2987
        %2989 = vrot.lane.b32.xlu0 %v2970, 48
        %v2990 = vpop.permute.xlu0 %2989
        %2991 = vrot.lane.b32.xlu0 %v2978, 48
        %v2992 = vpop.permute.xlu0 %2991
        %2993 = vrot.lane.b32.xlu0 %v2986, 48
        %v2994 = vpop.permute.xlu0 %2993
        %vm2999 = vcmask 421248
        %3000 = vst.msk [vmem:[#allocation3] sm:$0xf] %vm2999, %v2988
        %3001 = vst.msk [vmem:[#allocation3 + $0x4] sm:$0xf] %vm2999, %v2990
        %3002 = vst.msk [vmem:[#allocation3 + $0x8] sm:$0xf] %vm2999, %v2992
        %3003 = vst.msk [vmem:[#allocation3 + $0xc] sm:$0xf] %vm2999, %v2994
        %v3004 = vld [vmem:[%s2938] sm:$0x7]
        %v3005 = vld [vmem:[%s2938 + $0x4] sm:$0x7]
        %v3006 = vld [vmem:[%s2938 + $0x8] sm:$0x7]
        %v3007 = vld [vmem:[%s2938 + $0xc] sm:$0x7]
        %v3008 = vld [vmem:[%s2938 + $0x10] sm:$0x7]
        %v3009 = vld [vmem:[%s2938 + $0x14] sm:$0x7]
        %v3010 = vld [vmem:[%s2938 + $0x18] sm:$0x7]
        %v3011 = vld [vmem:[%s2938 + $0x1c] sm:$0x7]
        %v3021 = vunpack.c.l.s4 1983009808
        %v3022 = vunpack.c.0.s8 %v3021
        %v3023 = vlaneseq
        %v3024 = vshrl.u32 %v3023, 7
        %v3025 = vsub.s32 %v3022, %v3024
        %v3026 = vrot.slane %v3004, %v3025
        %v3027 = vcombine.high %v3026, %v3026
        %v3029 = vunpack.c.l.s4 1983009808
        %v3030 = vunpack.c.0.s8 %v3029
        %v3031 = vlaneseq
        %v3032 = vshrl.u32 %v3031, 7
        %v3033 = vsub.s32 %v3030, %v3032
        %v3034 = vrot.slane %v3005, %v3033
        %v3035 = vcombine.high %v3034, %v3034
        %v3037 = vunpack.c.l.s4 1983009808
        %v3038 = vunpack.c.0.s8 %v3037
        %v3039 = vlaneseq
        %v3040 = vshrl.u32 %v3039, 7
        %v3041 = vsub.s32 %v3038, %v3040
        %v3042 = vrot.slane %v3006, %v3041
        %v3043 = vcombine.high %v3042, %v3042
        %v3045 = vunpack.c.l.s4 1983009808
        %v3046 = vunpack.c.0.s8 %v3045
        %v3047 = vlaneseq
        %v3048 = vshrl.u32 %v3047, 7
        %v3049 = vsub.s32 %v3046, %v3048
        %v3050 = vrot.slane %v3007, %v3049
        %v3051 = vcombine.high %v3050, %v3050
        %v3053 = vunpack.c.l.s4 1983009808
        %v3054 = vunpack.c.0.s8 %v3053
        %v3055 = vlaneseq
        %v3056 = vshrl.u32 %v3055, 7
        %v3057 = vsub.s32 %v3054, %v3056
        %v3058 = vrot.slane %v3008, %v3057
        %v3059 = vcombine.high %v3058, %v3058
        %v3061 = vunpack.c.l.s4 1983009808
        %v3062 = vunpack.c.0.s8 %v3061
        %v3063 = vlaneseq
        %v3064 = vshrl.u32 %v3063, 7
        %v3065 = vsub.s32 %v3062, %v3064
        %v3066 = vrot.slane %v3009, %v3065
        %v3067 = vcombine.high %v3066, %v3066
        %v3069 = vunpack.c.l.s4 1983009808
        %v3070 = vunpack.c.0.s8 %v3069
        %v3071 = vlaneseq
        %v3072 = vshrl.u32 %v3071, 7
        %v3073 = vsub.s32 %v3070, %v3072
        %v3074 = vrot.slane %v3010, %v3073
        %v3075 = vcombine.high %v3074, %v3074
        %v3077 = vunpack.c.l.s4 1983009808
        %v3078 = vunpack.c.0.s8 %v3077
        %v3079 = vlaneseq
        %v3080 = vshrl.u32 %v3079, 7
        %v3081 = vsub.s32 %v3078, %v3080
        %v3082 = vrot.slane %v3011, %v3081
        %v3083 = vcombine.high %v3082, %v3082
        %v3085 = vshrl.u32 %v3026, 16
        %v3087 = vrot.slane %v3085, 6
        %v3088 = vshll.u32 %v3026, 16
        %v3090 = vrot.slane %v3088, 7
        %v3091 = vor.u32 %v3087, %v3090
        %v3092 = vrot.slane %v3091, 2
        %v3094 = vshll.u32 %v3027, 16
        %v3096 = vrot.slane %v3094, 7
        %v3097 = vsel %vm1182, %v3092, %v3096
        %v3099 = vshrl.u32 %v3034, 16
        %v3101 = vrot.slane %v3099, 6
        %v3102 = vshll.u32 %v3034, 16
        %v3104 = vrot.slane %v3102, 7
        %v3105 = vor.u32 %v3101, %v3104
        %v3106 = vrot.slane %v3105, 2
        %v3108 = vshll.u32 %v3035, 16
        %v3110 = vrot.slane %v3108, 7
        %v3111 = vsel %vm1182, %v3106, %v3110
        %v3113 = vshrl.u32 %v3042, 16
        %v3115 = vrot.slane %v3113, 6
        %v3116 = vshll.u32 %v3042, 16
        %v3118 = vrot.slane %v3116, 7
        %v3119 = vor.u32 %v3115, %v3118
        %v3120 = vrot.slane %v3119, 2
        %v3122 = vshll.u32 %v3043, 16
        %v3124 = vrot.slane %v3122, 7
        %v3125 = vsel %vm1182, %v3120, %v3124
        %v3127 = vshrl.u32 %v3050, 16
        %v3129 = vrot.slane %v3127, 6
        %v3130 = vshll.u32 %v3050, 16
        %v3132 = vrot.slane %v3130, 7
        %v3133 = vor.u32 %v3129, %v3132
        %v3134 = vrot.slane %v3133, 2
        %v3136 = vshll.u32 %v3051, 16
        %v3138 = vrot.slane %v3136, 7
        %v3139 = vsel %vm1182, %v3134, %v3138
        %v3141 = vshrl.u32 %v3058, 16
        %v3143 = vrot.slane %v3141, 6
        %v3144 = vshll.u32 %v3058, 16
        %v3146 = vrot.slane %v3144, 7
        %v3147 = vor.u32 %v3143, %v3146
        %v3148 = vrot.slane %v3147, 2
        %v3150 = vshll.u32 %v3059, 16
        %v3152 = vrot.slane %v3150, 7
        %v3153 = vsel %vm1182, %v3148, %v3152
        %v3155 = vshrl.u32 %v3066, 16
        %v3157 = vrot.slane %v3155, 6
        %v3158 = vshll.u32 %v3066, 16
        %v3160 = vrot.slane %v3158, 7
        %v3161 = vor.u32 %v3157, %v3160
        %v3162 = vrot.slane %v3161, 2
        %v3164 = vshll.u32 %v3067, 16
        %v3166 = vrot.slane %v3164, 7
        %v3167 = vsel %vm1182, %v3162, %v3166
        %v3169 = vshrl.u32 %v3074, 16
        %v3171 = vrot.slane %v3169, 6
        %v3172 = vshll.u32 %v3074, 16
        %v3174 = vrot.slane %v3172, 7
        %v3175 = vor.u32 %v3171, %v3174
        %v3176 = vrot.slane %v3175, 2
        %v3178 = vshll.u32 %v3075, 16
        %v3180 = vrot.slane %v3178, 7
        %v3181 = vsel %vm1182, %v3176, %v3180
        %v3183 = vshrl.u32 %v3082, 16
        %v3185 = vrot.slane %v3183, 6
        %v3186 = vshll.u32 %v3082, 16
        %v3188 = vrot.slane %v3186, 7
        %v3189 = vor.u32 %v3185, %v3188
        %v3190 = vrot.slane %v3189, 2
        %v3192 = vshll.u32 %v3083, 16
        %v3194 = vrot.slane %v3192, 7
        %v3195 = vsel %vm1182, %v3190, %v3194
        %v3196 = vcombine.low %v3097, %v3111
        %v3198 = vunpack.c.l.s4 1983009808
        %v3199 = vunpack.c.0.s8 %v3198
        %v3200 = vlaneseq
        %v3201 = vshrl.u32 %v3200, 7
        %v3202 = vsub.s32 %v3199, %v3201
        %v3203 = vrot.slane %v3196, %v3202
        %v3204 = vcombine.low %v3125, %v3139
        %v3206 = vunpack.c.l.s4 1983009808
        %v3207 = vunpack.c.0.s8 %v3206
        %v3208 = vlaneseq
        %v3209 = vshrl.u32 %v3208, 7
        %v3210 = vsub.s32 %v3207, %v3209
        %v3211 = vrot.slane %v3204, %v3210
        %v3212 = vcombine.low %v3153, %v3167
        %v3214 = vunpack.c.l.s4 1983009808
        %v3215 = vunpack.c.0.s8 %v3214
        %v3216 = vlaneseq
        %v3217 = vshrl.u32 %v3216, 7
        %v3218 = vsub.s32 %v3215, %v3217
        %v3219 = vrot.slane %v3212, %v3218
        %v3220 = vcombine.low %v3181, %v3195
        %v3222 = vunpack.c.l.s4 1983009808
        %v3223 = vunpack.c.0.s8 %v3222
        %v3224 = vlaneseq
        %v3225 = vshrl.u32 %v3224, 7
        %v3226 = vsub.s32 %v3223, %v3225
        %v3227 = vrot.slane %v3220, %v3226
        %3228 = vrot.lane.b32.xlu0 %v3203, 52
        %v3229 = vpop.permute.xlu0 %3228
        %3230 = vrot.lane.b32.xlu0 %v3211, 52
        %v3231 = vpop.permute.xlu0 %3230
        %3232 = vrot.lane.b32.xlu0 %v3219, 52
        %v3233 = vpop.permute.xlu0 %3232
        %3234 = vrot.lane.b32.xlu0 %v3227, 52
        %v3235 = vpop.permute.xlu0 %3234
        %vm3240 = vcmask 454048
        %3241 = vst.msk [vmem:[#allocation3] sm:$0xf] %vm3240, %v3229
        %3242 = vst.msk [vmem:[#allocation3 + $0x4] sm:$0xf] %vm3240, %v3231
        %3243 = vst.msk [vmem:[#allocation3 + $0x8] sm:$0xf] %vm3240, %v3233
        %3244 = vst.msk [vmem:[#allocation3 + $0xc] sm:$0xf] %vm3240, %v3235
        %v3245 = vld [vmem:[%s2938] sm:$0x6]
        %v3246 = vld [vmem:[%s2938 + $0x4] sm:$0x6]
        %v3247 = vld [vmem:[%s2938 + $0x8] sm:$0x6]
        %v3248 = vld [vmem:[%s2938 + $0xc] sm:$0x6]
        %v3249 = vld [vmem:[%s2938 + $0x10] sm:$0x6]
        %v3250 = vld [vmem:[%s2938 + $0x14] sm:$0x6]
        %v3251 = vld [vmem:[%s2938 + $0x18] sm:$0x6]
        %v3252 = vld [vmem:[%s2938 + $0x1c] sm:$0x6]
        %v3262 = vunpack.c.l.s4 1983009808
        %v3263 = vunpack.c.0.s8 %v3262
        %v3264 = vlaneseq
        %v3265 = vshrl.u32 %v3264, 7
        %v3266 = vsub.s32 %v3263, %v3265
        %v3267 = vrot.slane %v3245, %v3266
        %v3268 = vcombine.high %v3267, %v3267
        %v3270 = vunpack.c.l.s4 1983009808
        %v3271 = vunpack.c.0.s8 %v3270
        %v3272 = vlaneseq
        %v3273 = vshrl.u32 %v3272, 7
        %v3274 = vsub.s32 %v3271, %v3273
        %v3275 = vrot.slane %v3246, %v3274
        %v3276 = vcombine.high %v3275, %v3275
        %v3278 = vunpack.c.l.s4 1983009808
        %v3279 = vunpack.c.0.s8 %v3278
        %v3280 = vlaneseq
        %v3281 = vshrl.u32 %v3280, 7
        %v3282 = vsub.s32 %v3279, %v3281
        %v3283 = vrot.slane %v3247, %v3282
        %v3284 = vcombine.high %v3283, %v3283
        %v3286 = vunpack.c.l.s4 1983009808
        %v3287 = vunpack.c.0.s8 %v3286
        %v3288 = vlaneseq
        %v3289 = vshrl.u32 %v3288, 7
        %v3290 = vsub.s32 %v3287, %v3289
        %v3291 = vrot.slane %v3248, %v3290
        %v3292 = vcombine.high %v3291, %v3291
        %v3294 = vunpack.c.l.s4 1983009808
        %v3295 = vunpack.c.0.s8 %v3294
        %v3296 = vlaneseq
        %v3297 = vshrl.u32 %v3296, 7
        %v3298 = vsub.s32 %v3295, %v3297
        %v3299 = vrot.slane %v3249, %v3298
        %v3300 = vcombine.high %v3299, %v3299
        %v3302 = vunpack.c.l.s4 1983009808
        %v3303 = vunpack.c.0.s8 %v3302
        %v3304 = vlaneseq
        %v3305 = vshrl.u32 %v3304, 7
        %v3306 = vsub.s32 %v3303, %v3305
        %v3307 = vrot.slane %v3250, %v3306
        %v3308 = vcombine.high %v3307, %v3307
        %v3310 = vunpack.c.l.s4 1983009808
        %v3311 = vunpack.c.0.s8 %v3310
        %v3312 = vlaneseq
        %v3313 = vshrl.u32 %v3312, 7
        %v3314 = vsub.s32 %v3311, %v3313
        %v3315 = vrot.slane %v3251, %v3314
        %v3316 = vcombine.high %v3315, %v3315
        %v3318 = vunpack.c.l.s4 1983009808
        %v3319 = vunpack.c.0.s8 %v3318
        %v3320 = vlaneseq
        %v3321 = vshrl.u32 %v3320, 7
        %v3322 = vsub.s32 %v3319, %v3321
        %v3323 = vrot.slane %v3252, %v3322
        %v3324 = vcombine.high %v3323, %v3323
        %v3325 = vrot.slane %v3267, 7
        %v3326 = vrot.slane %v3325, 2
        %v3327 = vrot.slane %v3268, 7
        %v3328 = vsel %vm1430, %v3326, %v3327
        %v3329 = vrot.slane %v3275, 7
        %v3330 = vrot.slane %v3329, 2
        %v3331 = vrot.slane %v3276, 7
        %v3332 = vsel %vm1430, %v3330, %v3331
        %v3333 = vrot.slane %v3283, 7
        %v3334 = vrot.slane %v3333, 2
        %v3335 = vrot.slane %v3284, 7
        %v3336 = vsel %vm1430, %v3334, %v3335
        %v3337 = vrot.slane %v3291, 7
        %v3338 = vrot.slane %v3337, 2
        %v3339 = vrot.slane %v3292, 7
        %v3340 = vsel %vm1430, %v3338, %v3339
        %v3341 = vrot.slane %v3299, 7
        %v3342 = vrot.slane %v3341, 2
        %v3343 = vrot.slane %v3300, 7
        %v3344 = vsel %vm1430, %v3342, %v3343
        %v3345 = vrot.slane %v3307, 7
        %v3346 = vrot.slane %v3345, 2
        %v3347 = vrot.slane %v3308, 7
        %v3348 = vsel %vm1430, %v3346, %v3347
        %v3349 = vrot.slane %v3315, 7
        %v3350 = vrot.slane %v3349, 2
        %v3351 = vrot.slane %v3316, 7
        %v3352 = vsel %vm1430, %v3350, %v3351
        %v3353 = vrot.slane %v3323, 7
        %v3354 = vrot.slane %v3353, 2
        %v3355 = vrot.slane %v3324, 7
        %v3356 = vsel %vm1430, %v3354, %v3355
        %v3357 = vcombine.low %v3328, %v3332
        %v3359 = vunpack.c.l.s4 1983009808
        %v3360 = vunpack.c.0.s8 %v3359
        %v3361 = vlaneseq
        %v3362 = vshrl.u32 %v3361, 7
        %v3363 = vsub.s32 %v3360, %v3362
        %v3364 = vrot.slane %v3357, %v3363
        %v3365 = vcombine.low %v3336, %v3340
        %v3367 = vunpack.c.l.s4 1983009808
        %v3368 = vunpack.c.0.s8 %v3367
        %v3369 = vlaneseq
        %v3370 = vshrl.u32 %v3369, 7
        %v3371 = vsub.s32 %v3368, %v3370
        %v3372 = vrot.slane %v3365, %v3371
        %v3373 = vcombine.low %v3344, %v3348
        %v3375 = vunpack.c.l.s4 1983009808
        %v3376 = vunpack.c.0.s8 %v3375
        %v3377 = vlaneseq
        %v3378 = vshrl.u32 %v3377, 7
        %v3379 = vsub.s32 %v3376, %v3378
        %v3380 = vrot.slane %v3373, %v3379
        %v3381 = vcombine.low %v3352, %v3356
        %v3383 = vunpack.c.l.s4 1983009808
        %v3384 = vunpack.c.0.s8 %v3383
        %v3385 = vlaneseq
        %v3386 = vshrl.u32 %v3385, 7
        %v3387 = vsub.s32 %v3384, %v3386
        %v3388 = vrot.slane %v3381, %v3387
        %3389 = vrot.lane.b32.xlu0 %v3364, 56
        %v3390 = vpop.permute.xlu0 %3389
        %3391 = vrot.lane.b32.xlu0 %v3372, 56
        %v3392 = vpop.permute.xlu0 %3391
        %3393 = vrot.lane.b32.xlu0 %v3380, 56
        %v3394 = vpop.permute.xlu0 %3393
        %3395 = vrot.lane.b32.xlu0 %v3388, 56
        %v3396 = vpop.permute.xlu0 %3395
        %vm3401 = vcmask 486848
        %3402 = vst.msk [vmem:[#allocation3] sm:$0xf] %vm3401, %v3390
        %3403 = vst.msk [vmem:[#allocation3 + $0x4] sm:$0xf] %vm3401, %v3392
        %3404 = vst.msk [vmem:[#allocation3 + $0x8] sm:$0xf] %vm3401, %v3394
        %3405 = vst.msk [vmem:[#allocation3 + $0xc] sm:$0xf] %vm3401, %v3396
        %s3406 = sadd.s32 2, %s2466
        %s3407 = smul.addr %s3406, 4
        %s3408 = scalar_lea.vmem [#allocation2], %s3407
        %v3409 = vld [vmem:[%s3408] sm:$0x3]
        %v3410 = vld [vmem:[%s3408 + $0x4] sm:$0x3]
        %v3411 = vld [vmem:[%s3408 + $0x8] sm:$0x3]
        %v3412 = vld [vmem:[%s3408 + $0xc] sm:$0x3]
        %v3413 = vld [vmem:[%s3408 + $0x10] sm:$0x3]
        %v3414 = vld [vmem:[%s3408 + $0x14] sm:$0x3]
        %v3415 = vld [vmem:[%s3408 + $0x18] sm:$0x3]
        %v3416 = vld [vmem:[%s3408 + $0x1c] sm:$0x3]
        %v3425 = vcombine.low %v3409, %v3410
        %v3427 = vunpack.c.l.s4 1983009808
        %v3428 = vunpack.c.0.s8 %v3427
        %v3429 = vlaneseq
        %v3430 = vshrl.u32 %v3429, 7
        %v3431 = vsub.s32 %v3428, %v3430
        %v3432 = vrot.slane %v3425, %v3431
        %v3433 = vcombine.low %v3411, %v3412
        %v3435 = vunpack.c.l.s4 1983009808
        %v3436 = vunpack.c.0.s8 %v3435
        %v3437 = vlaneseq
        %v3438 = vshrl.u32 %v3437, 7
        %v3439 = vsub.s32 %v3436, %v3438
        %v3440 = vrot.slane %v3433, %v3439
        %v3441 = vcombine.low %v3413, %v3414
        %v3443 = vunpack.c.l.s4 1983009808
        %v3444 = vunpack.c.0.s8 %v3443
        %v3445 = vlaneseq
        %v3446 = vshrl.u32 %v3445, 7
        %v3447 = vsub.s32 %v3444, %v3446
        %v3448 = vrot.slane %v3441, %v3447
        %v3449 = vcombine.low %v3415, %v3416
        %v3451 = vunpack.c.l.s4 1983009808
        %v3452 = vunpack.c.0.s8 %v3451
        %v3453 = vlaneseq
        %v3454 = vshrl.u32 %v3453, 7
        %v3455 = vsub.s32 %v3452, %v3454
        %v3456 = vrot.slane %v3449, %v3455
        %3457 = vrot.lane.b32.xlu0 %v3432, 60
        %v3458 = vpop.permute.xlu0 %3457
        %3459 = vrot.lane.b32.xlu0 %v3440, 60
        %v3460 = vpop.permute.xlu0 %3459
        %3461 = vrot.lane.b32.xlu0 %v3448, 60
        %v3462 = vpop.permute.xlu0 %3461
        %3463 = vrot.lane.b32.xlu0 %v3456, 60
        %v3464 = vpop.permute.xlu0 %3463
        %vm3469 = vcmask 519648
        %3470 = vst.msk [vmem:[#allocation3] sm:$0xf] %vm3469, %v3458
        %3471 = vst.msk [vmem:[#allocation3 + $0x4] sm:$0xf] %vm3469, %v3460
        %3472 = vst.msk [vmem:[#allocation3 + $0x8] sm:$0xf] %vm3469, %v3462
        %3473 = vst.msk [vmem:[#allocation3 + $0xc] sm:$0xf] %vm3469, %v3464
        %v3474 = vld [vmem:[%s3408] sm:$0x7]
        %v3475 = vld [vmem:[%s3408 + $0x4] sm:$0x7]
        %v3476 = vld [vmem:[%s3408 + $0x8] sm:$0x7]
        %v3477 = vld [vmem:[%s3408 + $0xc] sm:$0x7]
        %v3478 = vld [vmem:[%s3408 + $0x10] sm:$0x7]
        %v3479 = vld [vmem:[%s3408 + $0x14] sm:$0x7]
        %v3480 = vld [vmem:[%s3408 + $0x18] sm:$0x7]
        %v3481 = vld [vmem:[%s3408 + $0x1c] sm:$0x7]
        %v3491 = vunpack.c.l.s4 1983009808
        %v3492 = vunpack.c.0.s8 %v3491
        %v3493 = vlaneseq
        %v3494 = vshrl.u32 %v3493, 7
        %v3495 = vsub.s32 %v3492, %v3494
        %v3496 = vrot.slane %v3474, %v3495
        %v3497 = vcombine.high %v3496, %v3496
        %v3499 = vunpack.c.l.s4 1983009808
        %v3500 = vunpack.c.0.s8 %v3499
        %v3501 = vlaneseq
        %v3502 = vshrl.u32 %v3501, 7
        %v3503 = vsub.s32 %v3500, %v3502
        %v3504 = vrot.slane %v3475, %v3503
        %v3505 = vcombine.high %v3504, %v3504
        %v3507 = vunpack.c.l.s4 1983009808
        %v3508 = vunpack.c.0.s8 %v3507
        %v3509 = vlaneseq
        %v3510 = vshrl.u32 %v3509, 7
        %v3511 = vsub.s32 %v3508, %v3510
        %v3512 = vrot.slane %v3476, %v3511
        %v3513 = vcombine.high %v3512, %v3512
        %v3515 = vunpack.c.l.s4 1983009808
        %v3516 = vunpack.c.0.s8 %v3515
        %v3517 = vlaneseq
        %v3518 = vshrl.u32 %v3517, 7
        %v3519 = vsub.s32 %v3516, %v3518
        %v3520 = vrot.slane %v3477, %v3519
        %v3521 = vcombine.high %v3520, %v3520
        %v3523 = vunpack.c.l.s4 1983009808
        %v3524 = vunpack.c.0.s8 %v3523
        %v3525 = vlaneseq
        %v3526 = vshrl.u32 %v3525, 7
        %v3527 = vsub.s32 %v3524, %v3526
        %v3528 = vrot.slane %v3478, %v3527
        %v3529 = vcombine.high %v3528, %v3528
        %v3531 = vunpack.c.l.s4 1983009808
        %v3532 = vunpack.c.0.s8 %v3531
        %v3533 = vlaneseq
        %v3534 = vshrl.u32 %v3533, 7
        %v3535 = vsub.s32 %v3532, %v3534
        %v3536 = vrot.slane %v3479, %v3535
        %v3537 = vcombine.high %v3536, %v3536
        %v3539 = vunpack.c.l.s4 1983009808
        %v3540 = vunpack.c.0.s8 %v3539
        %v3541 = vlaneseq
        %v3542 = vshrl.u32 %v3541, 7
        %v3543 = vsub.s32 %v3540, %v3542
        %v3544 = vrot.slane %v3480, %v3543
        %v3545 = vcombine.high %v3544, %v3544
        %v3547 = vunpack.c.l.s4 1983009808
        %v3548 = vunpack.c.0.s8 %v3547
        %v3549 = vlaneseq
        %v3550 = vshrl.u32 %v3549, 7
        %v3551 = vsub.s32 %v3548, %v3550
        %v3552 = vrot.slane %v3481, %v3551
        %v3553 = vcombine.high %v3552, %v3552
        %v3555 = vshrl.u32 %v3496, 16
        %v3557 = vrot.slane %v3555, 6
        %v3558 = vshll.u32 %v3496, 16
        %v3560 = vrot.slane %v3558, 7
        %v3561 = vor.u32 %v3557, %v3560
        %v3562 = vrot.slane %v3561, 2
        %v3564 = vshll.u32 %v3497, 16
        %v3566 = vrot.slane %v3564, 7
        %v3567 = vsel %vm1182, %v3562, %v3566
        %v3569 = vshrl.u32 %v3504, 16
        %v3571 = vrot.slane %v3569, 6
        %v3572 = vshll.u32 %v3504, 16
        %v3574 = vrot.slane %v3572, 7
        %v3575 = vor.u32 %v3571, %v3574
        %v3576 = vrot.slane %v3575, 2
        %v3578 = vshll.u32 %v3505, 16
        %v3580 = vrot.slane %v3578, 7
        %v3581 = vsel %vm1182, %v3576, %v3580
        %v3583 = vshrl.u32 %v3512, 16
        %v3585 = vrot.slane %v3583, 6
        %v3586 = vshll.u32 %v3512, 16
        %v3588 = vrot.slane %v3586, 7
        %v3589 = vor.u32 %v3585, %v3588
        %v3590 = vrot.slane %v3589, 2
        %v3592 = vshll.u32 %v3513, 16
        %v3594 = vrot.slane %v3592, 7
        %v3595 = vsel %vm1182, %v3590, %v3594
        %v3597 = vshrl.u32 %v3520, 16
        %v3599 = vrot.slane %v3597, 6
        %v3600 = vshll.u32 %v3520, 16
        %v3602 = vrot.slane %v3600, 7
        %v3603 = vor.u32 %v3599, %v3602
        %v3604 = vrot.slane %v3603, 2
        %v3606 = vshll.u32 %v3521, 16
        %v3608 = vrot.slane %v3606, 7
        %v3609 = vsel %vm1182, %v3604, %v3608
        %v3611 = vshrl.u32 %v3528, 16
        %v3613 = vrot.slane %v3611, 6
        %v3614 = vshll.u32 %v3528, 16
        %v3616 = vrot.slane %v3614, 7
        %v3617 = vor.u32 %v3613, %v3616
        %v3618 = vrot.slane %v3617, 2
        %v3620 = vshll.u32 %v3529, 16
        %v3622 = vrot.slane %v3620, 7
        %v3623 = vsel %vm1182, %v3618, %v3622
        %v3625 = vshrl.u32 %v3536, 16
        %v3627 = vrot.slane %v3625, 6
        %v3628 = vshll.u32 %v3536, 16
        %v3630 = vrot.slane %v3628, 7
        %v3631 = vor.u32 %v3627, %v3630
        %v3632 = vrot.slane %v3631, 2
        %v3634 = vshll.u32 %v3537, 16
        %v3636 = vrot.slane %v3634, 7
        %v3637 = vsel %vm1182, %v3632, %v3636
        %v3639 = vshrl.u32 %v3544, 16
        %v3641 = vrot.slane %v3639, 6
        %v3642 = vshll.u32 %v3544, 16
        %v3644 = vrot.slane %v3642, 7
        %v3645 = vor.u32 %v3641, %v3644
        %v3646 = vrot.slane %v3645, 2
        %v3648 = vshll.u32 %v3545, 16
        %v3650 = vrot.slane %v3648, 7
        %v3651 = vsel %vm1182, %v3646, %v3650
        %v3653 = vshrl.u32 %v3552, 16
        %v3655 = vrot.slane %v3653, 6
        %v3656 = vshll.u32 %v3552, 16
        %v3658 = vrot.slane %v3656, 7
        %v3659 = vor.u32 %v3655, %v3658
        %v3660 = vrot.slane %v3659, 2
        %v3662 = vshll.u32 %v3553, 16
        %v3664 = vrot.slane %v3662, 7
        %v3665 = vsel %vm1182, %v3660, %v3664
        %v3666 = vcombine.low %v3567, %v3581
        %v3668 = vunpack.c.l.s4 1983009808
        %v3669 = vunpack.c.0.s8 %v3668
        %v3670 = vlaneseq
        %v3671 = vshrl.u32 %v3670, 7
        %v3672 = vsub.s32 %v3669, %v3671
        %v3673 = vrot.slane %v3666, %v3672
        %v3674 = vcombine.low %v3595, %v3609
        %v3676 = vunpack.c.l.s4 1983009808
        %v3677 = vunpack.c.0.s8 %v3676
        %v3678 = vlaneseq
        %v3679 = vshrl.u32 %v3678, 7
        %v3680 = vsub.s32 %v3677, %v3679
        %v3681 = vrot.slane %v3674, %v3680
        %v3682 = vcombine.low %v3623, %v3637
        %v3684 = vunpack.c.l.s4 1983009808
        %v3685 = vunpack.c.0.s8 %v3684
        %v3686 = vlaneseq
        %v3687 = vshrl.u32 %v3686, 7
        %v3688 = vsub.s32 %v3685, %v3687
        %v3689 = vrot.slane %v3682, %v3688
        %v3690 = vcombine.low %v3651, %v3665
        %v3692 = vunpack.c.l.s4 1983009808
        %v3693 = vunpack.c.0.s8 %v3692
        %v3694 = vlaneseq
        %v3695 = vshrl.u32 %v3694, 7
        %v3696 = vsub.s32 %v3693, %v3695
        %v3697 = vrot.slane %v3690, %v3696
        %3698 = vrot.lane.b32.xlu0 %v3673, 64
        %v3699 = vpop.permute.xlu0 %3698
        %3700 = vrot.lane.b32.xlu0 %v3681, 64
        %v3701 = vpop.permute.xlu0 %3700
        %3702 = vrot.lane.b32.xlu0 %v3689, 64
        %v3703 = vpop.permute.xlu0 %3702
        %3704 = vrot.lane.b32.xlu0 %v3697, 64
        %v3705 = vpop.permute.xlu0 %3704
        %vm3710 = vcmask 552448
        %3711 = vst.msk [vmem:[#allocation3] sm:$0xf] %vm3710, %v3699
        %3712 = vst.msk [vmem:[#allocation3 + $0x4] sm:$0xf] %vm3710, %v3701
        %3713 = vst.msk [vmem:[#allocation3 + $0x8] sm:$0xf] %vm3710, %v3703
        %3714 = vst.msk [vmem:[#allocation3 + $0xc] sm:$0xf] %vm3710, %v3705
        %v3715 = vld [vmem:[%s3408] sm:$0x6]
        %v3716 = vld [vmem:[%s3408 + $0x4] sm:$0x6]
        %v3717 = vld [vmem:[%s3408 + $0x8] sm:$0x6]
        %v3718 = vld [vmem:[%s3408 + $0xc] sm:$0x6]
        %v3719 = vld [vmem:[%s3408 + $0x10] sm:$0x6]
        %v3720 = vld [vmem:[%s3408 + $0x14] sm:$0x6]
        %v3721 = vld [vmem:[%s3408 + $0x18] sm:$0x6]
        %v3722 = vld [vmem:[%s3408 + $0x1c] sm:$0x6]
        %v3732 = vunpack.c.l.s4 1983009808
        %v3733 = vunpack.c.0.s8 %v3732
        %v3734 = vlaneseq
        %v3735 = vshrl.u32 %v3734, 7
        %v3736 = vsub.s32 %v3733, %v3735
        %v3737 = vrot.slane %v3715, %v3736
        %v3738 = vcombine.high %v3737, %v3737
        %v3740 = vunpack.c.l.s4 1983009808
        %v3741 = vunpack.c.0.s8 %v3740
        %v3742 = vlaneseq
        %v3743 = vshrl.u32 %v3742, 7
        %v3744 = vsub.s32 %v3741, %v3743
        %v3745 = vrot.slane %v3716, %v3744
        %v3746 = vcombine.high %v3745, %v3745
        %v3748 = vunpack.c.l.s4 1983009808
        %v3749 = vunpack.c.0.s8 %v3748
        %v3750 = vlaneseq
        %v3751 = vshrl.u32 %v3750, 7
        %v3752 = vsub.s32 %v3749, %v3751
        %v3753 = vrot.slane %v3717, %v3752
        %v3754 = vcombine.high %v3753, %v3753
        %v3756 = vunpack.c.l.s4 1983009808
        %v3757 = vunpack.c.0.s8 %v3756
        %v3758 = vlaneseq
        %v3759 = vshrl.u32 %v3758, 7
        %v3760 = vsub.s32 %v3757, %v3759
        %v3761 = vrot.slane %v3718, %v3760
        %v3762 = vcombine.high %v3761, %v3761
        %v3764 = vunpack.c.l.s4 1983009808
        %v3765 = vunpack.c.0.s8 %v3764
        %v3766 = vlaneseq
        %v3767 = vshrl.u32 %v3766, 7
        %v3768 = vsub.s32 %v3765, %v3767
        %v3769 = vrot.slane %v3719, %v3768
        %v3770 = vcombine.high %v3769, %v3769
        %v3772 = vunpack.c.l.s4 1983009808
        %v3773 = vunpack.c.0.s8 %v3772
        %v3774 = vlaneseq
        %v3775 = vshrl.u32 %v3774, 7
        %v3776 = vsub.s32 %v3773, %v3775
        %v3777 = vrot.slane %v3720, %v3776
        %v3778 = vcombine.high %v3777, %v3777
        %v3780 = vunpack.c.l.s4 1983009808
        %v3781 = vunpack.c.0.s8 %v3780
        %v3782 = vlaneseq
        %v3783 = vshrl.u32 %v3782, 7
        %v3784 = vsub.s32 %v3781, %v3783
        %v3785 = vrot.slane %v3721, %v3784
        %v3786 = vcombine.high %v3785, %v3785
        %v3788 = vunpack.c.l.s4 1983009808
        %v3789 = vunpack.c.0.s8 %v3788
        %v3790 = vlaneseq
        %v3791 = vshrl.u32 %v3790, 7
        %v3792 = vsub.s32 %v3789, %v3791
        %v3793 = vrot.slane %v3722, %v3792
        %v3794 = vcombine.high %v3793, %v3793
        %v3795 = vrot.slane %v3737, 7
        %v3796 = vrot.slane %v3795, 2
        %v3797 = vrot.slane %v3738, 7
        %v3798 = vsel %vm1430, %v3796, %v3797
        %v3799 = vrot.slane %v3745, 7
        %v3800 = vrot.slane %v3799, 2
        %v3801 = vrot.slane %v3746, 7
        %v3802 = vsel %vm1430, %v3800, %v3801
        %v3803 = vrot.slane %v3753, 7
        %v3804 = vrot.slane %v3803, 2
        %v3805 = vrot.slane %v3754, 7
        %v3806 = vsel %vm1430, %v3804, %v3805
        %v3807 = vrot.slane %v3761, 7
        %v3808 = vrot.slane %v3807, 2
        %v3809 = vrot.slane %v3762, 7
        %v3810 = vsel %vm1430, %v3808, %v3809
        %v3811 = vrot.slane %v3769, 7
        %v3812 = vrot.slane %v3811, 2
        %v3813 = vrot.slane %v3770, 7
        %v3814 = vsel %vm1430, %v3812, %v3813
        %v3815 = vrot.slane %v3777, 7
        %v3816 = vrot.slane %v3815, 2
        %v3817 = vrot.slane %v3778, 7
        %v3818 = vsel %vm1430, %v3816, %v3817
        %v3819 = vrot.slane %v3785, 7
        %v3820 = vrot.slane %v3819, 2
        %v3821 = vrot.slane %v3786, 7
        %v3822 = vsel %vm1430, %v3820, %v3821
        %v3823 = vrot.slane %v3793, 7
        %v3824 = vrot.slane %v3823, 2
        %v3825 = vrot.slane %v3794, 7
        %v3826 = vsel %vm1430, %v3824, %v3825
        %v3827 = vcombine.low %v3798, %v3802
        %v3829 = vunpack.c.l.s4 1983009808
        %v3830 = vunpack.c.0.s8 %v3829
        %v3831 = vlaneseq
        %v3832 = vshrl.u32 %v3831, 7
        %v3833 = vsub.s32 %v3830, %v3832
        %v3834 = vrot.slane %v3827, %v3833
        %v3835 = vcombine.low %v3806, %v3810
        %v3837 = vunpack.c.l.s4 1983009808
        %v3838 = vunpack.c.0.s8 %v3837
        %v3839 = vlaneseq
        %v3840 = vshrl.u32 %v3839, 7
        %v3841 = vsub.s32 %v3838, %v3840
        %v3842 = vrot.slane %v3835, %v3841
        %v3843 = vcombine.low %v3814, %v3818
        %v3845 = vunpack.c.l.s4 1983009808
        %v3846 = vunpack.c.0.s8 %v3845
        %v3847 = vlaneseq
        %v3848 = vshrl.u32 %v3847, 7
        %v3849 = vsub.s32 %v3846, %v3848
        %v3850 = vrot.slane %v3843, %v3849
        %v3851 = vcombine.low %v3822, %v3826
        %v3853 = vunpack.c.l.s4 1983009808
        %v3854 = vunpack.c.0.s8 %v3853
        %v3855 = vlaneseq
        %v3856 = vshrl.u32 %v3855, 7
        %v3857 = vsub.s32 %v3854, %v3856
        %v3858 = vrot.slane %v3851, %v3857
        %3859 = vrot.lane.b32.xlu0 %v3834, 68
        %v3860 = vpop.permute.xlu0 %3859
        %3861 = vrot.lane.b32.xlu0 %v3842, 68
        %v3862 = vpop.permute.xlu0 %3861
        %3863 = vrot.lane.b32.xlu0 %v3850, 68
        %v3864 = vpop.permute.xlu0 %3863
        %3865 = vrot.lane.b32.xlu0 %v3858, 68
        %v3866 = vpop.permute.xlu0 %3865
        %vm3871 = vcmask 585248
        %3872 = vst.msk [vmem:[#allocation3] sm:$0xf] %vm3871, %v3860
        %3873 = vst.msk [vmem:[#allocation3 + $0x4] sm:$0xf] %vm3871, %v3862
        %3874 = vst.msk [vmem:[#allocation3 + $0x8] sm:$0xf] %vm3871, %v3864
        %3875 = vst.msk [vmem:[#allocation3 + $0xc] sm:$0xf] %vm3871, %v3866
        %s3876 = sadd.s32 %s404, 4
        %p3877 = scmp.lt.s32.totalorder %s3876, 0
        %s3878 = ssub.s32 0, %s3876
        %s3879 = scalar_select %p3877, %s3878, %s3876
        %s3880 = sdiv.u32.pop %s3879, 3
        %s3881 = srem.u32.pop %s3879, 3
        %s3882 = ssub.s32 0, %s3881
        %s3883 = scalar_select %p3877, %s3882, %s3881
        %p3884 = scmp.ne.s32.totalorder %s3883, 0
        %p3885 = scmp.lt.s32.totalorder %s3883, 0
        %p3886 = pnand %p3885, %p3884
        %p3887 = pneg %p3886
        %s3888 = sadd.s32 %s3883, 3
        %s3889 = scalar_select %p3887, %s3888, %s3883
        %s3890 = smul.u32 %s3889, 10
        %s3891 = smul.addr %s3890, 4
        %s3892 = scalar_lea.vmem [#allocation2], %s3891
        %v3893 = vld [vmem:[%s3892] sm:$0x3]
        %v3894 = vld [vmem:[%s3892 + $0x4] sm:$0x3]
        %v3895 = vld [vmem:[%s3892 + $0x8] sm:$0x3]
        %v3896 = vld [vmem:[%s3892 + $0xc] sm:$0x3]
        %v3897 = vld [vmem:[%s3892 + $0x10] sm:$0x3]
        %v3898 = vld [vmem:[%s3892 + $0x14] sm:$0x3]
        %v3899 = vld [vmem:[%s3892 + $0x18] sm:$0x3]
        %v3900 = vld [vmem:[%s3892 + $0x1c] sm:$0x3]
        %v3909 = vcombine.low %v3893, %v3894
        %v3911 = vunpack.c.l.s4 1983009808
        %v3912 = vunpack.c.0.s8 %v3911
        %v3913 = vlaneseq
        %v3914 = vshrl.u32 %v3913, 7
        %v3915 = vsub.s32 %v3912, %v3914
        %v3916 = vrot.slane %v3909, %v3915
        %v3917 = vcombine.low %v3895, %v3896
        %v3919 = vunpack.c.l.s4 1983009808
        %v3920 = vunpack.c.0.s8 %v3919
        %v3921 = vlaneseq
        %v3922 = vshrl.u32 %v3921, 7
        %v3923 = vsub.s32 %v3920, %v3922
        %v3924 = vrot.slane %v3917, %v3923
        %v3925 = vcombine.low %v3897, %v3898
        %v3927 = vunpack.c.l.s4 1983009808
        %v3928 = vunpack.c.0.s8 %v3927
        %v3929 = vlaneseq
        %v3930 = vshrl.u32 %v3929, 7
        %v3931 = vsub.s32 %v3928, %v3930
        %v3932 = vrot.slane %v3925, %v3931
        %v3933 = vcombine.low %v3899, %v3900
        %v3935 = vunpack.c.l.s4 1983009808
        %v3936 = vunpack.c.0.s8 %v3935
        %v3937 = vlaneseq
        %v3938 = vshrl.u32 %v3937, 7
        %v3939 = vsub.s32 %v3936, %v3938
        %v3940 = vrot.slane %v3933, %v3939
        %3941 = vrot.lane.b32.xlu0 %v3916, 72
        %v3942 = vpop.permute.xlu0 %3941
        %3943 = vrot.lane.b32.xlu0 %v3924, 72
        %v3944 = vpop.permute.xlu0 %3943
        %3945 = vrot.lane.b32.xlu0 %v3932, 72
        %v3946 = vpop.permute.xlu0 %3945
        %3947 = vrot.lane.b32.xlu0 %v3940, 72
        %v3948 = vpop.permute.xlu0 %3947
        %vm3953 = vcmask 618048
        %3954 = vst.msk [vmem:[#allocation3] sm:$0xf] %vm3953, %v3942
        %3955 = vst.msk [vmem:[#allocation3 + $0x4] sm:$0xf] %vm3953, %v3944
        %3956 = vst.msk [vmem:[#allocation3 + $0x8] sm:$0xf] %vm3953, %v3946
        %3957 = vst.msk [vmem:[#allocation3 + $0xc] sm:$0xf] %vm3953, %v3948
        %v3958 = vld [vmem:[%s3892] sm:$0x7]
        %v3959 = vld [vmem:[%s3892 + $0x4] sm:$0x7]
        %v3960 = vld [vmem:[%s3892 + $0x8] sm:$0x7]
        %v3961 = vld [vmem:[%s3892 + $0xc] sm:$0x7]
        %v3962 = vld [vmem:[%s3892 + $0x10] sm:$0x7]
        %v3963 = vld [vmem:[%s3892 + $0x14] sm:$0x7]
        %v3964 = vld [vmem:[%s3892 + $0x18] sm:$0x7]
        %v3965 = vld [vmem:[%s3892 + $0x1c] sm:$0x7]
        %v3975 = vunpack.c.l.s4 1983009808
        %v3976 = vunpack.c.0.s8 %v3975
        %v3977 = vlaneseq
        %v3978 = vshrl.u32 %v3977, 7
        %v3979 = vsub.s32 %v3976, %v3978
        %v3980 = vrot.slane %v3958, %v3979
        %v3981 = vcombine.high %v3980, %v3980
        %v3983 = vunpack.c.l.s4 1983009808
        %v3984 = vunpack.c.0.s8 %v3983
        %v3985 = vlaneseq
        %v3986 = vshrl.u32 %v3985, 7
        %v3987 = vsub.s32 %v3984, %v3986
        %v3988 = vrot.slane %v3959, %v3987
        %v3989 = vcombine.high %v3988, %v3988
        %v3991 = vunpack.c.l.s4 1983009808
        %v3992 = vunpack.c.0.s8 %v3991
        %v3993 = vlaneseq
        %v3994 = vshrl.u32 %v3993, 7
        %v3995 = vsub.s32 %v3992, %v3994
        %v3996 = vrot.slane %v3960, %v3995
        %v3997 = vcombine.high %v3996, %v3996
        %v3999 = vunpack.c.l.s4 1983009808
        %v4000 = vunpack.c.0.s8 %v3999
        %v4001 = vlaneseq
        %v4002 = vshrl.u32 %v4001, 7
        %v4003 = vsub.s32 %v4000, %v4002
        %v4004 = vrot.slane %v3961, %v4003
        %v4005 = vcombine.high %v4004, %v4004
        %v4007 = vunpack.c.l.s4 1983009808
        %v4008 = vunpack.c.0.s8 %v4007
        %v4009 = vlaneseq
        %v4010 = vshrl.u32 %v4009, 7
        %v4011 = vsub.s32 %v4008, %v4010
        %v4012 = vrot.slane %v3962, %v4011
        %v4013 = vcombine.high %v4012, %v4012
        %v4015 = vunpack.c.l.s4 1983009808
        %v4016 = vunpack.c.0.s8 %v4015
        %v4017 = vlaneseq
        %v4018 = vshrl.u32 %v4017, 7
        %v4019 = vsub.s32 %v4016, %v4018
        %v4020 = vrot.slane %v3963, %v4019
        %v4021 = vcombine.high %v4020, %v4020
        %v4023 = vunpack.c.l.s4 1983009808
        %v4024 = vunpack.c.0.s8 %v4023
        %v4025 = vlaneseq
        %v4026 = vshrl.u32 %v4025, 7
        %v4027 = vsub.s32 %v4024, %v4026
        %v4028 = vrot.slane %v3964, %v4027
        %v4029 = vcombine.high %v4028, %v4028
        %v4031 = vunpack.c.l.s4 1983009808
        %v4032 = vunpack.c.0.s8 %v4031
        %v4033 = vlaneseq
        %v4034 = vshrl.u32 %v4033, 7
        %v4035 = vsub.s32 %v4032, %v4034
        %v4036 = vrot.slane %v3965, %v4035
        %v4037 = vcombine.high %v4036, %v4036
        %v4039 = vshrl.u32 %v3980, 16
        %v4041 = vrot.slane %v4039, 6
        %v4042 = vshll.u32 %v3980, 16
        %v4044 = vrot.slane %v4042, 7
        %v4045 = vor.u32 %v4041, %v4044
        %v4046 = vrot.slane %v4045, 2
        %v4048 = vshll.u32 %v3981, 16
        %v4050 = vrot.slane %v4048, 7
        %v4051 = vsel %vm1182, %v4046, %v4050
        %v4053 = vshrl.u32 %v3988, 16
        %v4055 = vrot.slane %v4053, 6
        %v4056 = vshll.u32 %v3988, 16
        %v4058 = vrot.slane %v4056, 7
        %v4059 = vor.u32 %v4055, %v4058
        %v4060 = vrot.slane %v4059, 2
        %v4062 = vshll.u32 %v3989, 16
        %v4064 = vrot.slane %v4062, 7
        %v4065 = vsel %vm1182, %v4060, %v4064
        %v4067 = vshrl.u32 %v3996, 16
        %v4069 = vrot.slane %v4067, 6
        %v4070 = vshll.u32 %v3996, 16
        %v4072 = vrot.slane %v4070, 7
        %v4073 = vor.u32 %v4069, %v4072
        %v4074 = vrot.slane %v4073, 2
        %v4076 = vshll.u32 %v3997, 16
        %v4078 = vrot.slane %v4076, 7
        %v4079 = vsel %vm1182, %v4074, %v4078
        %v4081 = vshrl.u32 %v4004, 16
        %v4083 = vrot.slane %v4081, 6
        %v4084 = vshll.u32 %v4004, 16
        %v4086 = vrot.slane %v4084, 7
        %v4087 = vor.u32 %v4083, %v4086
        %v4088 = vrot.slane %v4087, 2
        %v4090 = vshll.u32 %v4005, 16
        %v4092 = vrot.slane %v4090, 7
        %v4093 = vsel %vm1182, %v4088, %v4092
        %v4095 = vshrl.u32 %v4012, 16
        %v4097 = vrot.slane %v4095, 6
        %v4098 = vshll.u32 %v4012, 16
        %v4100 = vrot.slane %v4098, 7
        %v4101 = vor.u32 %v4097, %v4100
        %v4102 = vrot.slane %v4101, 2
        %v4104 = vshll.u32 %v4013, 16
        %v4106 = vrot.slane %v4104, 7
        %v4107 = vsel %vm1182, %v4102, %v4106
        %v4109 = vshrl.u32 %v4020, 16
        %v4111 = vrot.slane %v4109, 6
        %v4112 = vshll.u32 %v4020, 16
        %v4114 = vrot.slane %v4112, 7
        %v4115 = vor.u32 %v4111, %v4114
        %v4116 = vrot.slane %v4115, 2
        %v4118 = vshll.u32 %v4021, 16
        %v4120 = vrot.slane %v4118, 7
        %v4121 = vsel %vm1182, %v4116, %v4120
        %v4123 = vshrl.u32 %v4028, 16
        %v4125 = vrot.slane %v4123, 6
        %v4126 = vshll.u32 %v4028, 16
        %v4128 = vrot.slane %v4126, 7
        %v4129 = vor.u32 %v4125, %v4128
        %v4130 = vrot.slane %v4129, 2
        %v4132 = vshll.u32 %v4029, 16
        %v4134 = vrot.slane %v4132, 7
        %v4135 = vsel %vm1182, %v4130, %v4134
        %v4137 = vshrl.u32 %v4036, 16
        %v4139 = vrot.slane %v4137, 6
        %v4140 = vshll.u32 %v4036, 16
        %v4142 = vrot.slane %v4140, 7
        %v4143 = vor.u32 %v4139, %v4142
        %v4144 = vrot.slane %v4143, 2
        %v4146 = vshll.u32 %v4037, 16
        %v4148 = vrot.slane %v4146, 7
        %v4149 = vsel %vm1182, %v4144, %v4148
        %v4150 = vcombine.low %v4051, %v4065
        %v4152 = vunpack.c.l.s4 1983009808
        %v4153 = vunpack.c.0.s8 %v4152
        %v4154 = vlaneseq
        %v4155 = vshrl.u32 %v4154, 7
        %v4156 = vsub.s32 %v4153, %v4155
        %v4157 = vrot.slane %v4150, %v4156
        %v4158 = vcombine.low %v4079, %v4093
        %v4160 = vunpack.c.l.s4 1983009808
        %v4161 = vunpack.c.0.s8 %v4160
        %v4162 = vlaneseq
        %v4163 = vshrl.u32 %v4162, 7
        %v4164 = vsub.s32 %v4161, %v4163
        %v4165 = vrot.slane %v4158, %v4164
        %v4166 = vcombine.low %v4107, %v4121
        %v4168 = vunpack.c.l.s4 1983009808
        %v4169 = vunpack.c.0.s8 %v4168
        %v4170 = vlaneseq
        %v4171 = vshrl.u32 %v4170, 7
        %v4172 = vsub.s32 %v4169, %v4171
        %v4173 = vrot.slane %v4166, %v4172
        %v4174 = vcombine.low %v4135, %v4149
        %v4176 = vunpack.c.l.s4 1983009808
        %v4177 = vunpack.c.0.s8 %v4176
        %v4178 = vlaneseq
        %v4179 = vshrl.u32 %v4178, 7
        %v4180 = vsub.s32 %v4177, %v4179
        %v4181 = vrot.slane %v4174, %v4180
        %4182 = vrot.lane.b32.xlu0 %v4157, 76
        %v4183 = vpop.permute.xlu0 %4182
        %4184 = vrot.lane.b32.xlu0 %v4165, 76
        %v4185 = vpop.permute.xlu0 %4184
        %4186 = vrot.lane.b32.xlu0 %v4173, 76
        %v4187 = vpop.permute.xlu0 %4186
        %4188 = vrot.lane.b32.xlu0 %v4181, 76
        %v4189 = vpop.permute.xlu0 %4188
        %vm4194 = vcmask 650848
        %4195 = vst.msk [vmem:[#allocation3] sm:$0xf] %vm4194, %v4183
        %4196 = vst.msk [vmem:[#allocation3 + $0x4] sm:$0xf] %vm4194, %v4185
        %4197 = vst.msk [vmem:[#allocation3 + $0x8] sm:$0xf] %vm4194, %v4187
        %4198 = vst.msk [vmem:[#allocation3 + $0xc] sm:$0xf] %vm4194, %v4189
        %v4199 = vld [vmem:[%s3892] sm:$0x6]
        %v4200 = vld [vmem:[%s3892 + $0x4] sm:$0x6]
        %v4201 = vld [vmem:[%s3892 + $0x8] sm:$0x6]
        %v4202 = vld [vmem:[%s3892 + $0xc] sm:$0x6]
        %v4203 = vld [vmem:[%s3892 + $0x10] sm:$0x6]
        %v4204 = vld [vmem:[%s3892 + $0x14] sm:$0x6]
        %v4205 = vld [vmem:[%s3892 + $0x18] sm:$0x6]
        %v4206 = vld [vmem:[%s3892 + $0x1c] sm:$0x6]
        %v4216 = vunpack.c.l.s4 1983009808
        %v4217 = vunpack.c.0.s8 %v4216
        %v4218 = vlaneseq
        %v4219 = vshrl.u32 %v4218, 7
        %v4220 = vsub.s32 %v4217, %v4219
        %v4221 = vrot.slane %v4199, %v4220
        %v4222 = vcombine.high %v4221, %v4221
        %v4224 = vunpack.c.l.s4 1983009808
        %v4225 = vunpack.c.0.s8 %v4224
        %v4226 = vlaneseq
        %v4227 = vshrl.u32 %v4226, 7
        %v4228 = vsub.s32 %v4225, %v4227
        %v4229 = vrot.slane %v4200, %v4228
        %v4230 = vcombine.high %v4229, %v4229
        %v4232 = vunpack.c.l.s4 1983009808
        %v4233 = vunpack.c.0.s8 %v4232
        %v4234 = vlaneseq
        %v4235 = vshrl.u32 %v4234, 7
        %v4236 = vsub.s32 %v4233, %v4235
        %v4237 = vrot.slane %v4201, %v4236
        %v4238 = vcombine.high %v4237, %v4237
        %v4240 = vunpack.c.l.s4 1983009808
        %v4241 = vunpack.c.0.s8 %v4240
        %v4242 = vlaneseq
        %v4243 = vshrl.u32 %v4242, 7
        %v4244 = vsub.s32 %v4241, %v4243
        %v4245 = vrot.slane %v4202, %v4244
        %v4246 = vcombine.high %v4245, %v4245
        %v4248 = vunpack.c.l.s4 1983009808
        %v4249 = vunpack.c.0.s8 %v4248
        %v4250 = vlaneseq
        %v4251 = vshrl.u32 %v4250, 7
        %v4252 = vsub.s32 %v4249, %v4251
        %v4253 = vrot.slane %v4203, %v4252
        %v4254 = vcombine.high %v4253, %v4253
        %v4256 = vunpack.c.l.s4 1983009808
        %v4257 = vunpack.c.0.s8 %v4256
        %v4258 = vlaneseq
        %v4259 = vshrl.u32 %v4258, 7
        %v4260 = vsub.s32 %v4257, %v4259
        %v4261 = vrot.slane %v4204, %v4260
        %v4262 = vcombine.high %v4261, %v4261
        %v4264 = vunpack.c.l.s4 1983009808
        %v4265 = vunpack.c.0.s8 %v4264
        %v4266 = vlaneseq
        %v4267 = vshrl.u32 %v4266, 7
        %v4268 = vsub.s32 %v4265, %v4267
        %v4269 = vrot.slane %v4205, %v4268
        %v4270 = vcombine.high %v4269, %v4269
        %v4272 = vunpack.c.l.s4 1983009808
        %v4273 = vunpack.c.0.s8 %v4272
        %v4274 = vlaneseq
        %v4275 = vshrl.u32 %v4274, 7
        %v4276 = vsub.s32 %v4273, %v4275
        %v4277 = vrot.slane %v4206, %v4276
        %v4278 = vcombine.high %v4277, %v4277
        %v4279 = vrot.slane %v4221, 7
        %v4280 = vrot.slane %v4279, 2
        %v4281 = vrot.slane %v4222, 7
        %v4282 = vsel %vm1430, %v4280, %v4281
        %v4283 = vrot.slane %v4229, 7
        %v4284 = vrot.slane %v4283, 2
        %v4285 = vrot.slane %v4230, 7
        %v4286 = vsel %vm1430, %v4284, %v4285
        %v4287 = vrot.slane %v4237, 7
        %v4288 = vrot.slane %v4287, 2
        %v4289 = vrot.slane %v4238, 7
        %v4290 = vsel %vm1430, %v4288, %v4289
        %v4291 = vrot.slane %v4245, 7
        %v4292 = vrot.slane %v4291, 2
        %v4293 = vrot.slane %v4246, 7
        %v4294 = vsel %vm1430, %v4292, %v4293
        %v4295 = vrot.slane %v4253, 7
        %v4296 = vrot.slane %v4295, 2
        %v4297 = vrot.slane %v4254, 7
        %v4298 = vsel %vm1430, %v4296, %v4297
        %v4299 = vrot.slane %v4261, 7
        %v4300 = vrot.slane %v4299, 2
        %v4301 = vrot.slane %v4262, 7
        %v4302 = vsel %vm1430, %v4300, %v4301
        %v4303 = vrot.slane %v4269, 7
        %v4304 = vrot.slane %v4303, 2
        %v4305 = vrot.slane %v4270, 7
        %v4306 = vsel %vm1430, %v4304, %v4305
        %v4307 = vrot.slane %v4277, 7
        %v4308 = vrot.slane %v4307, 2
        %v4309 = vrot.slane %v4278, 7
        %v4310 = vsel %vm1430, %v4308, %v4309
        %v4311 = vcombine.low %v4282, %v4286
        %v4313 = vunpack.c.l.s4 1983009808
        %v4314 = vunpack.c.0.s8 %v4313
        %v4315 = vlaneseq
        %v4316 = vshrl.u32 %v4315, 7
        %v4317 = vsub.s32 %v4314, %v4316
        %v4318 = vrot.slane %v4311, %v4317
        %v4319 = vcombine.low %v4290, %v4294
        %v4321 = vunpack.c.l.s4 1983009808
        %v4322 = vunpack.c.0.s8 %v4321
        %v4323 = vlaneseq
        %v4324 = vshrl.u32 %v4323, 7
        %v4325 = vsub.s32 %v4322, %v4324
        %v4326 = vrot.slane %v4319, %v4325
        %v4327 = vcombine.low %v4298, %v4302
        %v4329 = vunpack.c.l.s4 1983009808
        %v4330 = vunpack.c.0.s8 %v4329
        %v4331 = vlaneseq
        %v4332 = vshrl.u32 %v4331, 7
        %v4333 = vsub.s32 %v4330, %v4332
        %v4334 = vrot.slane %v4327, %v4333
        %v4335 = vcombine.low %v4306, %v4310
        %v4337 = vunpack.c.l.s4 1983009808
        %v4338 = vunpack.c.0.s8 %v4337
        %v4339 = vlaneseq
        %v4340 = vshrl.u32 %v4339, 7
        %v4341 = vsub.s32 %v4338, %v4340
        %v4342 = vrot.slane %v4335, %v4341
        %4343 = vrot.lane.b32.xlu0 %v4318, 80
        %v4344 = vpop.permute.xlu0 %4343
        %4345 = vrot.lane.b32.xlu0 %v4326, 80
        %v4346 = vpop.permute.xlu0 %4345
        %4347 = vrot.lane.b32.xlu0 %v4334, 80
        %v4348 = vpop.permute.xlu0 %4347
        %4349 = vrot.lane.b32.xlu0 %v4342, 80
        %v4350 = vpop.permute.xlu0 %4349
        %vm4355 = vcmask 683648
        %4356 = vst.msk [vmem:[#allocation3] sm:$0xf] %vm4355, %v4344
        %4357 = vst.msk [vmem:[#allocation3 + $0x4] sm:$0xf] %vm4355, %v4346
        %4358 = vst.msk [vmem:[#allocation3 + $0x8] sm:$0xf] %vm4355, %v4348
        %4359 = vst.msk [vmem:[#allocation3 + $0xc] sm:$0xf] %vm4355, %v4350
        %s4360 = sadd.s32 1, %s3890
        %s4361 = smul.addr %s4360, 4
        %s4362 = scalar_lea.vmem [#allocation2], %s4361
        %v4363 = vld [vmem:[%s4362] sm:$0x3]
        %v4364 = vld [vmem:[%s4362 + $0x4] sm:$0x3]
        %v4365 = vld [vmem:[%s4362 + $0x8] sm:$0x3]
        %v4366 = vld [vmem:[%s4362 + $0xc] sm:$0x3]
        %v4367 = vld [vmem:[%s4362 + $0x10] sm:$0x3]
        %v4368 = vld [vmem:[%s4362 + $0x14] sm:$0x3]
        %v4369 = vld [vmem:[%s4362 + $0x18] sm:$0x3]
        %v4370 = vld [vmem:[%s4362 + $0x1c] sm:$0x3]
        %v4379 = vcombine.low %v4363, %v4364
        %v4381 = vunpack.c.l.s4 1983009808
        %v4382 = vunpack.c.0.s8 %v4381
        %v4383 = vlaneseq
        %v4384 = vshrl.u32 %v4383, 7
        %v4385 = vsub.s32 %v4382, %v4384
        %v4386 = vrot.slane %v4379, %v4385
        %v4387 = vcombine.low %v4365, %v4366
        %v4389 = vunpack.c.l.s4 1983009808
        %v4390 = vunpack.c.0.s8 %v4389
        %v4391 = vlaneseq
        %v4392 = vshrl.u32 %v4391, 7
        %v4393 = vsub.s32 %v4390, %v4392
        %v4394 = vrot.slane %v4387, %v4393
        %v4395 = vcombine.low %v4367, %v4368
        %v4397 = vunpack.c.l.s4 1983009808
        %v4398 = vunpack.c.0.s8 %v4397
        %v4399 = vlaneseq
        %v4400 = vshrl.u32 %v4399, 7
        %v4401 = vsub.s32 %v4398, %v4400
        %v4402 = vrot.slane %v4395, %v4401
        %v4403 = vcombine.low %v4369, %v4370
        %v4405 = vunpack.c.l.s4 1983009808
        %v4406 = vunpack.c.0.s8 %v4405
        %v4407 = vlaneseq
        %v4408 = vshrl.u32 %v4407, 7
        %v4409 = vsub.s32 %v4406, %v4408
        %v4410 = vrot.slane %v4403, %v4409
        %4411 = vrot.lane.b32.xlu0 %v4386, 84
        %v4412 = vpop.permute.xlu0 %4411
        %4413 = vrot.lane.b32.xlu0 %v4394, 84
        %v4414 = vpop.permute.xlu0 %4413
        %4415 = vrot.lane.b32.xlu0 %v4402, 84
        %v4416 = vpop.permute.xlu0 %4415
        %4417 = vrot.lane.b32.xlu0 %v4410, 84
        %v4418 = vpop.permute.xlu0 %4417
        %vm4423 = vcmask 716448
        %4424 = vst.msk [vmem:[#allocation3] sm:$0xf] %vm4423, %v4412
        %4425 = vst.msk [vmem:[#allocation3 + $0x4] sm:$0xf] %vm4423, %v4414
        %4426 = vst.msk [vmem:[#allocation3 + $0x8] sm:$0xf] %vm4423, %v4416
        %4427 = vst.msk [vmem:[#allocation3 + $0xc] sm:$0xf] %vm4423, %v4418
        %v4428 = vld [vmem:[%s4362] sm:$0x7]
        %v4429 = vld [vmem:[%s4362 + $0x4] sm:$0x7]
        %v4430 = vld [vmem:[%s4362 + $0x8] sm:$0x7]
        %v4431 = vld [vmem:[%s4362 + $0xc] sm:$0x7]
        %v4432 = vld [vmem:[%s4362 + $0x10] sm:$0x7]
        %v4433 = vld [vmem:[%s4362 + $0x14] sm:$0x7]
        %v4434 = vld [vmem:[%s4362 + $0x18] sm:$0x7]
        %v4435 = vld [vmem:[%s4362 + $0x1c] sm:$0x7]
        %v4445 = vunpack.c.l.s4 1983009808
        %v4446 = vunpack.c.0.s8 %v4445
        %v4447 = vlaneseq
        %v4448 = vshrl.u32 %v4447, 7
        %v4449 = vsub.s32 %v4446, %v4448
        %v4450 = vrot.slane %v4428, %v4449
        %v4451 = vcombine.high %v4450, %v4450
        %v4453 = vunpack.c.l.s4 1983009808
        %v4454 = vunpack.c.0.s8 %v4453
        %v4455 = vlaneseq
        %v4456 = vshrl.u32 %v4455, 7
        %v4457 = vsub.s32 %v4454, %v4456
        %v4458 = vrot.slane %v4429, %v4457
        %v4459 = vcombine.high %v4458, %v4458
        %v4461 = vunpack.c.l.s4 1983009808
        %v4462 = vunpack.c.0.s8 %v4461
        %v4463 = vlaneseq
        %v4464 = vshrl.u32 %v4463, 7
        %v4465 = vsub.s32 %v4462, %v4464
        %v4466 = vrot.slane %v4430, %v4465
        %v4467 = vcombine.high %v4466, %v4466
        %v4469 = vunpack.c.l.s4 1983009808
        %v4470 = vunpack.c.0.s8 %v4469
        %v4471 = vlaneseq
        %v4472 = vshrl.u32 %v4471, 7
        %v4473 = vsub.s32 %v4470, %v4472
        %v4474 = vrot.slane %v4431, %v4473
        %v4475 = vcombine.high %v4474, %v4474
        %v4477 = vunpack.c.l.s4 1983009808
        %v4478 = vunpack.c.0.s8 %v4477
        %v4479 = vlaneseq
        %v4480 = vshrl.u32 %v4479, 7
        %v4481 = vsub.s32 %v4478, %v4480
        %v4482 = vrot.slane %v4432, %v4481
        %v4483 = vcombine.high %v4482, %v4482
        %v4485 = vunpack.c.l.s4 1983009808
        %v4486 = vunpack.c.0.s8 %v4485
        %v4487 = vlaneseq
        %v4488 = vshrl.u32 %v4487, 7
        %v4489 = vsub.s32 %v4486, %v4488
        %v4490 = vrot.slane %v4433, %v4489
        %v4491 = vcombine.high %v4490, %v4490
        %v4493 = vunpack.c.l.s4 1983009808
        %v4494 = vunpack.c.0.s8 %v4493
        %v4495 = vlaneseq
        %v4496 = vshrl.u32 %v4495, 7
        %v4497 = vsub.s32 %v4494, %v4496
        %v4498 = vrot.slane %v4434, %v4497
        %v4499 = vcombine.high %v4498, %v4498
        %v4501 = vunpack.c.l.s4 1983009808
        %v4502 = vunpack.c.0.s8 %v4501
        %v4503 = vlaneseq
        %v4504 = vshrl.u32 %v4503, 7
        %v4505 = vsub.s32 %v4502, %v4504
        %v4506 = vrot.slane %v4435, %v4505
        %v4507 = vcombine.high %v4506, %v4506
        %v4509 = vshrl.u32 %v4450, 16
        %v4511 = vrot.slane %v4509, 6
        %v4512 = vshll.u32 %v4450, 16
        %v4514 = vrot.slane %v4512, 7
        %v4515 = vor.u32 %v4511, %v4514
        %v4516 = vrot.slane %v4515, 2
        %v4518 = vshll.u32 %v4451, 16
        %v4520 = vrot.slane %v4518, 7
        %v4521 = vsel %vm1182, %v4516, %v4520
        %v4523 = vshrl.u32 %v4458, 16
        %v4525 = vrot.slane %v4523, 6
        %v4526 = vshll.u32 %v4458, 16
        %v4528 = vrot.slane %v4526, 7
        %v4529 = vor.u32 %v4525, %v4528
        %v4530 = vrot.slane %v4529, 2
        %v4532 = vshll.u32 %v4459, 16
        %v4534 = vrot.slane %v4532, 7
        %v4535 = vsel %vm1182, %v4530, %v4534
        %v4537 = vshrl.u32 %v4466, 16
        %v4539 = vrot.slane %v4537, 6
        %v4540 = vshll.u32 %v4466, 16
        %v4542 = vrot.slane %v4540, 7
        %v4543 = vor.u32 %v4539, %v4542
        %v4544 = vrot.slane %v4543, 2
        %v4546 = vshll.u32 %v4467, 16
        %v4548 = vrot.slane %v4546, 7
        %v4549 = vsel %vm1182, %v4544, %v4548
        %v4551 = vshrl.u32 %v4474, 16
        %v4553 = vrot.slane %v4551, 6
        %v4554 = vshll.u32 %v4474, 16
        %v4556 = vrot.slane %v4554, 7
        %v4557 = vor.u32 %v4553, %v4556
        %v4558 = vrot.slane %v4557, 2
        %v4560 = vshll.u32 %v4475, 16
        %v4562 = vrot.slane %v4560, 7
        %v4563 = vsel %vm1182, %v4558, %v4562
        %v4565 = vshrl.u32 %v4482, 16
        %v4567 = vrot.slane %v4565, 6
        %v4568 = vshll.u32 %v4482, 16
        %v4570 = vrot.slane %v4568, 7
        %v4571 = vor.u32 %v4567, %v4570
        %v4572 = vrot.slane %v4571, 2
        %v4574 = vshll.u32 %v4483, 16
        %v4576 = vrot.slane %v4574, 7
        %v4577 = vsel %vm1182, %v4572, %v4576
        %v4579 = vshrl.u32 %v4490, 16
        %v4581 = vrot.slane %v4579, 6
        %v4582 = vshll.u32 %v4490, 16
        %v4584 = vrot.slane %v4582, 7
        %v4585 = vor.u32 %v4581, %v4584
        %v4586 = vrot.slane %v4585, 2
        %v4588 = vshll.u32 %v4491, 16
        %v4590 = vrot.slane %v4588, 7
        %v4591 = vsel %vm1182, %v4586, %v4590
        %v4593 = vshrl.u32 %v4498, 16
        %v4595 = vrot.slane %v4593, 6
        %v4596 = vshll.u32 %v4498, 16
        %v4598 = vrot.slane %v4596, 7
        %v4599 = vor.u32 %v4595, %v4598
        %v4600 = vrot.slane %v4599, 2
        %v4602 = vshll.u32 %v4499, 16
        %v4604 = vrot.slane %v4602, 7
        %v4605 = vsel %vm1182, %v4600, %v4604
        %v4607 = vshrl.u32 %v4506, 16
        %v4609 = vrot.slane %v4607, 6
        %v4610 = vshll.u32 %v4506, 16
        %v4612 = vrot.slane %v4610, 7
        %v4613 = vor.u32 %v4609, %v4612
        %v4614 = vrot.slane %v4613, 2
        %v4616 = vshll.u32 %v4507, 16
        %v4618 = vrot.slane %v4616, 7
        %v4619 = vsel %vm1182, %v4614, %v4618
        %v4620 = vcombine.low %v4521, %v4535
        %v4622 = vunpack.c.l.s4 1983009808
        %v4623 = vunpack.c.0.s8 %v4622
        %v4624 = vlaneseq
        %v4625 = vshrl.u32 %v4624, 7
        %v4626 = vsub.s32 %v4623, %v4625
        %v4627 = vrot.slane %v4620, %v4626
        %v4628 = vcombine.low %v4549, %v4563
        %v4630 = vunpack.c.l.s4 1983009808
        %v4631 = vunpack.c.0.s8 %v4630
        %v4632 = vlaneseq
        %v4633 = vshrl.u32 %v4632, 7
        %v4634 = vsub.s32 %v4631, %v4633
        %v4635 = vrot.slane %v4628, %v4634
        %v4636 = vcombine.low %v4577, %v4591
        %v4638 = vunpack.c.l.s4 1983009808
        %v4639 = vunpack.c.0.s8 %v4638
        %v4640 = vlaneseq
        %v4641 = vshrl.u32 %v4640, 7
        %v4642 = vsub.s32 %v4639, %v4641
        %v4643 = vrot.slane %v4636, %v4642
        %v4644 = vcombine.low %v4605, %v4619
        %v4646 = vunpack.c.l.s4 1983009808
        %v4647 = vunpack.c.0.s8 %v4646
        %v4648 = vlaneseq
        %v4649 = vshrl.u32 %v4648, 7
        %v4650 = vsub.s32 %v4647, %v4649
        %v4651 = vrot.slane %v4644, %v4650
        %4652 = vrot.lane.b32.xlu0 %v4627, 88
        %v4653 = vpop.permute.xlu0 %4652
        %4654 = vrot.lane.b32.xlu0 %v4635, 88
        %v4655 = vpop.permute.xlu0 %4654
        %4656 = vrot.lane.b32.xlu0 %v4643, 88
        %v4657 = vpop.permute.xlu0 %4656
        %4658 = vrot.lane.b32.xlu0 %v4651, 88
        %v4659 = vpop.permute.xlu0 %4658
        %vm4664 = vcmask 749248
        %4665 = vst.msk [vmem:[#allocation3] sm:$0xf] %vm4664, %v4653
        %4666 = vst.msk [vmem:[#allocation3 + $0x4] sm:$0xf] %vm4664, %v4655
        %4667 = vst.msk [vmem:[#allocation3 + $0x8] sm:$0xf] %vm4664, %v4657
        %4668 = vst.msk [vmem:[#allocation3 + $0xc] sm:$0xf] %vm4664, %v4659
        %v4669 = vld [vmem:[%s4362] sm:$0x6]
        %v4670 = vld [vmem:[%s4362 + $0x4] sm:$0x6]
        %v4671 = vld [vmem:[%s4362 + $0x8] sm:$0x6]
        %v4672 = vld [vmem:[%s4362 + $0xc] sm:$0x6]
        %v4673 = vld [vmem:[%s4362 + $0x10] sm:$0x6]
        %v4674 = vld [vmem:[%s4362 + $0x14] sm:$0x6]
        %v4675 = vld [vmem:[%s4362 + $0x18] sm:$0x6]
        %v4676 = vld [vmem:[%s4362 + $0x1c] sm:$0x6]
        %v4686 = vunpack.c.l.s4 1983009808
        %v4687 = vunpack.c.0.s8 %v4686
        %v4688 = vlaneseq
        %v4689 = vshrl.u32 %v4688, 7
        %v4690 = vsub.s32 %v4687, %v4689
        %v4691 = vrot.slane %v4669, %v4690
        %v4692 = vcombine.high %v4691, %v4691
        %v4694 = vunpack.c.l.s4 1983009808
        %v4695 = vunpack.c.0.s8 %v4694
        %v4696 = vlaneseq
        %v4697 = vshrl.u32 %v4696, 7
        %v4698 = vsub.s32 %v4695, %v4697
        %v4699 = vrot.slane %v4670, %v4698
        %v4700 = vcombine.high %v4699, %v4699
        %v4702 = vunpack.c.l.s4 1983009808
        %v4703 = vunpack.c.0.s8 %v4702
        %v4704 = vlaneseq
        %v4705 = vshrl.u32 %v4704, 7
        %v4706 = vsub.s32 %v4703, %v4705
        %v4707 = vrot.slane %v4671, %v4706
        %v4708 = vcombine.high %v4707, %v4707
        %v4710 = vunpack.c.l.s4 1983009808
        %v4711 = vunpack.c.0.s8 %v4710
        %v4712 = vlaneseq
        %v4713 = vshrl.u32 %v4712, 7
        %v4714 = vsub.s32 %v4711, %v4713
        %v4715 = vrot.slane %v4672, %v4714
        %v4716 = vcombine.high %v4715, %v4715
        %v4718 = vunpack.c.l.s4 1983009808
        %v4719 = vunpack.c.0.s8 %v4718
        %v4720 = vlaneseq
        %v4721 = vshrl.u32 %v4720, 7
        %v4722 = vsub.s32 %v4719, %v4721
        %v4723 = vrot.slane %v4673, %v4722
        %v4724 = vcombine.high %v4723, %v4723
        %v4726 = vunpack.c.l.s4 1983009808
        %v4727 = vunpack.c.0.s8 %v4726
        %v4728 = vlaneseq
        %v4729 = vshrl.u32 %v4728, 7
        %v4730 = vsub.s32 %v4727, %v4729
        %v4731 = vrot.slane %v4674, %v4730
        %v4732 = vcombine.high %v4731, %v4731
        %v4734 = vunpack.c.l.s4 1983009808
        %v4735 = vunpack.c.0.s8 %v4734
        %v4736 = vlaneseq
        %v4737 = vshrl.u32 %v4736, 7
        %v4738 = vsub.s32 %v4735, %v4737
        %v4739 = vrot.slane %v4675, %v4738
        %v4740 = vcombine.high %v4739, %v4739
        %v4742 = vunpack.c.l.s4 1983009808
        %v4743 = vunpack.c.0.s8 %v4742
        %v4744 = vlaneseq
        %v4745 = vshrl.u32 %v4744, 7
        %v4746 = vsub.s32 %v4743, %v4745
        %v4747 = vrot.slane %v4676, %v4746
        %v4748 = vcombine.high %v4747, %v4747
        %v4749 = vrot.slane %v4691, 7
        %v4750 = vrot.slane %v4749, 2
        %v4751 = vrot.slane %v4692, 7
        %v4752 = vsel %vm1430, %v4750, %v4751
        %v4753 = vrot.slane %v4699, 7
        %v4754 = vrot.slane %v4753, 2
        %v4755 = vrot.slane %v4700, 7
        %v4756 = vsel %vm1430, %v4754, %v4755
        %v4757 = vrot.slane %v4707, 7
        %v4758 = vrot.slane %v4757, 2
        %v4759 = vrot.slane %v4708, 7
        %v4760 = vsel %vm1430, %v4758, %v4759
        %v4761 = vrot.slane %v4715, 7
        %v4762 = vrot.slane %v4761, 2
        %v4763 = vrot.slane %v4716, 7
        %v4764 = vsel %vm1430, %v4762, %v4763
        %v4765 = vrot.slane %v4723, 7
        %v4766 = vrot.slane %v4765, 2
        %v4767 = vrot.slane %v4724, 7
        %v4768 = vsel %vm1430, %v4766, %v4767
        %v4769 = vrot.slane %v4731, 7
        %v4770 = vrot.slane %v4769, 2
        %v4771 = vrot.slane %v4732, 7
        %v4772 = vsel %vm1430, %v4770, %v4771
        %v4773 = vrot.slane %v4739, 7
        %v4774 = vrot.slane %v4773, 2
        %v4775 = vrot.slane %v4740, 7
        %v4776 = vsel %vm1430, %v4774, %v4775
        %v4777 = vrot.slane %v4747, 7
        %v4778 = vrot.slane %v4777, 2
        %v4779 = vrot.slane %v4748, 7
        %v4780 = vsel %vm1430, %v4778, %v4779
        %v4781 = vcombine.low %v4752, %v4756
        %v4783 = vunpack.c.l.s4 1983009808
        %v4784 = vunpack.c.0.s8 %v4783
        %v4785 = vlaneseq
        %v4786 = vshrl.u32 %v4785, 7
        %v4787 = vsub.s32 %v4784, %v4786
        %v4788 = vrot.slane %v4781, %v4787
        %v4789 = vcombine.low %v4760, %v4764
        %v4791 = vunpack.c.l.s4 1983009808
        %v4792 = vunpack.c.0.s8 %v4791
        %v4793 = vlaneseq
        %v4794 = vshrl.u32 %v4793, 7
        %v4795 = vsub.s32 %v4792, %v4794
        %v4796 = vrot.slane %v4789, %v4795
        %v4797 = vcombine.low %v4768, %v4772
        %v4799 = vunpack.c.l.s4 1983009808
        %v4800 = vunpack.c.0.s8 %v4799
        %v4801 = vlaneseq
        %v4802 = vshrl.u32 %v4801, 7
        %v4803 = vsub.s32 %v4800, %v4802
        %v4804 = vrot.slane %v4797, %v4803
        %v4805 = vcombine.low %v4776, %v4780
        %v4807 = vunpack.c.l.s4 1983009808
        %v4808 = vunpack.c.0.s8 %v4807
        %v4809 = vlaneseq
        %v4810 = vshrl.u32 %v4809, 7
        %v4811 = vsub.s32 %v4808, %v4810
        %v4812 = vrot.slane %v4805, %v4811
        %4813 = vrot.lane.b32.xlu0 %v4788, 92
        %v4814 = vpop.permute.xlu0 %4813
        %4815 = vrot.lane.b32.xlu0 %v4796, 92
        %v4816 = vpop.permute.xlu0 %4815
        %4817 = vrot.lane.b32.xlu0 %v4804, 92
        %v4818 = vpop.permute.xlu0 %4817
        %4819 = vrot.lane.b32.xlu0 %v4812, 92
        %v4820 = vpop.permute.xlu0 %4819
        %vm4825 = vcmask 782048
        %4826 = vst.msk [vmem:[#allocation3] sm:$0xf] %vm4825, %v4814
        %4827 = vst.msk [vmem:[#allocation3 + $0x4] sm:$0xf] %vm4825, %v4816
        %4828 = vst.msk [vmem:[#allocation3 + $0x8] sm:$0xf] %vm4825, %v4818
        %4829 = vst.msk [vmem:[#allocation3 + $0xc] sm:$0xf] %vm4825, %v4820
        %s4830 = sadd.s32 2, %s3890
        %s4831 = smul.addr %s4830, 4
        %s4832 = scalar_lea.vmem [#allocation2], %s4831
        %v4833 = vld [vmem:[%s4832] sm:$0x3]
        %v4834 = vld [vmem:[%s4832 + $0x4] sm:$0x3]
        %v4835 = vld [vmem:[%s4832 + $0x8] sm:$0x3]
        %v4836 = vld [vmem:[%s4832 + $0xc] sm:$0x3]
        %v4837 = vld [vmem:[%s4832 + $0x10] sm:$0x3]
        %v4838 = vld [vmem:[%s4832 + $0x14] sm:$0x3]
        %v4839 = vld [vmem:[%s4832 + $0x18] sm:$0x3]
        %v4840 = vld [vmem:[%s4832 + $0x1c] sm:$0x3]
        %v4849 = vcombine.low %v4833, %v4834
        %v4851 = vunpack.c.l.s4 1983009808
        %v4852 = vunpack.c.0.s8 %v4851
        %v4853 = vlaneseq
        %v4854 = vshrl.u32 %v4853, 7
        %v4855 = vsub.s32 %v4852, %v4854
        %v4856 = vrot.slane %v4849, %v4855
        %v4857 = vcombine.low %v4835, %v4836
        %v4859 = vunpack.c.l.s4 1983009808
        %v4860 = vunpack.c.0.s8 %v4859
        %v4861 = vlaneseq
        %v4862 = vshrl.u32 %v4861, 7
        %v4863 = vsub.s32 %v4860, %v4862
        %v4864 = vrot.slane %v4857, %v4863
        %v4865 = vcombine.low %v4837, %v4838
        %v4867 = vunpack.c.l.s4 1983009808
        %v4868 = vunpack.c.0.s8 %v4867
        %v4869 = vlaneseq
        %v4870 = vshrl.u32 %v4869, 7
        %v4871 = vsub.s32 %v4868, %v4870
        %v4872 = vrot.slane %v4865, %v4871
        %v4873 = vcombine.low %v4839, %v4840
        %v4875 = vunpack.c.l.s4 1983009808
        %v4876 = vunpack.c.0.s8 %v4875
        %v4877 = vlaneseq
        %v4878 = vshrl.u32 %v4877, 7
        %v4879 = vsub.s32 %v4876, %v4878
        %v4880 = vrot.slane %v4873, %v4879
        %4881 = vrot.lane.b32.xlu0 %v4856, 96
        %v4882 = vpop.permute.xlu0 %4881
        %4883 = vrot.lane.b32.xlu0 %v4864, 96
        %v4884 = vpop.permute.xlu0 %4883
        %4885 = vrot.lane.b32.xlu0 %v4872, 96
        %v4886 = vpop.permute.xlu0 %4885
        %4887 = vrot.lane.b32.xlu0 %v4880, 96
        %v4888 = vpop.permute.xlu0 %4887
        %vm4893 = vcmask 814848
        %4894 = vst.msk [vmem:[#allocation3] sm:$0xf] %vm4893, %v4882
        %4895 = vst.msk [vmem:[#allocation3 + $0x4] sm:$0xf] %vm4893, %v4884
        %4896 = vst.msk [vmem:[#allocation3 + $0x8] sm:$0xf] %vm4893, %v4886
        %4897 = vst.msk [vmem:[#allocation3 + $0xc] sm:$0xf] %vm4893, %v4888
        %v4898 = vld [vmem:[%s4832] sm:$0x7]
        %v4899 = vld [vmem:[%s4832 + $0x4] sm:$0x7]
        %v4900 = vld [vmem:[%s4832 + $0x8] sm:$0x7]
        %v4901 = vld [vmem:[%s4832 + $0xc] sm:$0x7]
        %v4902 = vld [vmem:[%s4832 + $0x10] sm:$0x7]
        %v4903 = vld [vmem:[%s4832 + $0x14] sm:$0x7]
        %v4904 = vld [vmem:[%s4832 + $0x18] sm:$0x7]
        %v4905 = vld [vmem:[%s4832 + $0x1c] sm:$0x7]
        %v4915 = vunpack.c.l.s4 1983009808
        %v4916 = vunpack.c.0.s8 %v4915
        %v4917 = vlaneseq
        %v4918 = vshrl.u32 %v4917, 7
        %v4919 = vsub.s32 %v4916, %v4918
        %v4920 = vrot.slane %v4898, %v4919
        %v4921 = vcombine.high %v4920, %v4920
        %v4923 = vunpack.c.l.s4 1983009808
        %v4924 = vunpack.c.0.s8 %v4923
        %v4925 = vlaneseq
        %v4926 = vshrl.u32 %v4925, 7
        %v4927 = vsub.s32 %v4924, %v4926
        %v4928 = vrot.slane %v4899, %v4927
        %v4929 = vcombine.high %v4928, %v4928
        %v4931 = vunpack.c.l.s4 1983009808
        %v4932 = vunpack.c.0.s8 %v4931
        %v4933 = vlaneseq
        %v4934 = vshrl.u32 %v4933, 7
        %v4935 = vsub.s32 %v4932, %v4934
        %v4936 = vrot.slane %v4900, %v4935
        %v4937 = vcombine.high %v4936, %v4936
        %v4939 = vunpack.c.l.s4 1983009808
        %v4940 = vunpack.c.0.s8 %v4939
        %v4941 = vlaneseq
        %v4942 = vshrl.u32 %v4941, 7
        %v4943 = vsub.s32 %v4940, %v4942
        %v4944 = vrot.slane %v4901, %v4943
        %v4945 = vcombine.high %v4944, %v4944
        %v4947 = vunpack.c.l.s4 1983009808
        %v4948 = vunpack.c.0.s8 %v4947
        %v4949 = vlaneseq
        %v4950 = vshrl.u32 %v4949, 7
        %v4951 = vsub.s32 %v4948, %v4950
        %v4952 = vrot.slane %v4902, %v4951
        %v4953 = vcombine.high %v4952, %v4952
        %v4955 = vunpack.c.l.s4 1983009808
        %v4956 = vunpack.c.0.s8 %v4955
        %v4957 = vlaneseq
        %v4958 = vshrl.u32 %v4957, 7
        %v4959 = vsub.s32 %v4956, %v4958
        %v4960 = vrot.slane %v4903, %v4959
        %v4961 = vcombine.high %v4960, %v4960
        %v4963 = vunpack.c.l.s4 1983009808
        %v4964 = vunpack.c.0.s8 %v4963
        %v4965 = vlaneseq
        %v4966 = vshrl.u32 %v4965, 7
        %v4967 = vsub.s32 %v4964, %v4966
        %v4968 = vrot.slane %v4904, %v4967
        %v4969 = vcombine.high %v4968, %v4968
        %v4971 = vunpack.c.l.s4 1983009808
        %v4972 = vunpack.c.0.s8 %v4971
        %v4973 = vlaneseq
        %v4974 = vshrl.u32 %v4973, 7
        %v4975 = vsub.s32 %v4972, %v4974
        %v4976 = vrot.slane %v4905, %v4975
        %v4977 = vcombine.high %v4976, %v4976
        %v4979 = vshrl.u32 %v4920, 16
        %v4981 = vrot.slane %v4979, 6
        %v4982 = vshll.u32 %v4920, 16
        %v4984 = vrot.slane %v4982, 7
        %v4985 = vor.u32 %v4981, %v4984
        %v4986 = vrot.slane %v4985, 2
        %v4988 = vshll.u32 %v4921, 16
        %v4990 = vrot.slane %v4988, 7
        %v4991 = vsel %vm1182, %v4986, %v4990
        %v4993 = vshrl.u32 %v4928, 16
        %v4995 = vrot.slane %v4993, 6
        %v4996 = vshll.u32 %v4928, 16
        %v4998 = vrot.slane %v4996, 7
        %v4999 = vor.u32 %v4995, %v4998
        %v5000 = vrot.slane %v4999, 2
        %v5002 = vshll.u32 %v4929, 16
        %v5004 = vrot.slane %v5002, 7
        %v5005 = vsel %vm1182, %v5000, %v5004
        %v5007 = vshrl.u32 %v4936, 16
        %v5009 = vrot.slane %v5007, 6
        %v5010 = vshll.u32 %v4936, 16
        %v5012 = vrot.slane %v5010, 7
        %v5013 = vor.u32 %v5009, %v5012
        %v5014 = vrot.slane %v5013, 2
        %v5016 = vshll.u32 %v4937, 16
        %v5018 = vrot.slane %v5016, 7
        %v5019 = vsel %vm1182, %v5014, %v5018
        %v5021 = vshrl.u32 %v4944, 16
        %v5023 = vrot.slane %v5021, 6
        %v5024 = vshll.u32 %v4944, 16
        %v5026 = vrot.slane %v5024, 7
        %v5027 = vor.u32 %v5023, %v5026
        %v5028 = vrot.slane %v5027, 2
        %v5030 = vshll.u32 %v4945, 16
        %v5032 = vrot.slane %v5030, 7
        %v5033 = vsel %vm1182, %v5028, %v5032
        %v5035 = vshrl.u32 %v4952, 16
        %v5037 = vrot.slane %v5035, 6
        %v5038 = vshll.u32 %v4952, 16
        %v5040 = vrot.slane %v5038, 7
        %v5041 = vor.u32 %v5037, %v5040
        %v5042 = vrot.slane %v5041, 2
        %v5044 = vshll.u32 %v4953, 16
        %v5046 = vrot.slane %v5044, 7
        %v5047 = vsel %vm1182, %v5042, %v5046
        %v5049 = vshrl.u32 %v4960, 16
        %v5051 = vrot.slane %v5049, 6
        %v5052 = vshll.u32 %v4960, 16
        %v5054 = vrot.slane %v5052, 7
        %v5055 = vor.u32 %v5051, %v5054
        %v5056 = vrot.slane %v5055, 2
        %v5058 = vshll.u32 %v4961, 16
        %v5060 = vrot.slane %v5058, 7
        %v5061 = vsel %vm1182, %v5056, %v5060
        %v5063 = vshrl.u32 %v4968, 16
        %v5065 = vrot.slane %v5063, 6
        %v5066 = vshll.u32 %v4968, 16
        %v5068 = vrot.slane %v5066, 7
        %v5069 = vor.u32 %v5065, %v5068
        %v5070 = vrot.slane %v5069, 2
        %v5072 = vshll.u32 %v4969, 16
        %v5074 = vrot.slane %v5072, 7
        %v5075 = vsel %vm1182, %v5070, %v5074
        %v5077 = vshrl.u32 %v4976, 16
        %v5079 = vrot.slane %v5077, 6
        %v5080 = vshll.u32 %v4976, 16
        %v5082 = vrot.slane %v5080, 7
        %v5083 = vor.u32 %v5079, %v5082
        %v5084 = vrot.slane %v5083, 2
        %v5086 = vshll.u32 %v4977, 16
        %v5088 = vrot.slane %v5086, 7
        %v5089 = vsel %vm1182, %v5084, %v5088
        %v5090 = vcombine.low %v4991, %v5005
        %v5092 = vunpack.c.l.s4 1983009808
        %v5093 = vunpack.c.0.s8 %v5092
        %v5094 = vlaneseq
        %v5095 = vshrl.u32 %v5094, 7
        %v5096 = vsub.s32 %v5093, %v5095
        %v5097 = vrot.slane %v5090, %v5096
        %v5098 = vcombine.low %v5019, %v5033
        %v5100 = vunpack.c.l.s4 1983009808
        %v5101 = vunpack.c.0.s8 %v5100
        %v5102 = vlaneseq
        %v5103 = vshrl.u32 %v5102, 7
        %v5104 = vsub.s32 %v5101, %v5103
        %v5105 = vrot.slane %v5098, %v5104
        %v5106 = vcombine.low %v5047, %v5061
        %v5108 = vunpack.c.l.s4 1983009808
        %v5109 = vunpack.c.0.s8 %v5108
        %v5110 = vlaneseq
        %v5111 = vshrl.u32 %v5110, 7
        %v5112 = vsub.s32 %v5109, %v5111
        %v5113 = vrot.slane %v5106, %v5112
        %v5114 = vcombine.low %v5075, %v5089
        %v5116 = vunpack.c.l.s4 1983009808
        %v5117 = vunpack.c.0.s8 %v5116
        %v5118 = vlaneseq
        %v5119 = vshrl.u32 %v5118, 7
        %v5120 = vsub.s32 %v5117, %v5119
        %v5121 = vrot.slane %v5114, %v5120
        %5122 = vrot.lane.b32.xlu0 %v5097, 100
        %v5123 = vpop.permute.xlu0 %5122
        %5124 = vrot.lane.b32.xlu0 %v5105, 100
        %v5125 = vpop.permute.xlu0 %5124
        %5126 = vrot.lane.b32.xlu0 %v5113, 100
        %v5127 = vpop.permute.xlu0 %5126
        %5128 = vrot.lane.b32.xlu0 %v5121, 100
        %v5129 = vpop.permute.xlu0 %5128
        %vm5134 = vcmask 847648
        %5135 = vst.msk [vmem:[#allocation3] sm:$0xf] %vm5134, %v5123
        %5136 = vst.msk [vmem:[#allocation3 + $0x4] sm:$0xf] %vm5134, %v5125
        %5137 = vst.msk [vmem:[#allocation3 + $0x8] sm:$0xf] %vm5134, %v5127
        %5138 = vst.msk [vmem:[#allocation3 + $0xc] sm:$0xf] %vm5134, %v5129
        %v5139 = vld [vmem:[%s4832] sm:$0x6]
        %v5140 = vld [vmem:[%s4832 + $0x4] sm:$0x6]
        %v5141 = vld [vmem:[%s4832 + $0x8] sm:$0x6]
        %v5142 = vld [vmem:[%s4832 + $0xc] sm:$0x6]
        %v5143 = vld [vmem:[%s4832 + $0x10] sm:$0x6]
        %v5144 = vld [vmem:[%s4832 + $0x14] sm:$0x6]
        %v5145 = vld [vmem:[%s4832 + $0x18] sm:$0x6]
        %v5146 = vld [vmem:[%s4832 + $0x1c] sm:$0x6]
        %v5156 = vunpack.c.l.s4 1983009808
        %v5157 = vunpack.c.0.s8 %v5156
        %v5158 = vlaneseq
        %v5159 = vshrl.u32 %v5158, 7
        %v5160 = vsub.s32 %v5157, %v5159
        %v5161 = vrot.slane %v5139, %v5160
        %v5162 = vcombine.high %v5161, %v5161
        %v5164 = vunpack.c.l.s4 1983009808
        %v5165 = vunpack.c.0.s8 %v5164
        %v5166 = vlaneseq
        %v5167 = vshrl.u32 %v5166, 7
        %v5168 = vsub.s32 %v5165, %v5167
        %v5169 = vrot.slane %v5140, %v5168
        %v5170 = vcombine.high %v5169, %v5169
        %v5172 = vunpack.c.l.s4 1983009808
        %v5173 = vunpack.c.0.s8 %v5172
        %v5174 = vlaneseq
        %v5175 = vshrl.u32 %v5174, 7
        %v5176 = vsub.s32 %v5173, %v5175
        %v5177 = vrot.slane %v5141, %v5176
        %v5178 = vcombine.high %v5177, %v5177
        %v5180 = vunpack.c.l.s4 1983009808
        %v5181 = vunpack.c.0.s8 %v5180
        %v5182 = vlaneseq
        %v5183 = vshrl.u32 %v5182, 7
        %v5184 = vsub.s32 %v5181, %v5183
        %v5185 = vrot.slane %v5142, %v5184
        %v5186 = vcombine.high %v5185, %v5185
        %v5188 = vunpack.c.l.s4 1983009808
        %v5189 = vunpack.c.0.s8 %v5188
        %v5190 = vlaneseq
        %v5191 = vshrl.u32 %v5190, 7
        %v5192 = vsub.s32 %v5189, %v5191
        %v5193 = vrot.slane %v5143, %v5192
        %v5194 = vcombine.high %v5193, %v5193
        %v5196 = vunpack.c.l.s4 1983009808
        %v5197 = vunpack.c.0.s8 %v5196
        %v5198 = vlaneseq
        %v5199 = vshrl.u32 %v5198, 7
        %v5200 = vsub.s32 %v5197, %v5199
        %v5201 = vrot.slane %v5144, %v5200
        %v5202 = vcombine.high %v5201, %v5201
        %v5204 = vunpack.c.l.s4 1983009808
        %v5205 = vunpack.c.0.s8 %v5204
        %v5206 = vlaneseq
        %v5207 = vshrl.u32 %v5206, 7
        %v5208 = vsub.s32 %v5205, %v5207
        %v5209 = vrot.slane %v5145, %v5208
        %v5210 = vcombine.high %v5209, %v5209
        %v5212 = vunpack.c.l.s4 1983009808
        %v5213 = vunpack.c.0.s8 %v5212
        %v5214 = vlaneseq
        %v5215 = vshrl.u32 %v5214, 7
        %v5216 = vsub.s32 %v5213, %v5215
        %v5217 = vrot.slane %v5146, %v5216
        %v5218 = vcombine.high %v5217, %v5217
        %v5219 = vrot.slane %v5161, 7
        %v5220 = vrot.slane %v5219, 2
        %v5221 = vrot.slane %v5162, 7
        %v5222 = vsel %vm1430, %v5220, %v5221
        %v5223 = vrot.slane %v5169, 7
        %v5224 = vrot.slane %v5223, 2
        %v5225 = vrot.slane %v5170, 7
        %v5226 = vsel %vm1430, %v5224, %v5225
        %v5227 = vrot.slane %v5177, 7
        %v5228 = vrot.slane %v5227, 2
        %v5229 = vrot.slane %v5178, 7
        %v5230 = vsel %vm1430, %v5228, %v5229
        %v5231 = vrot.slane %v5185, 7
        %v5232 = vrot.slane %v5231, 2
        %v5233 = vrot.slane %v5186, 7
        %v5234 = vsel %vm1430, %v5232, %v5233
        %v5235 = vrot.slane %v5193, 7
        %v5236 = vrot.slane %v5235, 2
        %v5237 = vrot.slane %v5194, 7
        %v5238 = vsel %vm1430, %v5236, %v5237
        %v5239 = vrot.slane %v5201, 7
        %v5240 = vrot.slane %v5239, 2
        %v5241 = vrot.slane %v5202, 7
        %v5242 = vsel %vm1430, %v5240, %v5241
        %v5243 = vrot.slane %v5209, 7
        %v5244 = vrot.slane %v5243, 2
        %v5245 = vrot.slane %v5210, 7
        %v5246 = vsel %vm1430, %v5244, %v5245
        %v5247 = vrot.slane %v5217, 7
        %v5248 = vrot.slane %v5247, 2
        %v5249 = vrot.slane %v5218, 7
        %v5250 = vsel %vm1430, %v5248, %v5249
        %v5251 = vcombine.low %v5222, %v5226
        %v5253 = vunpack.c.l.s4 1983009808
        %v5254 = vunpack.c.0.s8 %v5253
        %v5255 = vlaneseq
        %v5256 = vshrl.u32 %v5255, 7
        %v5257 = vsub.s32 %v5254, %v5256
        %v5258 = vrot.slane %v5251, %v5257
        %v5259 = vcombine.low %v5230, %v5234
        %v5261 = vunpack.c.l.s4 1983009808
        %v5262 = vunpack.c.0.s8 %v5261
        %v5263 = vlaneseq
        %v5264 = vshrl.u32 %v5263, 7
        %v5265 = vsub.s32 %v5262, %v5264
        %v5266 = vrot.slane %v5259, %v5265
        %v5267 = vcombine.low %v5238, %v5242
        %v5269 = vunpack.c.l.s4 1983009808
        %v5270 = vunpack.c.0.s8 %v5269
        %v5271 = vlaneseq
        %v5272 = vshrl.u32 %v5271, 7
        %v5273 = vsub.s32 %v5270, %v5272
        %v5274 = vrot.slane %v5267, %v5273
        %v5275 = vcombine.low %v5246, %v5250
        %v5277 = vunpack.c.l.s4 1983009808
        %v5278 = vunpack.c.0.s8 %v5277
        %v5279 = vlaneseq
        %v5280 = vshrl.u32 %v5279, 7
        %v5281 = vsub.s32 %v5278, %v5280
        %v5282 = vrot.slane %v5275, %v5281
        %5283 = vrot.lane.b32.xlu0 %v5258, 104
        %v5284 = vpop.permute.xlu0 %5283
        %5285 = vrot.lane.b32.xlu0 %v5266, 104
        %v5286 = vpop.permute.xlu0 %5285
        %5287 = vrot.lane.b32.xlu0 %v5274, 104
        %v5288 = vpop.permute.xlu0 %5287
        %5289 = vrot.lane.b32.xlu0 %v5282, 104
        %v5290 = vpop.permute.xlu0 %5289
        %vm5295 = vcmask 880448
        %5296 = vst.msk [vmem:[#allocation3] sm:$0xf] %vm5295, %v5284
        %5297 = vst.msk [vmem:[#allocation3 + $0x4] sm:$0xf] %vm5295, %v5286
        %5298 = vst.msk [vmem:[#allocation3 + $0x8] sm:$0xf] %vm5295, %v5288
        %5299 = vst.msk [vmem:[#allocation3 + $0xc] sm:$0xf] %vm5295, %v5290
        %v5300 = vld [vmem:[#allocation3] sm:$0xf]
        %v5301 = vld [vmem:[#allocation3 + $0x4] sm:$0xf]
        %v5302 = vld [vmem:[#allocation3 + $0x8] sm:$0xf]
        %v5303 = vld [vmem:[#allocation3 + $0xc] sm:$0xf]
        %v5304 = vld [vmem:[%s3] sm:$0xf]
        %v5305 = vld [vmem:[%s3 + $0x4] sm:$0xf]
        %v5306 = vld [vmem:[%s3 + $0x8] sm:$0xf]
        %v5307 = vld [vmem:[%s3 + $0xc] sm:$0xf]
        %v5308 = vld [vmem:[%s3 + $0x10] sm:$0xf]
        %v5309 = vld [vmem:[%s3 + $0x14] sm:$0xf]
        %v5310 = vld [vmem:[%s3 + $0x18] sm:$0xf]
        %v5311 = vld [vmem:[%s3 + $0x1c] sm:$0xf]
        %v5312 = vld [vmem:[%s3 + $0x20] sm:$0xf]
        %v5313 = vld [vmem:[%s3 + $0x24] sm:$0xf]
        %v5314 = vld [vmem:[%s3 + $0x28] sm:$0xf]
        %v5315 = vld [vmem:[%s3 + $0x2c] sm:$0xf]
        %v5316 = vld [vmem:[%s3 + $0x30] sm:$0xf]
        %v5317 = vld [vmem:[%s3 + $0x34] sm:$0x3]
        %v5318 = vld [vmem:[%s4] sm:$0x1]
        %v5320 = vlaneseq
        %v5321 = vshrl.u32 %v5320, 7
        %v5322 = vsub.s32 0, %v5321
        %v5323 = vrot.slane %v5318, %v5322
        %v5329 = vunpack.c.l.b16 %v5300
        %v5330 = vunpack.c.l.b16 %v5301
        %v5331 = vunpack.c.l.b16 %v5302
        %v5332 = vunpack.c.l.b16 %v5303
        %v5333 = vpack.c.b16 %v5330, %v5329
        %v5334 = vpack.c.b16 %v5332, %v5331
        %v5349 = vunpack.c.l.b16 %v5304
        %v5350 = vunpack.c.l.b16 %v5305
        %v5351 = vunpack.c.l.b16 %v5306
        %v5352 = vunpack.c.l.b16 %v5307
        %v5353 = vunpack.c.l.b16 %v5308
        %v5354 = vunpack.c.l.b16 %v5309
        %v5355 = vunpack.c.l.b16 %v5310
        %v5356 = vunpack.c.l.b16 %v5311
        %v5357 = vunpack.c.l.b16 %v5312
        %v5358 = vunpack.c.l.b16 %v5313
        %v5359 = vunpack.c.l.b16 %v5314
        %v5360 = vunpack.c.l.b16 %v5315
        %v5361 = vunpack.c.l.b16 %v5316
        %v5362 = vunpack.c.l.b16 %v5317
        %v5363 = vpack.c.b16 %v5350, %v5349
        %v5364 = vpack.c.b16 %v5352, %v5351
        %v5365 = vpack.c.b16 %v5354, %v5353
        %v5366 = vpack.c.b16 %v5356, %v5355
        %v5367 = vpack.c.b16 %v5358, %v5357
        %v5368 = vpack.c.b16 %v5360, %v5359
        %v5369 = vpack.c.b16 %v5362, %v5361
        %vm5376 = vcmask 883712
        %v5378 = vsel %vm5376, %v5333, 0
        %v5381 = vsel %vm5376, %v5334, 0
        %vm5383 = vcmask 1045504
        %v5385 = vsel %vm5383, %v5369, 0
        %5387 = vmatprep.subr.bf16.mxu0 0
        %5388 = vmatpush1.bf16.msra.mxu0 0
        %5389 = vmatprep.subr.bf16.mxu0 0
        %5390 = vmatpush1.bf16.msra.mxu0 %v5385
        %5391 = vmatprep.subr.bf16.mxu0 0
        %5392 = vmatpush1.bf16.msra.mxu0 %v5368
        %5393 = vmatprep.subr.bf16.mxu0 0
        %5394 = vmatpush1.bf16.msra.mxu0 %v5367
        %5395 = vmatprep.subr.bf16.mxu0 0
        %5396 = vmatpush1.bf16.msra.mxu0 %v5366
        %5397 = vmatprep.subr.bf16.mxu0 0
        %5398 = vmatpush1.bf16.msra.mxu0 %v5365
        %5399 = vmatprep.subr.bf16.mxu0 0
        %5400 = vmatpush1.bf16.msra.mxu0 %v5364
        %5401 = vmatprep.subr.bf16.mxu0 0
        %5402 = vmatpush1.bf16.msra.mxu0 %v5363
        %5403 = vmatprep.subr.bf16.mxu0 0
        %5404 = vmatpush2.bf16.msra.mxu0 0
        %5405 = vmatprep.subr.bf16.mxu0 0
        %5406 = vmatpush2.bf16.msra.mxu0 0
        %5407 = vmatprep.subr.bf16.mxu0 0
        %5408 = vmatpush2.bf16.msra.mxu0 0
        %5409 = vmatprep.subr.bf16.mxu0 0
        %5410 = vmatpush2.bf16.msra.mxu0 0
        %5411 = vmatprep.subr.bf16.mxu0 0
        %5412 = vmatpush2.bf16.msra.mxu0 0
        %5413 = vmatprep.subr.bf16.mxu0 0
        %5414 = vmatpush2.bf16.msra.mxu0 0
        %5415 = vmatprep.subr.bf16.mxu0 0
        %5416 = vmatpush2.bf16.msra.mxu0 0
        %5417 = vmatprep.subr.bf16.mxu0 0
        %5418 = vmatpush2.bf16.msra.mxu0 0
        %5419 = vmatprep.mubr.bf16.mxu0 0
        %5420 = vmatmul.mubr.bf16.gmra.mxu0 %v5378
        %v5421 = vpop.f32.mrf.mxu0
        %v5422 = vadd.f32 %v5323, %v5421
        %v5423 = vpop.f32.mrf.mxu0
        %v5424 = vpop.f32.mrf.mxu0
        %v5425 = vadd.f32 %v5323, %v5424
        %v5426 = vpop.f32.mrf.mxu0
        %5427 = vmatprep.mubr.bf16.mxu0 0
        %5428 = vmatmul.mubr.bf16.gmra.mxu0 %v5381
        %v5429 = vpop.f32.mrf.mxu0
        %v5430 = vadd.f32 %v5323, %v5429
        %v5431 = vpop.f32.mrf.mxu0
        %v5432 = vpop.f32.mrf.mxu0
        %v5433 = vadd.f32 %v5323, %v5432
        %v5434 = vpop.f32.mrf.mxu0
        %5435 = vdwg.mxu0
        %v5440 = vcombine.high %v5422, %v5422
        %v5441 = vcombine.high %v5425, %v5425
        %v5442 = vcombine.high %v5430, %v5430
        %v5443 = vcombine.high %v5433, %v5433
        %vm5448 = vcmask 60416
        %5449 = vst.msk [vmem:[%s352] sm:$0xf] %vm5448, %v5422
        %5450 = vst.msk [vmem:[%s352 + $0x4] sm:$0xf] %vm5448, %v5440
        %5451 = vst.msk [vmem:[%s352 + $0x8] sm:$0xf] %vm5448, %v5425
        %5452 = vst.msk [vmem:[%s352 + $0xc] sm:$0xf] %vm5448, %v5441
        %5453 = vst.msk [vmem:[%s352 + $0x10] sm:$0xf] %vm5448, %v5430
        %5454 = vst.msk [vmem:[%s352 + $0x14] sm:$0xf] %vm5448, %v5442
        %5455 = vst.msk [vmem:[%s352 + $0x18] sm:$0xf] %vm5448, %v5433
        %5456 = vst.msk [vmem:[%s352 + $0x1c] sm:$0xf] %vm5448, %v5443
        %s5457 = sand.u32 %s198, 1
        %s5458 = scalar_lea.sflag [#allocation5], %s5457
        %s5459 = sand.u32 %s198, 1
        %s5460 = smul.addr %s5459, 32
        %s5461 = scalar_lea.vmem [#allocation4], %s5460
        // Predicated region
        $region57: #{tpu_custom_call.1} parent=39 // pred_check
          %p5462 = pneg %p208
        $region58: #{tpu_custom_call.1} parent=39 // pred_check_branch
          %5464 = sbr.rel (%p5462) target = $region60
        $region59: #{tpu_custom_call.1} parent=39 // pred_region
          %s5465 = smul.u32 %s25, 5
          %s5466 = sadd.s32 %s5465, %s26
          %s5468 = ssub.s32 512, 512
          %5469 = vsyncadd %s5458, %s5468
          %s5470 = smul.addr %s5466, 8
          %s5471 = smul.addr %s24, 40
          %s5472 = sadd.s32 %s5470, %s5471
          %s5473 = smul.addr %s5472, 64
          %s5474 = scalar_lea.hbm %s5, %s5473
          %s5475 = sshll.u32 %s5461, 4
          %s5476 = int_to_ptr.vmem [resolvable:$true] %s5475
          %5481 = dma.vmem_to_hbm [thread:$0]  %s5476, 512, %s5474, %s5458, 64, 64, 4
        $region60: #{tpu_custom_call.1} parent=39 // pred_fallthru
          _
      $region40: #{tpu_custom_call.1} parent=5 // pred_fallthru
        _
      %p5482 = scmp.le.s32.totalorder 2, %s14
      // Predicated region
      $region61: #{tpu_custom_call.1} parent=5 // pred_check
        %p5483 = pneg %p5482
      $region62: #{tpu_custom_call.1} parent=5 // pred_check_branch
        %5485 = sbr.rel (%p5483) target = $region64
      $region63: #{tpu_custom_call.1} parent=5 // pred_region
        %s5486 = ssub.s32 %s14, 2
        // Predicated region
        $region65: #{tpu_custom_call.1} parent=63 // pred_check
          %p5487 = pneg %p214
        $region66: #{tpu_custom_call.1} parent=63 // pred_check_branch
          %5489 = sbr.rel (%p5487) target = $region68
        $region67: #{tpu_custom_call.1} parent=63 // pred_region
          %s5490 = sand.u32 %s199, 1
          %s5491 = scalar_lea.sflag [#allocation5], %s5490
          %s5492 = sand.u32 %s199, 1
          %s5493 = smul.addr %s5492, 32
          %s5494 = scalar_lea.vmem [#allocation4], %s5493
          %5495 = dma.done %s5491, 512
        $region68: #{tpu_custom_call.1} parent=63 // pred_fallthru
          _
      $region64: #{tpu_custom_call.1} parent=5 // pred_fallthru
        _
    $region6: #{tpu_custom_call.1} parent=1 // loop_footer
      %s18 = sadd.s32 1, %s14
    $region7: #{tpu_custom_call.1} parent=1 // loop_footer_branch
      %13 = sbr.rel target = $region3
    $region8: #{tpu_custom_call.1} parent=1 // loop_exit
      _
    %5496 = vsyncpa [#allocation5], 1
    %s5497 = scalar_lea.sflag [#allocation5], 1
    %5498 = vsyncpa %s5497, 1

</llo_original>
